<compile_context>
chip_gen: v5e
topology: v5e:2x2
jax: 0.10.0
libtpu: 0.0.40
codegen_flags: <defaults>
</compile_context>

<pallas_src>
import functools
import math

import jax
import jax.numpy as jnp
from jax import lax
from jax.experimental import pallas as pl
from jax.experimental.pallas import tpu as pltpu


def _attention_block_kernel(x_ref, gavg_ref, gamma_ref, beta_ref,
                            qkvw_ref, qkvb_ref, projw_ref, projb_ref, o_ref,
                            *, num_heads, batch_block, seq_len, eps):
    Bb, T = batch_block, seq_len
    x = x_ref[...]                                   # [C, Bb*T] f32
    C = x.shape[0]
    ch = C // num_heads

    gavg = gavg_ref[...]                             # [C, C] group combine (incl. 1/(cpg*T))
    gamma = gamma_ref[...]                           # [C, 1]
    beta = beta_ref[...]                             # [C, 1]

    # ---- GroupNorm(num_groups, C), affine, swish=0.0 (centered two-pass) ----
    # Per-channel lane sums per batch slab -> one small matmul combines the
    # channels of each group for ALL Bb slabs at once (N = Bb).  The centered
    # second pass avoids E[x^2]-mean^2 cancellation on real activations.
    slabs = [x[:, b * T:(b + 1) * T] for b in range(Bb)]              # aligned views
    ch_sum = jnp.concatenate(
        [jnp.sum(s, axis=1, keepdims=True) for s in slabs], axis=1)   # [C, Bb]
    mean = jnp.dot(gavg, ch_sum, preferred_element_type=jnp.float32)  # [C, Bb]
    xc = [slabs[b] - mean[:, b:b + 1] for b in range(Bb)]
    ch_ss = jnp.concatenate(
        [jnp.sum(c * c, axis=1, keepdims=True) for c in xc], axis=1)  # [C, Bb]
    var = jnp.dot(gavg, ch_ss, preferred_element_type=jnp.float32)    # [C, Bb]
    inv = lax.rsqrt(var + eps)                                        # [C, Bb]
    xn = jnp.concatenate(
        [(xc[b] * (gamma * inv[:, b:b + 1]) + beta).astype(jnp.bfloat16)
         for b in range(Bb)], axis=1)                                 # [C, Bb*T] bf16

    # ---- qkv 1x1 conv: batch folded into the matmul N dimension -------------
    # (weights pre-permuted into head-major q|k|v blocks; the full 1/sqrt(ch)
    #  attention scale is pre-folded into the q rows in the wrapper)
    qkv = jnp.dot(qkvw_ref[...], xn, preferred_element_type=jnp.float32)
    qkv = qkv + qkvb_ref[...]                                         # [3C, Bb*T] f32

    # ---- attention per batch slab, all heads batched, no transposed matmuls -
    a_slabs = []
    for b in range(Bb):
        qkv_b = qkv[:, b * T:(b + 1) * T]                             # [3C, T]
        q = qkv_b[0:C].reshape(num_heads, ch, T).astype(jnp.bfloat16)
        k = qkv_b[C:2 * C].reshape(num_heads, ch, T).astype(jnp.bfloat16)
        v = qkv_b[2 * C:3 * C].reshape(num_heads, ch, T).astype(jnp.bfloat16)

        # w[h, t, s] = sum_c q[h, c, t] * k[h, c, s]
        w = lax.dot_general(q, k, (((1,), (1,)), ((0,), (0,))),
                            preferred_element_type=jnp.float32)       # [H, T, T] f32
        w = w - jnp.max(w, axis=-1, keepdims=True)
        # NOTE: on v6e/v7x the exp could be done in bf16 (bf16 EUP) to halve the
        # [H,T,T] footprint; kept f32 here so the same kernel is exact-enough on
        # v5e and the row sums accumulate in f32.
        e = jnp.exp(w)                                                # f32
        l = jnp.sum(e, axis=-1)                                       # [H, T] f32
        p = e.astype(jnp.bfloat16)                                    # unnormalized probs

        # a[h, c, t] = sum_s v[h, c, s] * p[h, t, s]   (normalization deferred)
        a = lax.dot_general(v, p, (((2,), (2,)), ((0,), (0,))),
                            preferred_element_type=jnp.float32)       # [H, ch, T] f32
        inv_l = pl.reciprocal(l, approx=True)[:, None, :]             # [H, 1, T]
        a_slabs.append((a * inv_l).reshape(C, T).astype(jnp.bfloat16))
    a_all = jnp.concatenate(a_slabs, axis=1)                          # [C, Bb*T] bf16

    # ---- proj_out 1x1 conv + residual (x is VMEM-resident) ------------------
    h_out = jnp.dot(projw_ref[...], a_all, preferred_element_type=jnp.float32)
    o_ref[...] = x + (h_out + projb_ref[...])

    # TODO(synk): encoder_out / mask branch (encoder_kv conv + k/v concat +
    # additive mask) is not implemented; only the encoder_out=None path is covered.
    # TODO(synk): flash-tile the [H,T,T] scores for large T: score+prob
    # intermediates ~ (4+4+2)*H*T^2 bytes (~40 MiB at H=4, T=1024) -> add a
    # KV-block grid axis marked "arbitrary" with online-softmax (m/l/acc VMEM
    # scratch) when T >= ~1024 on v7x (64 MiB VMEM) or T >= ~2048 on v5e/v6e.
    # TODO(synk): for large-T deployments keep x/out bf16 at the pallas_call
    # boundary (residual add in f32 in-kernel) to halve HBM traffic.


def attention_block_forward(x, params, *, num_heads, num_groups=32, eps=1e-5,
                            batch_block=None):
    B, C, H, W = x.shape
    T = H * W
    assert C % num_heads == 0 and C % num_groups == 0
    ch = C // num_heads
    cpg = C // num_groups

    f32b, bf16b = 4, 2
    per_slab_attn = num_heads * T * T * (f32b + f32b + bf16b)        # w, e, p

    # Batch elements packed per grid step: pack as much as possible while
    # (a) keeping >= 2 grid steps so the "parallel" axis can still feed both
    # TensorCores on v7x, and (b) keeping the per-step attention intermediates
    # within a modest VMEM budget (the per-slab Python loop does not bound
    # live ranges, so budget all Bb slabs).
    if batch_block is None:
        batch_block = 1
        for bb in range(B // 2, 0, -1):
            if B % bb == 0 and bb * per_slab_attn <= 16 * 1024 * 1024:
                batch_block = bb
                break
    assert B % batch_block == 0
    Bb = batch_block

    # Channel-major layout with batch folded into lanes: [C, B*T].
    x_cbt = (x.reshape(B, C, T).transpose(1, 0, 2)
             .reshape(C, B * T).astype(jnp.float32))

    # Constant group-average combine matrix: group_mean = gavg @ per_channel_sum.
    gid = jnp.arange(C) // cpg
    gavg = (gid[:, None] == gid[None, :]).astype(jnp.float32) / float(cpg * T)

    gamma = params["gn_gamma"].reshape(C, 1).astype(jnp.float32)
    beta = params["gn_beta"].reshape(C, 1).astype(jnp.float32)

    # Permute the interleaved per-head (q,k,v) conv rows into contiguous
    # head-major q|k|v blocks and fold the 1/sqrt(ch) attention scale into the
    # q rows (weight AND bias) — free in the wrapper, removes per-head slicing
    # and q/k scaling from the kernel.
    idx = jnp.arange(C)
    h_idx, c_idx = idx // ch, idx % ch
    perm = jnp.concatenate([h_idx * 3 * ch + t * ch + c_idx for t in range(3)])
    row_scale = jnp.concatenate([
        jnp.full((C,), 1.0 / math.sqrt(ch), jnp.float32),
        jnp.ones((2 * C,), jnp.float32)])
    qkv_w = (params["qkv_w"].astype(jnp.float32)[perm]
             * row_scale[:, None]).astype(jnp.bfloat16)               # [3C, C] bf16
    qkv_b = (params["qkv_b"].astype(jnp.float32)[perm]
             * row_scale).reshape(3 * C, 1)                           # [3C, 1] f32

    proj_w = params["proj_w"].astype(jnp.bfloat16)                    # [C, C] bf16
    proj_b = params["proj_b"].reshape(C, 1).astype(jnp.float32)

    # Computed VMEM bound (double-buffered tiles + weights + activations +
    # attention intermediates), 2x headroom, capped at 32 MiB (v7x-safe).
    tile_bytes = 2 * 2 * C * Bb * T * f32b                            # x + out
    weight_bytes = 2 * (C * C * f32b + 3 * C * C * bf16b
                        + C * C * bf16b + 8 * C * f32b)
    act_bytes = C * Bb * T * (2 * bf16b + f32b) + 3 * C * Bb * T * f32b
    attn_bytes = Bb * per_slab_attn + num_heads * max(ch, 8) * T * f32b
    vmem_limit = int(min(32 * 1024 * 1024,
                         max(8 * 1024 * 1024,
                             2 * (tile_bytes + weight_bytes + act_bytes
                                  + attn_bytes))))

    kernel = functools.partial(_attention_block_kernel,
                               num_heads=num_heads, batch_block=Bb,
                               seq_len=T, eps=eps)
    out = pl.pallas_call(
        kernel,
        out_shape=jax.ShapeDtypeStruct((C, B * T), jnp.float32),
        grid_spec=pltpu.PrefetchScalarGridSpec(
            num_scalar_prefetch=0,
            grid=(B // Bb,),
            in_specs=[
                pl.BlockSpec((C, Bb * T), lambda i: (0, i)),          # x (chan-major)
                pl.BlockSpec((C, C), lambda i: (0, 0)),               # group-avg matrix
                pl.BlockSpec((C, 1), lambda i: (0, 0)),               # gn gamma
                pl.BlockSpec((C, 1), lambda i: (0, 0)),               # gn beta
                pl.BlockSpec((3 * C, C), lambda i: (0, 0)),           # qkv weight (bf16)
                pl.BlockSpec((3 * C, 1), lambda i: (0, 0)),           # qkv bias
                pl.BlockSpec((C, C), lambda i: (0, 0)),               # proj weight (bf16)
                pl.BlockSpec((C, 1), lambda i: (0, 0)),               # proj bias
            ],
            out_specs=pl.BlockSpec((C, Bb * T), lambda i: (0, i)),
        ),
        compiler_params=pltpu.CompilerParams(
            dimension_semantics=("parallel",),
            vmem_limit_bytes=vmem_limit),
    )(x_cbt, gavg, gamma, beta, qkv_w, qkv_b, proj_w, proj_b)
    return out.reshape(C, B, T).transpose(1, 0, 2).reshape(B, C, H, W)


def reference_forward(x, params, *, num_heads, num_groups=32, eps=1e-5):
    """Pure-JAX f32 reference matching the PyTorch module forward."""
    B, C, H, W = x.shape
    T = H * W
    xf = x.reshape(B, C, T)
    xg = xf.reshape(B, num_groups, -1)
    mean = xg.mean(axis=-1, keepdims=True)
    var = ((xg - mean) ** 2).mean(axis=-1, keepdims=True)
    xn = ((xg - mean) / jnp.sqrt(var + eps)).reshape(B, C, T)
    xn = xn * params["gn_gamma"][None, :, None] + params["gn_beta"][None, :, None]
    qkv = jnp.einsum("oc,bct->bot", params["qkv_w"], xn) + params["qkv_b"][None, :, None]
    ch = C // num_heads
    q, k, v = jnp.split(qkv.reshape(B * num_heads, 3 * ch, T), 3, axis=1)
    scale = 1.0 / math.sqrt(math.sqrt(ch))
    w = jnp.einsum("bct,bcs->bts", q * scale, k * scale)
    w = jax.nn.softmax(w, axis=-1)
    a = jnp.einsum("bts,bcs->bct", w, v).reshape(B, C, T)
    h = jnp.einsum("oc,bct->bot", params["proj_w"], a) + params["proj_b"][None, :, None]
    return (xf + h).reshape(B, C, H, W)


if __name__ == "__main__":
    # C=64 with GroupNorm's 32 groups (2 ch/group), 4 heads (16 ch/head),
    # 16x16 spatial so T = 256 (lane-dense, multiple of 128).
    B, C, H, W = 2, 64, 16, 16
    num_heads = 4

    key = jax.random.PRNGKey(0)
    keys = jax.random.split(key, 7)
    x = jax.random.normal(keys[0], (B, C, H, W), jnp.float32)

    # Deterministic synthetic parameters (1x1 conv1d weights stored as [out, in]).
    # NOTE: the original module zero-inits proj_out (zero_module); we use non-zero
    # deterministic weights so the attention path actually affects the output —
    # forward semantics are unchanged.
    params = dict(
        gn_gamma=jnp.ones((C,), jnp.float32) + 0.1 * jax.random.normal(keys[1], (C,), jnp.float32),
        gn_beta=0.1 * jax.random.normal(keys[2], (C,), jnp.float32),
        qkv_w=jax.random.normal(keys[3], (3 * C, C), jnp.float32) / math.sqrt(C),
        qkv_b=0.1 * jax.random.normal(keys[4], (3 * C,), jnp.float32),
        proj_w=jax.random.normal(keys[5], (C, C), jnp.float32) / math.sqrt(C),
        proj_b=0.1 * jax.random.normal(keys[6], (C,), jnp.float32),
    )

    out = attention_block_forward(x, params, num_heads=num_heads)
    out = jax.block_until_ready(out)

    ref = reference_forward(x, params, num_heads=num_heads)
    assert out.shape == x.shape
    max_err = float(jnp.max(jnp.abs(out - ref)))
    # bf16 matmul operands (with f32 accumulation) => looser tolerance vs f32 ref.
    assert jnp.allclose(out, ref, atol=5e-2, rtol=5e-2), f"max abs err {max_err}"
    print("KERNEL_OK")
</pallas_src>

<mosaic_0001>
module attributes {stable_mosaic.version = 11 : i64} {
  func.func @_attention_block_kernel(%arg0: i32, %arg1: memref<64x256xf32, #tpu.memory_space<vmem>>, %arg2: memref<64x64xf32, #tpu.memory_space<vmem>>, %arg3: memref<64x1xf32, #tpu.memory_space<vmem>>, %arg4: memref<64x1xf32, #tpu.memory_space<vmem>>, %arg5: memref<192x64xbf16, #tpu.memory_space<vmem>>, %arg6: memref<192x1xf32, #tpu.memory_space<vmem>>, %arg7: memref<64x64xbf16, #tpu.memory_space<vmem>>, %arg8: memref<64x1xf32, #tpu.memory_space<vmem>>, %arg9: memref<64x256xf32, #tpu.memory_space<vmem>>) attributes {dimension_semantics = [#tpu.dimension_semantics<parallel>], iteration_bounds = array<i64: 2>, scalar_prefetch = 0 : i64, scratch_operands = 0 : i64, tpu.core_type = #tpu.core_type<tc>, window_params = [{transform_indices = @transform_0, window_bounds = array<i64: 64, 256>}, {pipeline_mode = #tpu.pipeline_mode<synchronous>, transform_indices = @transform_1, window_bounds = array<i64: 64, 64>}, {pipeline_mode = #tpu.pipeline_mode<synchronous>, transform_indices = @transform_2, window_bounds = array<i64: 64, 1>}, {pipeline_mode = #tpu.pipeline_mode<synchronous>, transform_indices = @transform_3, window_bounds = array<i64: 64, 1>}, {pipeline_mode = #tpu.pipeline_mode<synchronous>, transform_indices = @transform_4, window_bounds = array<i64: 192, 64>}, {pipeline_mode = #tpu.pipeline_mode<synchronous>, transform_indices = @transform_5, window_bounds = array<i64: 192, 1>}, {pipeline_mode = #tpu.pipeline_mode<synchronous>, transform_indices = @transform_6, window_bounds = array<i64: 64, 64>}, {pipeline_mode = #tpu.pipeline_mode<synchronous>, transform_indices = @transform_7, window_bounds = array<i64: 64, 1>}, {transform_indices = @transform_8, window_bounds = array<i64: 64, 256>}]} {
    %c0 = arith.constant 0 : index
    %c0_0 = arith.constant 0 : index
    %0 = vector.load %arg1[%c0, %c0_0] : memref<64x256xf32, #tpu.memory_space<vmem>>, vector<64x256xf32>
    %c0_1 = arith.constant 0 : index
    %c0_2 = arith.constant 0 : index
    %1 = vector.load %arg2[%c0_1, %c0_2] : memref<64x64xf32, #tpu.memory_space<vmem>>, vector<64x64xf32>
    %c0_3 = arith.constant 0 : index
    %c0_4 = arith.constant 0 : index
    %2 = vector.load %arg3[%c0_3, %c0_4] : memref<64x1xf32, #tpu.memory_space<vmem>>, vector<64x1xf32>
    %c0_5 = arith.constant 0 : index
    %c0_6 = arith.constant 0 : index
    %3 = vector.load %arg4[%c0_5, %c0_6] : memref<64x1xf32, #tpu.memory_space<vmem>>, vector<64x1xf32>
    %cst = arith.constant dense<0.000000e+00> : vector<64xf32>
    %4 = vector.multi_reduction <add>, %0, %cst [1] : vector<64x256xf32> to vector<64xf32>
    %5 = vector.shape_cast %4 : vector<64xf32> to vector<64x1xf32>
    %cst_7 = arith.constant dense<0.000000e+00> : vector<64x1xf32>
    %6 = tpu.matmul %1, %5, %cst_7 {dimension_numbers = #tpu.dot_dimension_numbers<[1], [0], [0], [1], [0, 0, 1, 1], [], []>} : vector<64x64xf32>, vector<64x1xf32>, vector<64x1xf32> -> vector<64x1xf32>
    %7 = vector.broadcast %6 : vector<64x1xf32> to vector<64x256xf32>
    %8 = arith.subf %0, %7 : vector<64x256xf32>
    %9 = arith.mulf %8, %8 : vector<64x256xf32>
    %cst_8 = arith.constant dense<0.000000e+00> : vector<64xf32>
    %10 = vector.multi_reduction <add>, %9, %cst_8 [1] : vector<64x256xf32> to vector<64xf32>
    %11 = vector.shape_cast %10 : vector<64xf32> to vector<64x1xf32>
    %cst_9 = arith.constant dense<0.000000e+00> : vector<64x1xf32>
    %12 = tpu.matmul %1, %11, %cst_9 {dimension_numbers = #tpu.dot_dimension_numbers<[1], [0], [0], [1], [0, 0, 1, 1], [], []>} : vector<64x64xf32>, vector<64x1xf32>, vector<64x1xf32> -> vector<64x1xf32>
    %cst_10 = arith.constant 9.99999974E-6 : f32
    %13 = vector.broadcast %cst_10 : f32 to vector<64x1xf32>
    %14 = arith.addf %12, %13 : vector<64x1xf32>
    %15 = math.rsqrt %14 : vector<64x1xf32>
    %16 = arith.mulf %2, %15 : vector<64x1xf32>
    %17 = vector.broadcast %16 : vector<64x1xf32> to vector<64x256xf32>
    %18 = arith.mulf %8, %17 : vector<64x256xf32>
    %19 = vector.broadcast %3 : vector<64x1xf32> to vector<64x256xf32>
    %20 = arith.addf %18, %19 : vector<64x256xf32>
    %21 = arith.truncf %20 : vector<64x256xf32> to vector<64x256xbf16>
    %c0_11 = arith.constant 0 : index
    %c0_12 = arith.constant 0 : index
    %22 = vector.load %arg5[%c0_11, %c0_12] : memref<192x64xbf16, #tpu.memory_space<vmem>>, vector<192x64xbf16>
    %cst_13 = arith.constant dense<0.000000e+00> : vector<192x256xf32>
    %23 = tpu.matmul %22, %21, %cst_13 {dimension_numbers = #tpu.dot_dimension_numbers<[1], [0], [0], [1], [0, 0, 1, 1], [], []>} : vector<192x64xbf16>, vector<64x256xbf16>, vector<192x256xf32> -> vector<192x256xf32>
    %c0_14 = arith.constant 0 : index
    %c0_15 = arith.constant 0 : index
    %24 = vector.load %arg6[%c0_14, %c0_15] : memref<192x1xf32, #tpu.memory_space<vmem>>, vector<192x1xf32>
    %25 = vector.broadcast %24 : vector<192x1xf32> to vector<192x256xf32>
    %26 = arith.addf %23, %25 : vector<192x256xf32>
    %27 = vector.extract_strided_slice %26 {offsets = [0, 0], sizes = [64, 256], strides = [1, 1]} : vector<192x256xf32> to vector<64x256xf32>
    %28 = vector.shape_cast %27 : vector<64x256xf32> to vector<4x16x256xf32>
    %29 = arith.truncf %28 : vector<4x16x256xf32> to vector<4x16x256xbf16>
    %30 = vector.extract_strided_slice %26 {offsets = [64, 0], sizes = [64, 256], strides = [1, 1]} : vector<192x256xf32> to vector<64x256xf32>
    %31 = vector.shape_cast %30 : vector<64x256xf32> to vector<4x16x256xf32>
    %32 = arith.truncf %31 : vector<4x16x256xf32> to vector<4x16x256xbf16>
    %33 = vector.extract_strided_slice %26 {offsets = [128, 0], sizes = [64, 256], strides = [1, 1]} : vector<192x256xf32> to vector<64x256xf32>
    %34 = vector.shape_cast %33 : vector<64x256xf32> to vector<4x16x256xf32>
    %35 = arith.truncf %34 : vector<4x16x256xf32> to vector<4x16x256xbf16>
    %cst_16 = arith.constant dense<0.000000e+00> : vector<4x256x256xf32>
    %36 = tpu.matmul %29, %32, %cst_16 {dimension_numbers = #tpu.dot_dimension_numbers<[1], [1], [2], [2], [0, 0, 0, 2, 1, 2], [0], [0]>} : vector<4x16x256xbf16>, vector<4x16x256xbf16>, vector<4x256x256xf32> -> vector<4x256x256xf32>
    %cst_17 = arith.constant dense<0xFF800000> : vector<4x256xf32>
    %37 = vector.multi_reduction <maximumf>, %36, %cst_17 [2] : vector<4x256x256xf32> to vector<4x256xf32>
    %38 = vector.shape_cast %37 : vector<4x256xf32> to vector<4x256x1xf32>
    %39 = vector.broadcast %38 : vector<4x256x1xf32> to vector<4x256x256xf32>
    %40 = arith.subf %36, %39 : vector<4x256x256xf32>
    %41 = math.exp %40 : vector<4x256x256xf32>
    %cst_18 = arith.constant dense<0.000000e+00> : vector<4x256xf32>
    %42 = vector.multi_reduction <add>, %41, %cst_18 [2] : vector<4x256x256xf32> to vector<4x256xf32>
    %43 = arith.truncf %41 : vector<4x256x256xf32> to vector<4x256x256xbf16>
    %cst_19 = arith.constant dense<0.000000e+00> : vector<4x16x256xf32>
    %44 = tpu.matmul %35, %43, %cst_19 {dimension_numbers = #tpu.dot_dimension_numbers<[2], [2], [1], [1], [0, 0, 0, 1, 1, 1], [0], [0]>} : vector<4x16x256xbf16>, vector<4x256x256xbf16>, vector<4x16x256xf32> -> vector<4x16x256xf32>
    %45 = tpu.reciprocal %42 {approx = true} : vector<4x256xf32> -> vector<4x256xf32>
    %46 = vector.shape_cast %45 : vector<4x256xf32> to vector<4x1x256xf32>
    %47 = vector.broadcast %46 : vector<4x1x256xf32> to vector<4x16x256xf32>
    %48 = arith.mulf %44, %47 : vector<4x16x256xf32>
    %49 = vector.shape_cast %48 : vector<4x16x256xf32> to vector<64x256xf32>
    %50 = arith.truncf %49 : vector<64x256xf32> to vector<64x256xbf16>
    %c0_20 = arith.constant 0 : index
    %c0_21 = arith.constant 0 : index
    %51 = vector.load %arg7[%c0_20, %c0_21] : memref<64x64xbf16, #tpu.memory_space<vmem>>, vector<64x64xbf16>
    %cst_22 = arith.constant dense<0.000000e+00> : vector<64x256xf32>
    %52 = tpu.matmul %51, %50, %cst_22 {dimension_numbers = #tpu.dot_dimension_numbers<[1], [0], [0], [1], [0, 0, 1, 1], [], []>} : vector<64x64xbf16>, vector<64x256xbf16>, vector<64x256xf32> -> vector<64x256xf32>
    %c0_23 = arith.constant 0 : index
    %c0_24 = arith.constant 0 : index
    %53 = vector.load %arg8[%c0_23, %c0_24] : memref<64x1xf32, #tpu.memory_space<vmem>>, vector<64x1xf32>
    %54 = vector.broadcast %53 : vector<64x1xf32> to vector<64x256xf32>
    %55 = arith.addf %52, %54 : vector<64x256xf32>
    %56 = arith.addf %0, %55 : vector<64x256xf32>
    %c0_25 = arith.constant 0 : index
    %c0_26 = arith.constant 0 : index
    %57 = vector.load %arg9[%c0_25, %c0_26] : memref<64x256xf32, #tpu.memory_space<vmem>>, vector<64x256xf32>
    tpu.vector_store %arg9[%c0_25, %c0_26], %56 {strides = array<i32>} : memref<64x256xf32, #tpu.memory_space<vmem>>, vector<64x256xf32>,
    return
  }
  func.func @transform_0(%arg0: i32) -> (i32, i32) {
    %c0_i32 = arith.constant 0 : i32
    %c0_i32_0 = arith.constant 0 : i32
    return %c0_i32, %arg0 : i32, i32
  }
  func.func @transform_1(%arg0: i32) -> (i32, i32) {
    %c0_i32 = arith.constant 0 : i32
    %c0_i32_0 = arith.constant 0 : i32
    %c0_i32_1 = arith.constant 0 : i32
    return %c0_i32, %c0_i32_0 : i32, i32
  }
  func.func @transform_2(%arg0: i32) -> (i32, i32) {
    %c0_i32 = arith.constant 0 : i32
    %c0_i32_0 = arith.constant 0 : i32
    %c0_i32_1 = arith.constant 0 : i32
    return %c0_i32, %c0_i32_0 : i32, i32
  }
  func.func @transform_3(%arg0: i32) -> (i32, i32) {
    %c0_i32 = arith.constant 0 : i32
    %c0_i32_0 = arith.constant 0 : i32
    %c0_i32_1 = arith.constant 0 : i32
    return %c0_i32, %c0_i32_0 : i32, i32
  }
  func.func @transform_4(%arg0: i32) -> (i32, i32) {
    %c0_i32 = arith.constant 0 : i32
    %c0_i32_0 = arith.constant 0 : i32
    %c0_i32_1 = arith.constant 0 : i32
    return %c0_i32, %c0_i32_0 : i32, i32
  }
  func.func @transform_5(%arg0: i32) -> (i32, i32) {
    %c0_i32 = arith.constant 0 : i32
    %c0_i32_0 = arith.constant 0 : i32
    %c0_i32_1 = arith.constant 0 : i32
    return %c0_i32, %c0_i32_0 : i32, i32
  }
  func.func @transform_6(%arg0: i32) -> (i32, i32) {
    %c0_i32 = arith.constant 0 : i32
    %c0_i32_0 = arith.constant 0 : i32
    %c0_i32_1 = arith.constant 0 : i32
    return %c0_i32, %c0_i32_0 : i32, i32
  }
  func.func @transform_7(%arg0: i32) -> (i32, i32) {
    %c0_i32 = arith.constant 0 : i32
    %c0_i32_0 = arith.constant 0 : i32
    %c0_i32_1 = arith.constant 0 : i32
    return %c0_i32, %c0_i32_0 : i32, i32
  }
  func.func @transform_8(%arg0: i32) -> (i32, i32) {
    %c0_i32 = arith.constant 0 : i32
    %c0_i32_0 = arith.constant 0 : i32
    return %c0_i32, %arg0 : i32, i32
  }
}

</mosaic_0001>

<llo_original>
// kernel: tpu_custom_call.1
$region0: #{tpu_custom_call.1}
  #allocation0 [shape = 'u32[]', space=smem, size = 0x4, offset = 0x4, fixed_abs, tag = 'smem constant byte address 0x4 - core index']
  #allocation1 [shape = 'u32[72,128]{1,0:T(1,128)}', space=vmem, size = 0x9000, scoped, tag = 'internal scratch']
  %s0 = inlined_call_operand.vmem [shape: f32[64,512], index: 0, kind: input, shape index: {}]
  %s1 = inlined_call_operand.vmem [shape: f32[64,64], index: 1, kind: input, shape index: {}]
  %s2 = inlined_call_operand.vmem [shape: f32[64,1], index: 2, kind: input, shape index: {}]
  %s3 = inlined_call_operand.vmem [shape: f32[64,1], index: 3, kind: input, shape index: {}]
  %s4 = inlined_call_operand.vmem [shape: bf16[192,64], index: 4, kind: input, shape index: {}]
  %s5 = inlined_call_operand.vmem [shape: f32[192,1], index: 5, kind: input, shape index: {}]
  %s6 = inlined_call_operand.vmem [shape: bf16[64,64], index: 6, kind: input, shape index: {}]
  %s7 = inlined_call_operand.vmem [shape: f32[64,1], index: 7, kind: input, shape index: {}]
  %s8 = inlined_call_operand.hbm [shape: f32[64,512], index: 8, kind: output, shape index: {}]
  %s9 = sld [smem:[#allocation0]]
  $region88: #{tpu_custom_call.1} parent=0
    _
  %s11 = ssub.s32 1, %s9
  %s12 = scalar_select 0, %s11, %s9
  $region1: #{tpu_custom_call.1} parent=0
    #allocation2 [shape = 'u8[131072]{0}', space=vmem, size = 0x20000, scoped, tag = 'input window, operand 0']
    #allocation3 [shape = 'u8[131072]{0}', space=vmem, size = 0x20000, scoped, tag = 'output window, operand 0']
    #allocation4 [shape = 's32[2]{0}', space=sflag, size = 0x8, scoped, tag = 'scoped memory for tpu_custom_call.1']
    %13 = vsyncpa [#allocation4], 0
    %s14 = scalar_lea.sflag [#allocation4], 1
    %15 = vsyncpa %s14, 0
    loop: start=0, step=1, limit=4
    $region2: #{tpu_custom_call.1} parent=1 // loop_pre_header
      _
    $region3: #{tpu_custom_call.1} parent=1 // loop_header
      %s17 = sphi 0, %s21
      %p18 = scmp.ge.s32.totalorder %s17, 4
      %s27 = sphi 0, %s29
      %s30 = sphi 0, %s27
      %s31 = sphi 0, %s30
      %s47 = sphi 0, %s31
      %s51 = sphi 0, %s51
      %s53 = sphi 0, %s51
      %s54 = sphi 0, %s53
      %s68 = sphi 0, %s54
      %s72 = sphi 0, %s72
      %s74 = sphi 0, %s72
      %s75 = sphi 0, %s74
      %s89 = sphi 0, %s75
      %s93 = sphi 0, %s93
      %s95 = sphi 0, %s93
      %s96 = sphi 0, %s95
      %s110 = sphi 0, %s96
      %s114 = sphi 0, %s114
      %s116 = sphi 0, %s114
      %s117 = sphi 0, %s116
      %s131 = sphi 0, %s117
      %s135 = sphi 0, %s135
      %s137 = sphi 0, %s135
      %s138 = sphi 0, %s137
      %s152 = sphi 0, %s138
      %s156 = sphi 0, %s156
      %s158 = sphi 0, %s156
      %s159 = sphi 0, %s158
      %s173 = sphi 0, %s159
      %s177 = sphi 0, %s177
      %s179 = sphi 0, %s177
      %s180 = sphi 0, %s179
      %s194 = sphi 0, %s180
      %s200 = sphi 0, %s202
      %s203 = sphi 0, %s200
      %s204 = sphi 0, %s203
      %s220 = sphi 0, %s204
    $region4: #{tpu_custom_call.1} parent=1 // loop_header_branch
      %20 = sbr.rel (%p18) target = $region8
    $region5: #{tpu_custom_call.1} parent=1 // loop_body
      %s22 = ssub.s32 %s17, 1
      %s23 = ssub.s32 %s17, 2
      %s24 = sadd.s32 %s17, 1
      %s25 = ssub.s32 %s17, %s24
      %p26 = scmp.eq.s32.totalorder %s25, 0
      %s28 = sadd.s32 %s27, 1
      %s29 = scalar_select %p26, %s27, %s28
      %p32 = pneg %p26
      %p33 = scmp.eq.s32.totalorder %s17, 1
      %p34 = por %p32, %p33
      %p35 = scmp.ne.s32.totalorder %s27, %s30
      %p36 = scmp.eq.s32.totalorder %s17, 0
      %p37 = por %p35, %p36
      %p38 = scmp.ne.s32.totalorder %s27, %s30
      %p39 = scmp.eq.s32.totalorder %s22, 1
      %p40 = por %p38, %p39
      %p41 = scmp.ne.s32.totalorder %s30, %s31
      %p42 = scmp.eq.s32.totalorder %s22, 0
      %p43 = por %p41, %p42
      %p44 = scmp.ne.s32.totalorder %s30, %s31
      %p45 = scmp.eq.s32.totalorder %s23, 1
      %p46 = por %p44, %p45
      %p48 = scmp.ne.s32.totalorder %s31, %s47
      %p49 = scmp.eq.s32.totalorder %s23, 0
      %p50 = por %p48, %p49
      %s52 = sadd.s32 %s51, 1
      %p55 = scmp.eq.s32.totalorder %s17, 1
      %p56 = scmp.ne.s32.totalorder %s51, %s53
      %p57 = scmp.eq.s32.totalorder %s17, 0
      %p58 = por %p56, %p57
      %p59 = scmp.ne.s32.totalorder %s51, %s53
      %p60 = scmp.eq.s32.totalorder %s22, 1
      %p61 = por %p59, %p60
      %p62 = scmp.ne.s32.totalorder %s53, %s54
      %p63 = scmp.eq.s32.totalorder %s22, 0
      %p64 = por %p62, %p63
      %p65 = scmp.ne.s32.totalorder %s53, %s54
      %p66 = scmp.eq.s32.totalorder %s23, 1
      %p67 = por %p65, %p66
      %p69 = scmp.ne.s32.totalorder %s54, %s68
      %p70 = scmp.eq.s32.totalorder %s23, 0
      %p71 = por %p69, %p70
      %s73 = sadd.s32 %s72, 1
      %p76 = scmp.eq.s32.totalorder %s17, 1
      %p77 = scmp.ne.s32.totalorder %s72, %s74
      %p78 = scmp.eq.s32.totalorder %s17, 0
      %p79 = por %p77, %p78
      %p80 = scmp.ne.s32.totalorder %s72, %s74
      %p81 = scmp.eq.s32.totalorder %s22, 1
      %p82 = por %p80, %p81
      %p83 = scmp.ne.s32.totalorder %s74, %s75
      %p84 = scmp.eq.s32.totalorder %s22, 0
      %p85 = por %p83, %p84
      %p86 = scmp.ne.s32.totalorder %s74, %s75
      %p87 = scmp.eq.s32.totalorder %s23, 1
      %p88 = por %p86, %p87
      %p90 = scmp.ne.s32.totalorder %s75, %s89
      %p91 = scmp.eq.s32.totalorder %s23, 0
      %p92 = por %p90, %p91
      %s94 = sadd.s32 %s93, 1
      %p97 = scmp.eq.s32.totalorder %s17, 1
      %p98 = scmp.ne.s32.totalorder %s93, %s95
      %p99 = scmp.eq.s32.totalorder %s17, 0
      %p100 = por %p98, %p99
      %p101 = scmp.ne.s32.totalorder %s93, %s95
      %p102 = scmp.eq.s32.totalorder %s22, 1
      %p103 = por %p101, %p102
      %p104 = scmp.ne.s32.totalorder %s95, %s96
      %p105 = scmp.eq.s32.totalorder %s22, 0
      %p106 = por %p104, %p105
      %p107 = scmp.ne.s32.totalorder %s95, %s96
      %p108 = scmp.eq.s32.totalorder %s23, 1
      %p109 = por %p107, %p108
      %p111 = scmp.ne.s32.totalorder %s96, %s110
      %p112 = scmp.eq.s32.totalorder %s23, 0
      %p113 = por %p111, %p112
      %s115 = sadd.s32 %s114, 1
      %p118 = scmp.eq.s32.totalorder %s17, 1
      %p119 = scmp.ne.s32.totalorder %s114, %s116
      %p120 = scmp.eq.s32.totalorder %s17, 0
      %p121 = por %p119, %p120
      %p122 = scmp.ne.s32.totalorder %s114, %s116
      %p123 = scmp.eq.s32.totalorder %s22, 1
      %p124 = por %p122, %p123
      %p125 = scmp.ne.s32.totalorder %s116, %s117
      %p126 = scmp.eq.s32.totalorder %s22, 0
      %p127 = por %p125, %p126
      %p128 = scmp.ne.s32.totalorder %s116, %s117
      %p129 = scmp.eq.s32.totalorder %s23, 1
      %p130 = por %p128, %p129
      %p132 = scmp.ne.s32.totalorder %s117, %s131
      %p133 = scmp.eq.s32.totalorder %s23, 0
      %p134 = por %p132, %p133
      %s136 = sadd.s32 %s135, 1
      %p139 = scmp.eq.s32.totalorder %s17, 1
      %p140 = scmp.ne.s32.totalorder %s135, %s137
      %p141 = scmp.eq.s32.totalorder %s17, 0
      %p142 = por %p140, %p141
      %p143 = scmp.ne.s32.totalorder %s135, %s137
      %p144 = scmp.eq.s32.totalorder %s22, 1
      %p145 = por %p143, %p144
      %p146 = scmp.ne.s32.totalorder %s137, %s138
      %p147 = scmp.eq.s32.totalorder %s22, 0
      %p148 = por %p146, %p147
      %p149 = scmp.ne.s32.totalorder %s137, %s138
      %p150 = scmp.eq.s32.totalorder %s23, 1
      %p151 = por %p149, %p150
      %p153 = scmp.ne.s32.totalorder %s138, %s152
      %p154 = scmp.eq.s32.totalorder %s23, 0
      %p155 = por %p153, %p154
      %s157 = sadd.s32 %s156, 1
      %p160 = scmp.eq.s32.totalorder %s17, 1
      %p161 = scmp.ne.s32.totalorder %s156, %s158
      %p162 = scmp.eq.s32.totalorder %s17, 0
      %p163 = por %p161, %p162
      %p164 = scmp.ne.s32.totalorder %s156, %s158
      %p165 = scmp.eq.s32.totalorder %s22, 1
      %p166 = por %p164, %p165
      %p167 = scmp.ne.s32.totalorder %s158, %s159
      %p168 = scmp.eq.s32.totalorder %s22, 0
      %p169 = por %p167, %p168
      %p170 = scmp.ne.s32.totalorder %s158, %s159
      %p171 = scmp.eq.s32.totalorder %s23, 1
      %p172 = por %p170, %p171
      %p174 = scmp.ne.s32.totalorder %s159, %s173
      %p175 = scmp.eq.s32.totalorder %s23, 0
      %p176 = por %p174, %p175
      %s178 = sadd.s32 %s177, 1
      %p181 = scmp.eq.s32.totalorder %s17, 1
      %p182 = scmp.ne.s32.totalorder %s177, %s179
      %p183 = scmp.eq.s32.totalorder %s17, 0
      %p184 = por %p182, %p183
      %p185 = scmp.ne.s32.totalorder %s177, %s179
      %p186 = scmp.eq.s32.totalorder %s22, 1
      %p187 = por %p185, %p186
      %p188 = scmp.ne.s32.totalorder %s179, %s180
      %p189 = scmp.eq.s32.totalorder %s22, 0
      %p190 = por %p188, %p189
      %p191 = scmp.ne.s32.totalorder %s179, %s180
      %p192 = scmp.eq.s32.totalorder %s23, 1
      %p193 = por %p191, %p192
      %p195 = scmp.ne.s32.totalorder %s180, %s194
      %p196 = scmp.eq.s32.totalorder %s23, 0
      %p197 = por %p195, %p196
      %s198 = ssub.s32 %s17, %s24
      %p199 = scmp.eq.s32.totalorder %s198, 0
      %s201 = sadd.s32 %s200, 1
      %s202 = scalar_select %p199, %s200, %s201
      %p205 = pneg %p199
      %p206 = scmp.eq.s32.totalorder %s17, 1
      %p207 = por %p205, %p206
      %p208 = scmp.ne.s32.totalorder %s200, %s203
      %p209 = scmp.eq.s32.totalorder %s17, 0
      %p210 = por %p208, %p209
      %p211 = scmp.ne.s32.totalorder %s200, %s203
      %p212 = scmp.eq.s32.totalorder %s22, 1
      %p213 = por %p211, %p212
      %p214 = scmp.ne.s32.totalorder %s203, %s204
      %p215 = scmp.eq.s32.totalorder %s22, 0
      %p216 = por %p214, %p215
      %p217 = scmp.ne.s32.totalorder %s203, %s204
      %p218 = scmp.eq.s32.totalorder %s23, 1
      %p219 = por %p217, %p218
      %p221 = scmp.ne.s32.totalorder %s204, %s220
      %p222 = scmp.eq.s32.totalorder %s23, 0
      %p223 = por %p221, %p222
      %p224 = scmp.le.s32.totalorder 1, %s17
      %p225 = scmp.lt.s32.totalorder %s17, 3
      %p226 = pnand %p224, %p225
      %p227 = pneg %p226
      // Predicated region
      $region9: #{tpu_custom_call.1} parent=5 // pred_check
        _
      $region10: #{tpu_custom_call.1} parent=5 // pred_check_branch
        %229 = sbr.rel (%p226) target = $region12
      $region11: #{tpu_custom_call.1} parent=5 // pred_region
        %s230 = ssub.s32 %s17, 1
        // Predicated region
        $region13: #{tpu_custom_call.1} parent=11 // pred_check
          %p231 = pneg %p64
        $region14: #{tpu_custom_call.1} parent=11 // pred_check_branch
          %233 = sbr.rel (%p231) target = $region16
        $region15: #{tpu_custom_call.1} parent=11 // pred_region
          _
        $region16: #{tpu_custom_call.1} parent=11 // pred_fallthru
          _
        // Predicated region
        $region17: #{tpu_custom_call.1} parent=11 // pred_check
          %p234 = pneg %p85
        $region18: #{tpu_custom_call.1} parent=11 // pred_check_branch
          %236 = sbr.rel (%p234) target = $region20
        $region19: #{tpu_custom_call.1} parent=11 // pred_region
          _
        $region20: #{tpu_custom_call.1} parent=11 // pred_fallthru
          _
        // Predicated region
        $region21: #{tpu_custom_call.1} parent=11 // pred_check
          %p237 = pneg %p106
        $region22: #{tpu_custom_call.1} parent=11 // pred_check_branch
          %239 = sbr.rel (%p237) target = $region24
        $region23: #{tpu_custom_call.1} parent=11 // pred_region
          _
        $region24: #{tpu_custom_call.1} parent=11 // pred_fallthru
          _
        // Predicated region
        $region25: #{tpu_custom_call.1} parent=11 // pred_check
          %p240 = pneg %p127
        $region26: #{tpu_custom_call.1} parent=11 // pred_check_branch
          %242 = sbr.rel (%p240) target = $region28
        $region27: #{tpu_custom_call.1} parent=11 // pred_region
          _
        $region28: #{tpu_custom_call.1} parent=11 // pred_fallthru
          _
        // Predicated region
        $region29: #{tpu_custom_call.1} parent=11 // pred_check
          %p243 = pneg %p148
        $region30: #{tpu_custom_call.1} parent=11 // pred_check_branch
          %245 = sbr.rel (%p243) target = $region32
        $region31: #{tpu_custom_call.1} parent=11 // pred_region
          _
        $region32: #{tpu_custom_call.1} parent=11 // pred_fallthru
          _
        // Predicated region
        $region33: #{tpu_custom_call.1} parent=11 // pred_check
          %p246 = pneg %p169
        $region34: #{tpu_custom_call.1} parent=11 // pred_check_branch
          %248 = sbr.rel (%p246) target = $region36
        $region35: #{tpu_custom_call.1} parent=11 // pred_region
          _
        $region36: #{tpu_custom_call.1} parent=11 // pred_fallthru
          _
        // Predicated region
        $region37: #{tpu_custom_call.1} parent=11 // pred_check
          %p249 = pneg %p190
        $region38: #{tpu_custom_call.1} parent=11 // pred_check_branch
          %251 = sbr.rel (%p249) target = $region40
        $region39: #{tpu_custom_call.1} parent=11 // pred_region
          _
        $region40: #{tpu_custom_call.1} parent=11 // pred_fallthru
          _
      $region12: #{tpu_custom_call.1} parent=5 // pred_fallthru
        _
      %p252 = scmp.lt.s32.totalorder %s17, 2
      // Predicated region
      $region41: #{tpu_custom_call.1} parent=5 // pred_check
        %p253 = pneg %p252
      $region42: #{tpu_custom_call.1} parent=5 // pred_check_branch
        %255 = sbr.rel (%p253) target = $region44
      $region43: #{tpu_custom_call.1} parent=5 // pred_region
        // Predicated region
        $region45: #{tpu_custom_call.1} parent=43 // pred_check
          %p256 = pneg %p37
        $region46: #{tpu_custom_call.1} parent=43 // pred_check_branch
          %258 = sbr.rel (%p256) target = $region48
        $region47: #{tpu_custom_call.1} parent=43 // pred_region
          %s259 = sand.u32 %s27, 1
          %s260 = sand.u32 %s27, 1
          %s261 = smul.addr %s260, 128
          %s262 = scalar_lea.vmem [#allocation2], %s261
          %s263 = smul.u32 2, %s17
          %s264 = smul.addr %s263, 8
          %s265 = scalar_lea.vmem %s0, %s264
          // Predicated region
          $region49: #{tpu_custom_call.1} parent=47 // pred_check
            _
          $region50: #{tpu_custom_call.1} parent=47 // pred_check_branch
            %267 = sbr.rel (0) target = $region52
          $region51: #{tpu_custom_call.1} parent=47 // pred_region
            // Predicated region
            $region53: #{tpu_custom_call.1} parent=51 // pred_check
              _
            $region54: #{tpu_custom_call.1} parent=51 // pred_check_branch
              %269 = sbr.rel (0) target = $region56
            $region55: #{tpu_custom_call.1} parent=51 // pred_region
              loop: start=0, step=1, limit=1
              $region57: #{tpu_custom_call.1} parent=55 // loop_pre_header
                _
              $region58: #{tpu_custom_call.1} parent=55 // loop_header
                %s271 = sphi 0, %s275
                %p272 = scmp.ge.s32.totalorder %s271, 1
                %s276 = sphi %s265, %s265
                %s277 = sphi %s262, %s262
              $region59: #{tpu_custom_call.1} parent=55 // loop_header_branch
                %274 = sbr.rel (%p272) target = $region63
              $region60: #{tpu_custom_call.1} parent=55 // loop_body
                %v278 = vld [vmem:[%s276] sm:$0xff]
                %279 = vst [vmem:[%s277] sm:$0xff] %v278
                %v280 = vld [vmem:[%s276 + $0x8] sm:$0xff]
                %281 = vst [vmem:[%s277 + $0x8] sm:$0xff] %v280
                %v282 = vld [vmem:[%s276 + $0x20] sm:$0xff]
                %283 = vst [vmem:[%s277 + $0x10] sm:$0xff] %v282
                %v284 = vld [vmem:[%s276 + $0x28] sm:$0xff]
                %285 = vst [vmem:[%s277 + $0x18] sm:$0xff] %v284
                %v286 = vld [vmem:[%s276 + $0x40] sm:$0xff]
                %287 = vst [vmem:[%s277 + $0x20] sm:$0xff] %v286
                %v288 = vld [vmem:[%s276 + $0x48] sm:$0xff]
                %289 = vst [vmem:[%s277 + $0x28] sm:$0xff] %v288
                %v290 = vld [vmem:[%s276 + $0x60] sm:$0xff]
                %291 = vst [vmem:[%s277 + $0x30] sm:$0xff] %v290
                %v292 = vld [vmem:[%s276 + $0x68] sm:$0xff]
                %293 = vst [vmem:[%s277 + $0x38] sm:$0xff] %v292
                %v294 = vld [vmem:[%s276 + $0x80] sm:$0xff]
                %295 = vst [vmem:[%s277 + $0x40] sm:$0xff] %v294
                %v296 = vld [vmem:[%s276 + $0x88] sm:$0xff]
                %297 = vst [vmem:[%s277 + $0x48] sm:$0xff] %v296
                %v298 = vld [vmem:[%s276 + $0xa0] sm:$0xff]
                %299 = vst [vmem:[%s277 + $0x50] sm:$0xff] %v298
                %v300 = vld [vmem:[%s276 + $0xa8] sm:$0xff]
                %301 = vst [vmem:[%s277 + $0x58] sm:$0xff] %v300
                %v302 = vld [vmem:[%s276 + $0xc0] sm:$0xff]
                %303 = vst [vmem:[%s277 + $0x60] sm:$0xff] %v302
                %v304 = vld [vmem:[%s276 + $0xc8] sm:$0xff]
                %305 = vst [vmem:[%s277 + $0x68] sm:$0xff] %v304
                %v306 = vld [vmem:[%s276 + $0xe0] sm:$0xff]
                %307 = vst [vmem:[%s277 + $0x70] sm:$0xff] %v306
                %v308 = vld [vmem:[%s276 + $0xe8] sm:$0xff]
                %309 = vst [vmem:[%s277 + $0x78] sm:$0xff] %v308
              $region61: #{tpu_custom_call.1} parent=55 // loop_footer
                %s275 = sadd.s32 1, %s271
              $region62: #{tpu_custom_call.1} parent=55 // loop_footer_branch
                %270 = sbr.rel target = $region58
              $region63: #{tpu_custom_call.1} parent=55 // loop_exit
                _
            $region56: #{tpu_custom_call.1} parent=51 // pred_fallthru
              _
            // Predicated region
            $region64: #{tpu_custom_call.1} parent=51 // pred_check
              _
            $region65: #{tpu_custom_call.1} parent=51 // pred_check_branch
              %311 = sbr.rel target = $region67
            $region66: #{tpu_custom_call.1} parent=51 // pred_region
              _
            $region67: #{tpu_custom_call.1} parent=51 // pred_fallthru
              _
          $region52: #{tpu_custom_call.1} parent=47 // pred_fallthru
            _
          %312 = vnop
        $region48: #{tpu_custom_call.1} parent=43 // pred_fallthru
          _
      $region44: #{tpu_custom_call.1} parent=5 // pred_fallthru
        _
      %p313 = scmp.le.s32.totalorder 1, %s17
      %p314 = scmp.lt.s32.totalorder %s17, 3
      %p315 = pnand %p313, %p314
      %p316 = pneg %p315
      // Predicated region
      $region68: #{tpu_custom_call.1} parent=5 // pred_check
        _
      $region69: #{tpu_custom_call.1} parent=5 // pred_check_branch
        %318 = sbr.rel (%p315) target = $region71
      $region70: #{tpu_custom_call.1} parent=5 // pred_region
        %s319 = ssub.s32 %s17, 1
        %s320 = sand.u32 %s30, 1
        %s321 = sand.u32 %s30, 1
        %s322 = smul.addr %s321, 128
        %s323 = scalar_lea.vmem [#allocation2], %s322
        // Predicated region
        $region72: #{tpu_custom_call.1} parent=70 // pred_check
          %p324 = pneg %p43
        $region73: #{tpu_custom_call.1} parent=70 // pred_check_branch
          %326 = sbr.rel (%p324) target = $region75
        $region74: #{tpu_custom_call.1} parent=70 // pred_region
          _
        $region75: #{tpu_custom_call.1} parent=70 // pred_fallthru
          _
        %s327 = sand.u32 %s30, 1
        %s328 = sand.u32 %s30, 1
        %s329 = smul.addr %s328, 128
        %s330 = scalar_lea.vmem [#allocation2], %s329
        %p331 = pneg %p43
        %p332 = pneg %p40
        %p333 = pneg %p64
        %p334 = pneg %p61
        %p335 = pneg %p85
        %p336 = pneg %p82
        %p337 = pneg %p106
        %p338 = pneg %p103
        %p339 = pneg %p127
        %p340 = pneg %p124
        %p341 = pneg %p148
        %p342 = pneg %p145
        %p343 = pneg %p169
        %p344 = pneg %p166
        %p345 = pneg %p190
        %p346 = pneg %p187
        %p347 = pneg %p216
        %p348 = pneg %p213
        %s349 = sand.u32 %s203, 1
        %s350 = scalar_lea.sflag [#allocation4], %s349
        %s351 = sand.u32 %s203, 1
        %s352 = smul.addr %s351, 128
        %s353 = scalar_lea.vmem [#allocation3], %s352
        %s354 = smul.u32 2, %s22
        %s355 = smul.u32 2, %s22
        %v357 = vld [vmem:[%s323] sm:$0xff]
        %v358 = vld [vmem:[%s323 + $0x8] sm:$0xff]
        %v359 = vld [vmem:[%s323 + $0x10] sm:$0xff]
        %v360 = vld [vmem:[%s323 + $0x18] sm:$0xff]
        %v361 = vld [vmem:[%s323 + $0x20] sm:$0xff]
        %v362 = vld [vmem:[%s323 + $0x28] sm:$0xff]
        %v363 = vld [vmem:[%s323 + $0x30] sm:$0xff]
        %v364 = vld [vmem:[%s323 + $0x38] sm:$0xff]
        %v365 = vld [vmem:[%s323 + $0x40] sm:$0xff]
        %v366 = vld [vmem:[%s323 + $0x48] sm:$0xff]
        %v367 = vld [vmem:[%s323 + $0x50] sm:$0xff]
        %v368 = vld [vmem:[%s323 + $0x58] sm:$0xff]
        %v369 = vld [vmem:[%s323 + $0x60] sm:$0xff]
        %v370 = vld [vmem:[%s323 + $0x68] sm:$0xff]
        %v371 = vld [vmem:[%s323 + $0x70] sm:$0xff]
        %v372 = vld [vmem:[%s323 + $0x78] sm:$0xff]
        %v373 = vld [vmem:[%s1] sm:$0xff]
        %v374 = vld [vmem:[%s1 + $0x8] sm:$0xff]
        %v375 = vld [vmem:[%s1 + $0x10] sm:$0xff]
        %v376 = vld [vmem:[%s1 + $0x18] sm:$0xff]
        %v377 = vld [vmem:[%s1 + $0x20] sm:$0xff]
        %v378 = vld [vmem:[%s1 + $0x28] sm:$0xff]
        %v379 = vld [vmem:[%s1 + $0x30] sm:$0xff]
        %v380 = vld [vmem:[%s1 + $0x38] sm:$0xff]
        %v381 = vld [vmem:[%s2] sm:$0xff]
        %v382 = vld [vmem:[%s2 + $0x8] sm:$0xff]
        %v383 = vld [vmem:[%s2 + $0x10] sm:$0xff]
        %v384 = vld [vmem:[%s2 + $0x18] sm:$0xff]
        %v385 = vld [vmem:[%s2 + $0x20] sm:$0xff]
        %v386 = vld [vmem:[%s2 + $0x28] sm:$0xff]
        %v387 = vld [vmem:[%s2 + $0x30] sm:$0xff]
        %v388 = vld [vmem:[%s2 + $0x38] sm:$0xff]
        %v389 = vld [vmem:[%s3] sm:$0xff]
        %v390 = vld [vmem:[%s3 + $0x8] sm:$0xff]
        %v391 = vld [vmem:[%s3 + $0x10] sm:$0xff]
        %v392 = vld [vmem:[%s3 + $0x18] sm:$0xff]
        %v393 = vld [vmem:[%s3 + $0x20] sm:$0xff]
        %v394 = vld [vmem:[%s3 + $0x28] sm:$0xff]
        %v395 = vld [vmem:[%s3 + $0x30] sm:$0xff]
        %v396 = vld [vmem:[%s3 + $0x38] sm:$0xff]
        %v397 = vadd.f32 %v357, %v358
        %398 = vadd.xlane.f32.xlu0 %v397
        %v399 = vpop.xlane.xlu0 %398
        %v400 = vadd.f32 %v359, %v360
        %401 = vadd.xlane.f32.xlu0 %v400
        %v402 = vpop.xlane.xlu0 %401
        %v403 = vadd.f32 %v361, %v362
        %404 = vadd.xlane.f32.xlu0 %v403
        %v405 = vpop.xlane.xlu0 %404
        %v406 = vadd.f32 %v363, %v364
        %407 = vadd.xlane.f32.xlu0 %v406
        %v408 = vpop.xlane.xlu0 %407
        %v409 = vadd.f32 %v365, %v366
        %410 = vadd.xlane.f32.xlu0 %v409
        %v411 = vpop.xlane.xlu0 %410
        %v412 = vadd.f32 %v367, %v368
        %413 = vadd.xlane.f32.xlu0 %v412
        %v414 = vpop.xlane.xlu0 %413
        %v415 = vadd.f32 %v369, %v370
        %416 = vadd.xlane.f32.xlu0 %v415
        %v417 = vpop.xlane.xlu0 %416
        %v418 = vadd.f32 %v371, %v372
        %419 = vadd.xlane.f32.xlu0 %v418
        %v420 = vpop.xlane.xlu0 %419
        %vm421 = vcmask 523264
        %v423 = vsel %vm421, %v373, 0
        %v426 = vsel %vm421, %v374, 0
        %v429 = vsel %vm421, %v375, 0
        %v432 = vsel %vm421, %v376, 0
        %v435 = vsel %vm421, %v377, 0
        %v438 = vsel %vm421, %v378, 0
        %v441 = vsel %vm421, %v379, 0
        %v444 = vsel %vm421, %v380, 0
        %446 = vmatpush.msra.mxu0 0.0
        %447 = vmatpush.msra.mxu0 0.0
        %448 = vmatpush.msra.mxu0 0.0
        %449 = vmatpush.msra.mxu0 0.0
        %450 = vmatpush.msra.mxu0 0.0
        %451 = vmatpush.msra.mxu0 0.0
        %452 = vmatpush.msra.mxu0 0.0
        %453 = vmatpush.msra.mxu0 0.0
        %454 = vmatpush.msra.mxu0 %v420
        %455 = vmatpush.msra.mxu0 %v417
        %456 = vmatpush.msra.mxu0 %v414
        %457 = vmatpush.msra.mxu0 %v411
        %458 = vmatpush.msra.mxu0 %v408
        %459 = vmatpush.msra.mxu0 %v405
        %460 = vmatpush.msra.mxu0 %v402
        %461 = vmatpush.msra.mxu0 %v399
        %462 = vmatmul.f32.gmra.mxu0 %v423
        %v463 = vpop.f32.mrf.mxu0
        %v464 = vadd.f32 0.0, %v463
        %465 = vmatmul.f32.gmra.mxu0 %v426
        %v466 = vpop.f32.mrf.mxu0
        %v467 = vadd.f32 0.0, %v466
        %468 = vmatmul.f32.gmra.mxu0 %v429
        %v469 = vpop.f32.mrf.mxu0
        %v470 = vadd.f32 0.0, %v469
        %471 = vmatmul.f32.gmra.mxu0 %v432
        %v472 = vpop.f32.mrf.mxu0
        %v473 = vadd.f32 0.0, %v472
        %474 = vmatmul.f32.gmra.mxu0 %v435
        %v475 = vpop.f32.mrf.mxu0
        %v476 = vadd.f32 0.0, %v475
        %477 = vmatmul.f32.gmra.mxu0 %v438
        %v478 = vpop.f32.mrf.mxu0
        %v479 = vadd.f32 0.0, %v478
        %480 = vmatmul.f32.gmra.mxu0 %v441
        %v481 = vpop.f32.mrf.mxu0
        %v482 = vadd.f32 0.0, %v481
        %483 = vmatmul.f32.gmra.mxu0 %v444
        %v484 = vpop.f32.mrf.mxu0
        %v485 = vadd.f32 0.0, %v484
        %486 = vdwg.mxu0
        %488 = vset.pattern.permute.xlu0 0
        %489 = vperm.xlu0 %488, %v464
        %v490 = vpop.permute.xlu0 %489
        %493 = vset.pattern.permute.xlu0 0
        %494 = vperm.xlu0 %493, %v467
        %v495 = vpop.permute.xlu0 %494
        %498 = vset.pattern.permute.xlu0 0
        %499 = vperm.xlu0 %498, %v470
        %v500 = vpop.permute.xlu0 %499
        %503 = vset.pattern.permute.xlu0 0
        %504 = vperm.xlu0 %503, %v473
        %v505 = vpop.permute.xlu0 %504
        %508 = vset.pattern.permute.xlu0 0
        %509 = vperm.xlu0 %508, %v476
        %v510 = vpop.permute.xlu0 %509
        %513 = vset.pattern.permute.xlu0 0
        %514 = vperm.xlu0 %513, %v479
        %v515 = vpop.permute.xlu0 %514
        %518 = vset.pattern.permute.xlu0 0
        %519 = vperm.xlu0 %518, %v482
        %v520 = vpop.permute.xlu0 %519
        %523 = vset.pattern.permute.xlu0 0
        %524 = vperm.xlu0 %523, %v485
        %v525 = vpop.permute.xlu0 %524
        %v527 = vsub.f32 %v357, %v490
        %v528 = vsub.f32 %v358, %v490
        %v529 = vsub.f32 %v359, %v495
        %v530 = vsub.f32 %v360, %v495
        %v531 = vsub.f32 %v361, %v500
        %v532 = vsub.f32 %v362, %v500
        %v533 = vsub.f32 %v363, %v505
        %v534 = vsub.f32 %v364, %v505
        %v535 = vsub.f32 %v365, %v510
        %v536 = vsub.f32 %v366, %v510
        %v537 = vsub.f32 %v367, %v515
        %v538 = vsub.f32 %v368, %v515
        %v539 = vsub.f32 %v369, %v520
        %v540 = vsub.f32 %v370, %v520
        %v541 = vsub.f32 %v371, %v525
        %v542 = vsub.f32 %v372, %v525
        %v543 = vmul.f32 %v527, %v527
        %v544 = vmul.f32 %v528, %v528
        %v545 = vmul.f32 %v529, %v529
        %v546 = vmul.f32 %v530, %v530
        %v547 = vmul.f32 %v531, %v531
        %v548 = vmul.f32 %v532, %v532
        %v549 = vmul.f32 %v533, %v533
        %v550 = vmul.f32 %v534, %v534
        %v551 = vmul.f32 %v535, %v535
        %v552 = vmul.f32 %v536, %v536
        %v553 = vmul.f32 %v537, %v537
        %v554 = vmul.f32 %v538, %v538
        %v555 = vmul.f32 %v539, %v539
        %v556 = vmul.f32 %v540, %v540
        %v557 = vmul.f32 %v541, %v541
        %v558 = vmul.f32 %v542, %v542
        %v559 = vadd.f32 %v543, %v544
        %560 = vadd.xlane.f32.xlu0 %v559
        %v561 = vpop.xlane.xlu0 %560
        %v562 = vadd.f32 %v545, %v546
        %563 = vadd.xlane.f32.xlu0 %v562
        %v564 = vpop.xlane.xlu0 %563
        %v565 = vadd.f32 %v547, %v548
        %566 = vadd.xlane.f32.xlu0 %v565
        %v567 = vpop.xlane.xlu0 %566
        %v568 = vadd.f32 %v549, %v550
        %569 = vadd.xlane.f32.xlu0 %v568
        %v570 = vpop.xlane.xlu0 %569
        %v571 = vadd.f32 %v551, %v552
        %572 = vadd.xlane.f32.xlu0 %v571
        %v573 = vpop.xlane.xlu0 %572
        %v574 = vadd.f32 %v553, %v554
        %575 = vadd.xlane.f32.xlu0 %v574
        %v576 = vpop.xlane.xlu0 %575
        %v577 = vadd.f32 %v555, %v556
        %578 = vadd.xlane.f32.xlu0 %v577
        %v579 = vpop.xlane.xlu0 %578
        %v580 = vadd.f32 %v557, %v558
        %581 = vadd.xlane.f32.xlu0 %v580
        %v582 = vpop.xlane.xlu0 %581
        %583 = vmatpush.msra.mxu0 0.0
        %584 = vmatpush.msra.mxu0 0.0
        %585 = vmatpush.msra.mxu0 0.0
        %586 = vmatpush.msra.mxu0 0.0
        %587 = vmatpush.msra.mxu0 0.0
        %588 = vmatpush.msra.mxu0 0.0
        %589 = vmatpush.msra.mxu0 0.0
        %590 = vmatpush.msra.mxu0 0.0
        %591 = vmatpush.msra.mxu0 %v582
        %592 = vmatpush.msra.mxu0 %v579
        %593 = vmatpush.msra.mxu0 %v576
        %594 = vmatpush.msra.mxu0 %v573
        %595 = vmatpush.msra.mxu0 %v570
        %596 = vmatpush.msra.mxu0 %v567
        %597 = vmatpush.msra.mxu0 %v564
        %598 = vmatpush.msra.mxu0 %v561
        %599 = vmatmul.f32.gmra.mxu0 %v423
        %v600 = vpop.f32.mrf.mxu0
        %v601 = vadd.f32 1e-05, %v600
        %602 = vmatmul.f32.gmra.mxu0 %v426
        %v603 = vpop.f32.mrf.mxu0
        %v604 = vadd.f32 1e-05, %v603
        %605 = vmatmul.f32.gmra.mxu0 %v429
        %v606 = vpop.f32.mrf.mxu0
        %v607 = vadd.f32 1e-05, %v606
        %608 = vmatmul.f32.gmra.mxu0 %v432
        %v609 = vpop.f32.mrf.mxu0
        %v610 = vadd.f32 1e-05, %v609
        %611 = vmatmul.f32.gmra.mxu0 %v435
        %v612 = vpop.f32.mrf.mxu0
        %v613 = vadd.f32 1e-05, %v612
        %614 = vmatmul.f32.gmra.mxu0 %v438
        %v615 = vpop.f32.mrf.mxu0
        %v616 = vadd.f32 1e-05, %v615
        %617 = vmatmul.f32.gmra.mxu0 %v441
        %v618 = vpop.f32.mrf.mxu0
        %v619 = vadd.f32 1e-05, %v618
        %620 = vmatmul.f32.gmra.mxu0 %v444
        %v621 = vpop.f32.mrf.mxu0
        %v622 = vadd.f32 1e-05, %v621
        %623 = vdwg.mxu0
        %v624 = vrsqrt.pop %v601
        %v625 = vmul.f32 %v624, %v601
        %v626 = vmul.f32 %v625, %v624
        %v627 = vmul.f32 0.5, %v626
        %v628 = vsub.f32 1.5, %v627
        %v629 = vmul.f32 %v624, %v628
        %vm630 = vweird.f32 %v601
        %vm631 = vweird.f32 %v624
        %vm632 = vmor %vm630, %vm631
        %v633 = vsel %vm632, %v624, %v629
        %v634 = vrsqrt.pop %v604
        %v635 = vmul.f32 %v634, %v604
        %v636 = vmul.f32 %v635, %v634
        %v637 = vmul.f32 0.5, %v636
        %v638 = vsub.f32 1.5, %v637
        %v639 = vmul.f32 %v634, %v638
        %vm640 = vweird.f32 %v604
        %vm641 = vweird.f32 %v634
        %vm642 = vmor %vm640, %vm641
        %v643 = vsel %vm642, %v634, %v639
        %v644 = vrsqrt.pop %v607
        %v645 = vmul.f32 %v644, %v607
        %v646 = vmul.f32 %v645, %v644
        %v647 = vmul.f32 0.5, %v646
        %v648 = vsub.f32 1.5, %v647
        %v649 = vmul.f32 %v644, %v648
        %vm650 = vweird.f32 %v607
        %vm651 = vweird.f32 %v644
        %vm652 = vmor %vm650, %vm651
        %v653 = vsel %vm652, %v644, %v649
        %v654 = vrsqrt.pop %v610
        %v655 = vmul.f32 %v654, %v610
        %v656 = vmul.f32 %v655, %v654
        %v657 = vmul.f32 0.5, %v656
        %v658 = vsub.f32 1.5, %v657
        %v659 = vmul.f32 %v654, %v658
        %vm660 = vweird.f32 %v610
        %vm661 = vweird.f32 %v654
        %vm662 = vmor %vm660, %vm661
        %v663 = vsel %vm662, %v654, %v659
        %v664 = vrsqrt.pop %v613
        %v665 = vmul.f32 %v664, %v613
        %v666 = vmul.f32 %v665, %v664
        %v667 = vmul.f32 0.5, %v666
        %v668 = vsub.f32 1.5, %v667
        %v669 = vmul.f32 %v664, %v668
        %vm670 = vweird.f32 %v613
        %vm671 = vweird.f32 %v664
        %vm672 = vmor %vm670, %vm671
        %v673 = vsel %vm672, %v664, %v669
        %v674 = vrsqrt.pop %v616
        %v675 = vmul.f32 %v674, %v616
        %v676 = vmul.f32 %v675, %v674
        %v677 = vmul.f32 0.5, %v676
        %v678 = vsub.f32 1.5, %v677
        %v679 = vmul.f32 %v674, %v678
        %vm680 = vweird.f32 %v616
        %vm681 = vweird.f32 %v674
        %vm682 = vmor %vm680, %vm681
        %v683 = vsel %vm682, %v674, %v679
        %v684 = vrsqrt.pop %v619
        %v685 = vmul.f32 %v684, %v619
        %v686 = vmul.f32 %v685, %v684
        %v687 = vmul.f32 0.5, %v686
        %v688 = vsub.f32 1.5, %v687
        %v689 = vmul.f32 %v684, %v688
        %vm690 = vweird.f32 %v619
        %vm691 = vweird.f32 %v684
        %vm692 = vmor %vm690, %vm691
        %v693 = vsel %vm692, %v684, %v689
        %v694 = vrsqrt.pop %v622
        %v695 = vmul.f32 %v694, %v622
        %v696 = vmul.f32 %v695, %v694
        %v697 = vmul.f32 0.5, %v696
        %v698 = vsub.f32 1.5, %v697
        %v699 = vmul.f32 %v694, %v698
        %vm700 = vweird.f32 %v622
        %vm701 = vweird.f32 %v694
        %vm702 = vmor %vm700, %vm701
        %v703 = vsel %vm702, %v694, %v699
        %v704 = vmul.f32 %v381, %v633
        %v705 = vmul.f32 %v382, %v643
        %v706 = vmul.f32 %v383, %v653
        %v707 = vmul.f32 %v384, %v663
        %v708 = vmul.f32 %v385, %v673
        %v709 = vmul.f32 %v386, %v683
        %v710 = vmul.f32 %v387, %v693
        %v711 = vmul.f32 %v388, %v703
        %713 = vset.pattern.permute.xlu0 0
        %714 = vperm.xlu0 %713, %v704
        %v715 = vpop.permute.xlu0 %714
        %718 = vset.pattern.permute.xlu0 0
        %719 = vperm.xlu0 %718, %v705
        %v720 = vpop.permute.xlu0 %719
        %723 = vset.pattern.permute.xlu0 0
        %724 = vperm.xlu0 %723, %v706
        %v725 = vpop.permute.xlu0 %724
        %728 = vset.pattern.permute.xlu0 0
        %729 = vperm.xlu0 %728, %v707
        %v730 = vpop.permute.xlu0 %729
        %733 = vset.pattern.permute.xlu0 0
        %734 = vperm.xlu0 %733, %v708
        %v735 = vpop.permute.xlu0 %734
        %738 = vset.pattern.permute.xlu0 0
        %739 = vperm.xlu0 %738, %v709
        %v740 = vpop.permute.xlu0 %739
        %743 = vset.pattern.permute.xlu0 0
        %744 = vperm.xlu0 %743, %v710
        %v745 = vpop.permute.xlu0 %744
        %748 = vset.pattern.permute.xlu0 0
        %749 = vperm.xlu0 %748, %v711
        %v750 = vpop.permute.xlu0 %749
        %v752 = vmul.f32 %v527, %v715
        %v753 = vmul.f32 %v528, %v715
        %v754 = vmul.f32 %v529, %v720
        %v755 = vmul.f32 %v530, %v720
        %v756 = vmul.f32 %v531, %v725
        %v757 = vmul.f32 %v532, %v725
        %v758 = vmul.f32 %v533, %v730
        %v759 = vmul.f32 %v534, %v730
        %v760 = vmul.f32 %v535, %v735
        %v761 = vmul.f32 %v536, %v735
        %v762 = vmul.f32 %v537, %v740
        %v763 = vmul.f32 %v538, %v740
        %v764 = vmul.f32 %v539, %v745
        %v765 = vmul.f32 %v540, %v745
        %v766 = vmul.f32 %v541, %v750
        %v767 = vmul.f32 %v542, %v750
        %769 = vset.pattern.permute.xlu0 0
        %770 = vperm.xlu0 %769, %v389
        %v771 = vpop.permute.xlu0 %770
        %774 = vset.pattern.permute.xlu0 0
        %775 = vperm.xlu0 %774, %v390
        %v776 = vpop.permute.xlu0 %775
        %779 = vset.pattern.permute.xlu0 0
        %780 = vperm.xlu0 %779, %v391
        %v781 = vpop.permute.xlu0 %780
        %784 = vset.pattern.permute.xlu0 0
        %785 = vperm.xlu0 %784, %v392
        %v786 = vpop.permute.xlu0 %785
        %789 = vset.pattern.permute.xlu0 0
        %790 = vperm.xlu0 %789, %v393
        %v791 = vpop.permute.xlu0 %790
        %794 = vset.pattern.permute.xlu0 0
        %795 = vperm.xlu0 %794, %v394
        %v796 = vpop.permute.xlu0 %795
        %799 = vset.pattern.permute.xlu0 0
        %800 = vperm.xlu0 %799, %v395
        %v801 = vpop.permute.xlu0 %800
        %804 = vset.pattern.permute.xlu0 0
        %805 = vperm.xlu0 %804, %v396
        %v806 = vpop.permute.xlu0 %805
        %v808 = vadd.f32 %v752, %v771
        %v809 = vadd.f32 %v753, %v771
        %v810 = vadd.f32 %v754, %v776
        %v811 = vadd.f32 %v755, %v776
        %v812 = vadd.f32 %v756, %v781
        %v813 = vadd.f32 %v757, %v781
        %v814 = vadd.f32 %v758, %v786
        %v815 = vadd.f32 %v759, %v786
        %v816 = vadd.f32 %v760, %v791
        %v817 = vadd.f32 %v761, %v791
        %v818 = vadd.f32 %v762, %v796
        %v819 = vadd.f32 %v763, %v796
        %v820 = vadd.f32 %v764, %v801
        %v821 = vadd.f32 %v765, %v801
        %v822 = vadd.f32 %v766, %v806
        %v823 = vadd.f32 %v767, %v806
        %v824 = vpack.c.bf16 %v810, %v808
        %v825 = vpack.c.bf16 %v811, %v809
        %v826 = vpack.c.bf16 %v814, %v812
        %v827 = vpack.c.bf16 %v815, %v813
        %v828 = vpack.c.bf16 %v818, %v816
        %v829 = vpack.c.bf16 %v819, %v817
        %v830 = vpack.c.bf16 %v822, %v820
        %v831 = vpack.c.bf16 %v823, %v821
        %v832 = vld [vmem:[%s4] sm:$0xf]
        %v833 = vld [vmem:[%s4 + $0x4] sm:$0xf]
        %v834 = vld [vmem:[%s4 + $0x8] sm:$0xf]
        %v835 = vld [vmem:[%s4 + $0xc] sm:$0xf]
        %v836 = vld [vmem:[%s4 + $0x10] sm:$0xf]
        %v837 = vld [vmem:[%s4 + $0x14] sm:$0xf]
        %v838 = vld [vmem:[%s4 + $0x18] sm:$0xf]
        %v839 = vld [vmem:[%s4 + $0x1c] sm:$0xf]
        %v840 = vld [vmem:[%s4 + $0x20] sm:$0xf]
        %v841 = vld [vmem:[%s4 + $0x24] sm:$0xf]
        %v842 = vld [vmem:[%s4 + $0x28] sm:$0xf]
        %v843 = vld [vmem:[%s4 + $0x2c] sm:$0xf]
        %v844 = vld [vmem:[%s4 + $0x30] sm:$0xf]
        %v845 = vld [vmem:[%s4 + $0x34] sm:$0xf]
        %v846 = vld [vmem:[%s4 + $0x38] sm:$0xf]
        %v847 = vld [vmem:[%s4 + $0x3c] sm:$0xf]
        %v848 = vld [vmem:[%s4 + $0x40] sm:$0xf]
        %v849 = vld [vmem:[%s4 + $0x44] sm:$0xf]
        %v850 = vld [vmem:[%s4 + $0x48] sm:$0xf]
        %v851 = vld [vmem:[%s4 + $0x4c] sm:$0xf]
        %v852 = vld [vmem:[%s4 + $0x50] sm:$0xf]
        %v853 = vld [vmem:[%s4 + $0x54] sm:$0xf]
        %v854 = vld [vmem:[%s4 + $0x58] sm:$0xf]
        %v855 = vld [vmem:[%s4 + $0x5c] sm:$0xf]
        %v856 = vld [vmem:[%s5] sm:$0xff]
        %v857 = vld [vmem:[%s5 + $0x8] sm:$0xff]
        %v858 = vld [vmem:[%s5 + $0x10] sm:$0xff]
        %v859 = vld [vmem:[%s5 + $0x18] sm:$0xff]
        %v860 = vld [vmem:[%s5 + $0x20] sm:$0xff]
        %v861 = vld [vmem:[%s5 + $0x28] sm:$0xff]
        %v862 = vld [vmem:[%s5 + $0x30] sm:$0xff]
        %v863 = vld [vmem:[%s5 + $0x38] sm:$0xff]
        %v864 = vld [vmem:[%s5 + $0x40] sm:$0xff]
        %v865 = vld [vmem:[%s5 + $0x48] sm:$0xff]
        %v866 = vld [vmem:[%s5 + $0x50] sm:$0xff]
        %v867 = vld [vmem:[%s5 + $0x58] sm:$0xff]
        %v868 = vld [vmem:[%s5 + $0x60] sm:$0xff]
        %v869 = vld [vmem:[%s5 + $0x68] sm:$0xff]
        %v870 = vld [vmem:[%s5 + $0x70] sm:$0xff]
        %v871 = vld [vmem:[%s5 + $0x78] sm:$0xff]
        %v872 = vld [vmem:[%s5 + $0x80] sm:$0xff]
        %v873 = vld [vmem:[%s5 + $0x88] sm:$0xff]
        %v874 = vld [vmem:[%s5 + $0x90] sm:$0xff]
        %v875 = vld [vmem:[%s5 + $0x98] sm:$0xff]
        %v876 = vld [vmem:[%s5 + $0xa0] sm:$0xff]
        %v877 = vld [vmem:[%s5 + $0xa8] sm:$0xff]
        %v878 = vld [vmem:[%s5 + $0xb0] sm:$0xff]
        %v879 = vld [vmem:[%s5 + $0xb8] sm:$0xff]
        %881 = vset.pattern.permute.xlu0 0
        %882 = vperm.xlu0 %881, %v856
        %v883 = vpop.permute.xlu0 %882
        %886 = vset.pattern.permute.xlu0 0
        %887 = vperm.xlu0 %886, %v857
        %v888 = vpop.permute.xlu0 %887
        %891 = vset.pattern.permute.xlu0 0
        %892 = vperm.xlu0 %891, %v858
        %v893 = vpop.permute.xlu0 %892
        %896 = vset.pattern.permute.xlu0 0
        %897 = vperm.xlu0 %896, %v859
        %v898 = vpop.permute.xlu0 %897
        %901 = vset.pattern.permute.xlu0 0
        %902 = vperm.xlu0 %901, %v860
        %v903 = vpop.permute.xlu0 %902
        %906 = vset.pattern.permute.xlu0 0
        %907 = vperm.xlu0 %906, %v861
        %v908 = vpop.permute.xlu0 %907
        %911 = vset.pattern.permute.xlu0 0
        %912 = vperm.xlu0 %911, %v862
        %v913 = vpop.permute.xlu0 %912
        %916 = vset.pattern.permute.xlu0 0
        %917 = vperm.xlu0 %916, %v863
        %v918 = vpop.permute.xlu0 %917
        %921 = vset.pattern.permute.xlu0 0
        %922 = vperm.xlu0 %921, %v864
        %v923 = vpop.permute.xlu0 %922
        %926 = vset.pattern.permute.xlu0 0
        %927 = vperm.xlu0 %926, %v865
        %v928 = vpop.permute.xlu0 %927
        %931 = vset.pattern.permute.xlu0 0
        %932 = vperm.xlu0 %931, %v866
        %v933 = vpop.permute.xlu0 %932
        %936 = vset.pattern.permute.xlu0 0
        %937 = vperm.xlu0 %936, %v867
        %v938 = vpop.permute.xlu0 %937
        %941 = vset.pattern.permute.xlu0 0
        %942 = vperm.xlu0 %941, %v868
        %v943 = vpop.permute.xlu0 %942
        %946 = vset.pattern.permute.xlu0 0
        %947 = vperm.xlu0 %946, %v869
        %v948 = vpop.permute.xlu0 %947
        %951 = vset.pattern.permute.xlu0 0
        %952 = vperm.xlu0 %951, %v870
        %v953 = vpop.permute.xlu0 %952
        %956 = vset.pattern.permute.xlu0 0
        %957 = vperm.xlu0 %956, %v871
        %v958 = vpop.permute.xlu0 %957
        %961 = vset.pattern.permute.xlu0 0
        %962 = vperm.xlu0 %961, %v872
        %v963 = vpop.permute.xlu0 %962
        %966 = vset.pattern.permute.xlu0 0
        %967 = vperm.xlu0 %966, %v873
        %v968 = vpop.permute.xlu0 %967
        %971 = vset.pattern.permute.xlu0 0
        %972 = vperm.xlu0 %971, %v874
        %v973 = vpop.permute.xlu0 %972
        %976 = vset.pattern.permute.xlu0 0
        %977 = vperm.xlu0 %976, %v875
        %v978 = vpop.permute.xlu0 %977
        %981 = vset.pattern.permute.xlu0 0
        %982 = vperm.xlu0 %981, %v876
        %v983 = vpop.permute.xlu0 %982
        %986 = vset.pattern.permute.xlu0 0
        %987 = vperm.xlu0 %986, %v877
        %v988 = vpop.permute.xlu0 %987
        %991 = vset.pattern.permute.xlu0 0
        %992 = vperm.xlu0 %991, %v878
        %v993 = vpop.permute.xlu0 %992
        %996 = vset.pattern.permute.xlu0 0
        %997 = vperm.xlu0 %996, %v879
        %v998 = vpop.permute.xlu0 %997
        %v1024 = vunpack.c.l.b16 %v832
        %v1025 = vunpack.c.l.b16 %v833
        %v1026 = vunpack.c.l.b16 %v834
        %v1027 = vunpack.c.l.b16 %v835
        %v1028 = vunpack.c.l.b16 %v836
        %v1029 = vunpack.c.l.b16 %v837
        %v1030 = vunpack.c.l.b16 %v838
        %v1031 = vunpack.c.l.b16 %v839
        %v1032 = vunpack.c.l.b16 %v840
        %v1033 = vunpack.c.l.b16 %v841
        %v1034 = vunpack.c.l.b16 %v842
        %v1035 = vunpack.c.l.b16 %v843
        %v1036 = vunpack.c.l.b16 %v844
        %v1037 = vunpack.c.l.b16 %v845
        %v1038 = vunpack.c.l.b16 %v846
        %v1039 = vunpack.c.l.b16 %v847
        %v1040 = vunpack.c.l.b16 %v848
        %v1041 = vunpack.c.l.b16 %v849
        %v1042 = vunpack.c.l.b16 %v850
        %v1043 = vunpack.c.l.b16 %v851
        %v1044 = vunpack.c.l.b16 %v852
        %v1045 = vunpack.c.l.b16 %v853
        %v1046 = vunpack.c.l.b16 %v854
        %v1047 = vunpack.c.l.b16 %v855
        %v1048 = vpack.c.b16 %v1025, %v1024
        %v1049 = vpack.c.b16 %v1027, %v1026
        %v1050 = vpack.c.b16 %v1029, %v1028
        %v1051 = vpack.c.b16 %v1031, %v1030
        %v1052 = vpack.c.b16 %v1033, %v1032
        %v1053 = vpack.c.b16 %v1035, %v1034
        %v1054 = vpack.c.b16 %v1037, %v1036
        %v1055 = vpack.c.b16 %v1039, %v1038
        %v1056 = vpack.c.b16 %v1041, %v1040
        %v1057 = vpack.c.b16 %v1043, %v1042
        %v1058 = vpack.c.b16 %v1045, %v1044
        %v1059 = vpack.c.b16 %v1047, %v1046
        %v1061 = vsel %vm421, %v1048, 0
        %v1064 = vsel %vm421, %v1049, 0
        %v1067 = vsel %vm421, %v1050, 0
        %v1070 = vsel %vm421, %v1051, 0
        %v1073 = vsel %vm421, %v1052, 0
        %v1076 = vsel %vm421, %v1053, 0
        %v1079 = vsel %vm421, %v1054, 0
        %v1082 = vsel %vm421, %v1055, 0
        %v1085 = vsel %vm421, %v1056, 0
        %v1088 = vsel %vm421, %v1057, 0
        %v1091 = vsel %vm421, %v1058, 0
        %v1094 = vsel %vm421, %v1059, 0
        %1096 = vmatpush.bf16.msra.mxu0 0
        %1097 = vmatpush.bf16.msra.mxu0 0
        %1098 = vmatpush.bf16.msra.mxu0 0
        %1099 = vmatpush.bf16.msra.mxu0 0
        %1100 = vmatpush.bf16.msra.mxu0 %v830
        %1101 = vmatpush.bf16.msra.mxu0 %v828
        %1102 = vmatpush.bf16.msra.mxu0 %v826
        %1103 = vmatpush.bf16.msra.mxu0 %v824
        %1104 = vmatmul.bf16.gmra.mxu0 %v1061
        %v1105 = vpop.f32.mrf.mxu0
        %v1106 = vadd.f32 %v883, %v1105
        %v1107 = vpop.f32.mrf.mxu0
        %v1108 = vadd.f32 %v888, %v1107
        %1109 = vmatmul.bf16.gmra.mxu0 %v1064
        %v1110 = vpop.f32.mrf.mxu0
        %v1111 = vadd.f32 %v893, %v1110
        %v1112 = vpop.f32.mrf.mxu0
        %v1113 = vadd.f32 %v898, %v1112
        %1114 = vmatmul.bf16.gmra.mxu0 %v1067
        %v1115 = vpop.f32.mrf.mxu0
        %v1116 = vadd.f32 %v903, %v1115
        %v1117 = vpop.f32.mrf.mxu0
        %v1118 = vadd.f32 %v908, %v1117
        %1119 = vmatmul.bf16.gmra.mxu0 %v1070
        %v1120 = vpop.f32.mrf.mxu0
        %v1121 = vadd.f32 %v913, %v1120
        %v1122 = vpop.f32.mrf.mxu0
        %v1123 = vadd.f32 %v918, %v1122
        %1124 = vmatmul.bf16.gmra.mxu0 %v1073
        %v1125 = vpop.f32.mrf.mxu0
        %v1126 = vadd.f32 %v923, %v1125
        %v1127 = vpop.f32.mrf.mxu0
        %v1128 = vadd.f32 %v928, %v1127
        %1129 = vmatmul.bf16.gmra.mxu0 %v1076
        %v1130 = vpop.f32.mrf.mxu0
        %v1131 = vadd.f32 %v933, %v1130
        %v1132 = vpop.f32.mrf.mxu0
        %v1133 = vadd.f32 %v938, %v1132
        %1134 = vmatmul.bf16.gmra.mxu0 %v1079
        %v1135 = vpop.f32.mrf.mxu0
        %v1136 = vadd.f32 %v943, %v1135
        %v1137 = vpop.f32.mrf.mxu0
        %v1138 = vadd.f32 %v948, %v1137
        %1139 = vmatmul.bf16.gmra.mxu0 %v1082
        %v1140 = vpop.f32.mrf.mxu0
        %v1141 = vadd.f32 %v953, %v1140
        %v1142 = vpop.f32.mrf.mxu0
        %v1143 = vadd.f32 %v958, %v1142
        %1144 = vmatmul.bf16.gmra.mxu0 %v1085
        %v1145 = vpop.f32.mrf.mxu0
        %v1146 = vadd.f32 %v963, %v1145
        %v1147 = vpop.f32.mrf.mxu0
        %v1148 = vadd.f32 %v968, %v1147
        %1149 = vmatmul.bf16.gmra.mxu0 %v1088
        %v1150 = vpop.f32.mrf.mxu0
        %v1151 = vadd.f32 %v973, %v1150
        %v1152 = vpop.f32.mrf.mxu0
        %v1153 = vadd.f32 %v978, %v1152
        %1154 = vmatmul.bf16.gmra.mxu0 %v1091
        %v1155 = vpop.f32.mrf.mxu0
        %v1156 = vadd.f32 %v983, %v1155
        %v1157 = vpop.f32.mrf.mxu0
        %v1158 = vadd.f32 %v988, %v1157
        %1159 = vmatmul.bf16.gmra.mxu0 %v1094
        %v1160 = vpop.f32.mrf.mxu0
        %v1161 = vadd.f32 %v993, %v1160
        %v1162 = vpop.f32.mrf.mxu0
        %v1163 = vadd.f32 %v998, %v1162
        %1164 = vdwg.mxu0
        %1165 = vmatpush.bf16.msra.mxu0 0
        %1166 = vmatpush.bf16.msra.mxu0 0
        %1167 = vmatpush.bf16.msra.mxu0 0
        %1168 = vmatpush.bf16.msra.mxu0 0
        %1169 = vmatpush.bf16.msra.mxu0 %v831
        %1170 = vmatpush.bf16.msra.mxu0 %v829
        %1171 = vmatpush.bf16.msra.mxu0 %v827
        %1172 = vmatpush.bf16.msra.mxu0 %v825
        %1173 = vmatmul.bf16.gmra.mxu0 %v1061
        %v1174 = vpop.f32.mrf.mxu0
        %v1175 = vadd.f32 %v883, %v1174
        %v1176 = vpop.f32.mrf.mxu0
        %v1177 = vadd.f32 %v888, %v1176
        %1178 = vmatmul.bf16.gmra.mxu0 %v1064
        %v1179 = vpop.f32.mrf.mxu0
        %v1180 = vadd.f32 %v893, %v1179
        %v1181 = vpop.f32.mrf.mxu0
        %v1182 = vadd.f32 %v898, %v1181
        %1183 = vmatmul.bf16.gmra.mxu0 %v1067
        %v1184 = vpop.f32.mrf.mxu0
        %v1185 = vadd.f32 %v903, %v1184
        %v1186 = vpop.f32.mrf.mxu0
        %v1187 = vadd.f32 %v908, %v1186
        %1188 = vmatmul.bf16.gmra.mxu0 %v1070
        %v1189 = vpop.f32.mrf.mxu0
        %v1190 = vadd.f32 %v913, %v1189
        %v1191 = vpop.f32.mrf.mxu0
        %v1192 = vadd.f32 %v918, %v1191
        %1193 = vmatmul.bf16.gmra.mxu0 %v1073
        %v1194 = vpop.f32.mrf.mxu0
        %v1195 = vadd.f32 %v923, %v1194
        %v1196 = vpop.f32.mrf.mxu0
        %v1197 = vadd.f32 %v928, %v1196
        %1198 = vmatmul.bf16.gmra.mxu0 %v1076
        %v1199 = vpop.f32.mrf.mxu0
        %v1200 = vadd.f32 %v933, %v1199
        %v1201 = vpop.f32.mrf.mxu0
        %v1202 = vadd.f32 %v938, %v1201
        %1203 = vmatmul.bf16.gmra.mxu0 %v1079
        %v1204 = vpop.f32.mrf.mxu0
        %v1205 = vadd.f32 %v943, %v1204
        %v1206 = vpop.f32.mrf.mxu0
        %v1207 = vadd.f32 %v948, %v1206
        %1208 = vmatmul.bf16.gmra.mxu0 %v1082
        %v1209 = vpop.f32.mrf.mxu0
        %v1210 = vadd.f32 %v953, %v1209
        %v1211 = vpop.f32.mrf.mxu0
        %v1212 = vadd.f32 %v958, %v1211
        %1213 = vmatmul.bf16.gmra.mxu0 %v1085
        %v1214 = vpop.f32.mrf.mxu0
        %v1215 = vadd.f32 %v963, %v1214
        %v1216 = vpop.f32.mrf.mxu0
        %v1217 = vadd.f32 %v968, %v1216
        %1218 = vmatmul.bf16.gmra.mxu0 %v1088
        %v1219 = vpop.f32.mrf.mxu0
        %v1220 = vadd.f32 %v973, %v1219
        %v1221 = vpop.f32.mrf.mxu0
        %v1222 = vadd.f32 %v978, %v1221
        %1223 = vmatmul.bf16.gmra.mxu0 %v1091
        %v1224 = vpop.f32.mrf.mxu0
        %v1225 = vadd.f32 %v983, %v1224
        %v1226 = vpop.f32.mrf.mxu0
        %v1227 = vadd.f32 %v988, %v1226
        %1228 = vmatmul.bf16.gmra.mxu0 %v1094
        %v1229 = vpop.f32.mrf.mxu0
        %v1230 = vadd.f32 %v993, %v1229
        %v1231 = vpop.f32.mrf.mxu0
        %v1232 = vadd.f32 %v998, %v1231
        %1233 = vdwg.mxu0
        %v1234 = vpack.c.bf16 %v1175, %v1106
        %v1235 = vpack.c.bf16 %v1177, %v1108
        %v1236 = vpack.c.bf16 %v1180, %v1111
        %v1237 = vpack.c.bf16 %v1182, %v1113
        %v1238 = vpack.c.bf16 %v1185, %v1116
        %v1239 = vpack.c.bf16 %v1187, %v1118
        %v1240 = vpack.c.bf16 %v1190, %v1121
        %v1241 = vpack.c.bf16 %v1192, %v1123
        %v1242 = vpack.c.bf16 %v1195, %v1126
        %v1243 = vpack.c.bf16 %v1197, %v1128
        %v1244 = vpack.c.bf16 %v1200, %v1131
        %v1245 = vpack.c.bf16 %v1202, %v1133
        %v1246 = vpack.c.bf16 %v1205, %v1136
        %v1247 = vpack.c.bf16 %v1207, %v1138
        %v1248 = vpack.c.bf16 %v1210, %v1141
        %v1249 = vpack.c.bf16 %v1212, %v1143
        %v1250 = vpack.c.bf16 %v1215, %v1146
        %v1251 = vpack.c.bf16 %v1217, %v1148
        %v1252 = vpack.c.bf16 %v1220, %v1151
        %v1253 = vpack.c.bf16 %v1222, %v1153
        %v1254 = vpack.c.bf16 %v1225, %v1156
        %v1255 = vpack.c.bf16 %v1227, %v1158
        %v1256 = vpack.c.bf16 %v1230, %v1161
        %v1257 = vpack.c.bf16 %v1232, %v1163
        %v1260 = vunpack.c.l.b16 %v1234
        %v1261 = vunpack.c.h.b16 %v1234
        %v1262 = vunpack.c.l.b16 %v1235
        %v1263 = vunpack.c.h.b16 %v1235
        %v1264 = vpack.c.b16 %v1262, %v1260
        %v1265 = vpack.c.b16 %v1263, %v1261
        %1268 = vxpose.binary.xlu0.c.b16.start [1/16] %v1265, %v1264, 128
        %1269 = vxpose.binary.xlu0.c.b16.cont [2/16] 0, 0, 128
        %1270 = vxpose.binary.xlu0.c.b16.cont [3/16] 0, 0, 128
        %1271 = vxpose.binary.xlu0.c.b16.cont [4/16] 0, 0, 128
        %1272 = vxpose.binary.xlu0.c.b16.cont [5/16] 0, 0, 128
        %1273 = vxpose.binary.xlu0.c.b16.cont [6/16] 0, 0, 128
        %1274 = vxpose.binary.xlu0.c.b16.cont [7/16] 0, 0, 128
        %1275 = vxpose.binary.xlu0.c.b16.end [8/16] 0, 0, 128
        %v1276 = vpop.trf.xlu0
        %v1277 = vpop.trf.xlu0
        %v1278 = vpop.trf.xlu0
        %v1279 = vpop.trf.xlu0
        %v1280 = vpop.trf.xlu0
        %v1281 = vpop.trf.xlu0
        %v1282 = vpop.trf.xlu0
        %v1283 = vpop.trf.xlu0
        %v1284 = vpop.trf.xlu0
        %v1285 = vpop.trf.xlu0
        %v1286 = vpop.trf.xlu0
        %v1287 = vpop.trf.xlu0
        %v1288 = vpop.trf.xlu0
        %v1289 = vpop.trf.xlu0
        %v1290 = vpop.trf.xlu0
        %v1291 = vpop.trf.xlu0
        %v1294 = vunpack.c.l.b16 %v1242
        %v1295 = vunpack.c.h.b16 %v1242
        %v1296 = vunpack.c.l.b16 %v1243
        %v1297 = vunpack.c.h.b16 %v1243
        %v1298 = vpack.c.b16 %v1296, %v1294
        %v1299 = vpack.c.b16 %v1297, %v1295
        %vm1302 = vcmask 130048
        %v1304 = vsel %vm1302, %v1276, 0
        %v1307 = vsel %vm1302, %v1278, 0
        %v1310 = vsel %vm1302, %v1280, 0
        %v1313 = vsel %vm1302, %v1282, 0
        %v1316 = vsel %vm1302, %v1284, 0
        %v1319 = vsel %vm1302, %v1286, 0
        %v1322 = vsel %vm1302, %v1288, 0
        %v1325 = vsel %vm1302, %v1290, 0
        %v1328 = vsel %vm1302, %v1277, 0
        %v1331 = vsel %vm1302, %v1279, 0
        %v1334 = vsel %vm1302, %v1281, 0
        %v1337 = vsel %vm1302, %v1283, 0
        %v1340 = vsel %vm1302, %v1285, 0
        %v1343 = vsel %vm1302, %v1287, 0
        %v1346 = vsel %vm1302, %v1289, 0
        %v1349 = vsel %vm1302, %v1291, 0
        %1351 = vmatpush.bf16.msra.mxu0 0
        %1352 = vmatpush.bf16.msra.mxu0 0
        %1353 = vmatpush.bf16.msra.mxu0 0
        %1354 = vmatpush.bf16.msra.mxu0 0
        %1355 = vmatpush.bf16.msra.mxu0 0
        %1356 = vmatpush.bf16.msra.mxu0 0
        %1357 = vmatpush.bf16.msra.mxu0 0
        %1358 = vmatpush.bf16.msra.mxu0 %v1298
        %1359 = vmatmul.bf16.gmra.mxu0 %v1304
        %v1360 = vpop.f32.mrf.mxu0
        %v1361 = vadd.f32 0.0, %v1360
        %v1362 = vpop.f32.mrf.mxu0
        %v1363 = vadd.f32 0.0, %v1362
        %1364 = vmatmul.bf16.gmra.mxu0 %v1307
        %v1365 = vpop.f32.mrf.mxu0
        %v1366 = vadd.f32 0.0, %v1365
        %v1367 = vpop.f32.mrf.mxu0
        %v1368 = vadd.f32 0.0, %v1367
        %1369 = vmatmul.bf16.gmra.mxu0 %v1310
        %v1370 = vpop.f32.mrf.mxu0
        %v1371 = vadd.f32 0.0, %v1370
        %v1372 = vpop.f32.mrf.mxu0
        %v1373 = vadd.f32 0.0, %v1372
        %1374 = vmatmul.bf16.gmra.mxu0 %v1313
        %v1375 = vpop.f32.mrf.mxu0
        %v1376 = vadd.f32 0.0, %v1375
        %v1377 = vpop.f32.mrf.mxu0
        %v1378 = vadd.f32 0.0, %v1377
        %1379 = vmatmul.bf16.gmra.mxu0 %v1316
        %v1380 = vpop.f32.mrf.mxu0
        %v1381 = vadd.f32 0.0, %v1380
        %v1382 = vpop.f32.mrf.mxu0
        %v1383 = vadd.f32 0.0, %v1382
        %1384 = vmatmul.bf16.gmra.mxu0 %v1319
        %v1385 = vpop.f32.mrf.mxu0
        %v1386 = vadd.f32 0.0, %v1385
        %v1387 = vpop.f32.mrf.mxu0
        %v1388 = vadd.f32 0.0, %v1387
        %1389 = vmatmul.bf16.gmra.mxu0 %v1322
        %v1390 = vpop.f32.mrf.mxu0
        %v1391 = vadd.f32 0.0, %v1390
        %v1392 = vpop.f32.mrf.mxu0
        %v1393 = vadd.f32 0.0, %v1392
        %1394 = vmatmul.bf16.gmra.mxu0 %v1325
        %v1395 = vpop.f32.mrf.mxu0
        %v1396 = vadd.f32 0.0, %v1395
        %v1397 = vpop.f32.mrf.mxu0
        %v1398 = vadd.f32 0.0, %v1397
        %1399 = vmatmul.bf16.gmra.mxu0 %v1328
        %v1400 = vpop.f32.mrf.mxu0
        %v1401 = vadd.f32 0.0, %v1400
        %v1402 = vpop.f32.mrf.mxu0
        %v1403 = vadd.f32 0.0, %v1402
        %1404 = vmatmul.bf16.gmra.mxu0 %v1331
        %v1405 = vpop.f32.mrf.mxu0
        %v1406 = vadd.f32 0.0, %v1405
        %v1407 = vpop.f32.mrf.mxu0
        %v1408 = vadd.f32 0.0, %v1407
        %1409 = vmatmul.bf16.gmra.mxu0 %v1334
        %v1410 = vpop.f32.mrf.mxu0
        %v1411 = vadd.f32 0.0, %v1410
        %v1412 = vpop.f32.mrf.mxu0
        %v1413 = vadd.f32 0.0, %v1412
        %1414 = vmatmul.bf16.gmra.mxu0 %v1337
        %v1415 = vpop.f32.mrf.mxu0
        %v1416 = vadd.f32 0.0, %v1415
        %v1417 = vpop.f32.mrf.mxu0
        %v1418 = vadd.f32 0.0, %v1417
        %1419 = vmatmul.bf16.gmra.mxu0 %v1340
        %v1420 = vpop.f32.mrf.mxu0
        %v1421 = vadd.f32 0.0, %v1420
        %v1422 = vpop.f32.mrf.mxu0
        %v1423 = vadd.f32 0.0, %v1422
        %1424 = vmatmul.bf16.gmra.mxu0 %v1343
        %v1425 = vpop.f32.mrf.mxu0
        %v1426 = vadd.f32 0.0, %v1425
        %v1427 = vpop.f32.mrf.mxu0
        %v1428 = vadd.f32 0.0, %v1427
        %1429 = vmatmul.bf16.gmra.mxu0 %v1346
        %v1430 = vpop.f32.mrf.mxu0
        %v1431 = vadd.f32 0.0, %v1430
        %v1432 = vpop.f32.mrf.mxu0
        %v1433 = vadd.f32 0.0, %v1432
        %1434 = vmatmul.bf16.gmra.mxu0 %v1349
        %v1435 = vpop.f32.mrf.mxu0
        %v1436 = vadd.f32 0.0, %v1435
        %v1437 = vpop.f32.mrf.mxu0
        %v1438 = vadd.f32 0.0, %v1437
        %1439 = vdwg.mxu0
        %1440 = vmatpush.bf16.msra.mxu0 0
        %1441 = vmatpush.bf16.msra.mxu0 0
        %1442 = vmatpush.bf16.msra.mxu0 0
        %1443 = vmatpush.bf16.msra.mxu0 0
        %1444 = vmatpush.bf16.msra.mxu0 0
        %1445 = vmatpush.bf16.msra.mxu0 0
        %1446 = vmatpush.bf16.msra.mxu0 0
        %1447 = vmatpush.bf16.msra.mxu0 %v1299
        %1448 = vmatmul.bf16.gmra.mxu0 %v1304
        %v1449 = vpop.f32.mrf.mxu0
        %v1450 = vadd.f32 0.0, %v1449
        %v1451 = vpop.f32.mrf.mxu0
        %v1452 = vadd.f32 0.0, %v1451
        %1453 = vmatmul.bf16.gmra.mxu0 %v1307
        %v1454 = vpop.f32.mrf.mxu0
        %v1455 = vadd.f32 0.0, %v1454
        %v1456 = vpop.f32.mrf.mxu0
        %v1457 = vadd.f32 0.0, %v1456
        %1458 = vmatmul.bf16.gmra.mxu0 %v1310
        %v1459 = vpop.f32.mrf.mxu0
        %v1460 = vadd.f32 0.0, %v1459
        %v1461 = vpop.f32.mrf.mxu0
        %v1462 = vadd.f32 0.0, %v1461
        %1463 = vmatmul.bf16.gmra.mxu0 %v1313
        %v1464 = vpop.f32.mrf.mxu0
        %v1465 = vadd.f32 0.0, %v1464
        %v1466 = vpop.f32.mrf.mxu0
        %v1467 = vadd.f32 0.0, %v1466
        %1468 = vmatmul.bf16.gmra.mxu0 %v1316
        %v1469 = vpop.f32.mrf.mxu0
        %v1470 = vadd.f32 0.0, %v1469
        %v1471 = vpop.f32.mrf.mxu0
        %v1472 = vadd.f32 0.0, %v1471
        %1473 = vmatmul.bf16.gmra.mxu0 %v1319
        %v1474 = vpop.f32.mrf.mxu0
        %v1475 = vadd.f32 0.0, %v1474
        %v1476 = vpop.f32.mrf.mxu0
        %v1477 = vadd.f32 0.0, %v1476
        %1478 = vmatmul.bf16.gmra.mxu0 %v1322
        %v1479 = vpop.f32.mrf.mxu0
        %v1480 = vadd.f32 0.0, %v1479
        %v1481 = vpop.f32.mrf.mxu0
        %v1482 = vadd.f32 0.0, %v1481
        %1483 = vmatmul.bf16.gmra.mxu0 %v1325
        %v1484 = vpop.f32.mrf.mxu0
        %v1485 = vadd.f32 0.0, %v1484
        %v1486 = vpop.f32.mrf.mxu0
        %v1487 = vadd.f32 0.0, %v1486
        %1488 = vmatmul.bf16.gmra.mxu0 %v1328
        %v1489 = vpop.f32.mrf.mxu0
        %v1490 = vadd.f32 0.0, %v1489
        %v1491 = vpop.f32.mrf.mxu0
        %v1492 = vadd.f32 0.0, %v1491
        %1493 = vmatmul.bf16.gmra.mxu0 %v1331
        %v1494 = vpop.f32.mrf.mxu0
        %v1495 = vadd.f32 0.0, %v1494
        %v1496 = vpop.f32.mrf.mxu0
        %v1497 = vadd.f32 0.0, %v1496
        %1498 = vmatmul.bf16.gmra.mxu0 %v1334
        %v1499 = vpop.f32.mrf.mxu0
        %v1500 = vadd.f32 0.0, %v1499
        %v1501 = vpop.f32.mrf.mxu0
        %v1502 = vadd.f32 0.0, %v1501
        %1503 = vmatmul.bf16.gmra.mxu0 %v1337
        %v1504 = vpop.f32.mrf.mxu0
        %v1505 = vadd.f32 0.0, %v1504
        %v1506 = vpop.f32.mrf.mxu0
        %v1507 = vadd.f32 0.0, %v1506
        %1508 = vmatmul.bf16.gmra.mxu0 %v1340
        %v1509 = vpop.f32.mrf.mxu0
        %v1510 = vadd.f32 0.0, %v1509
        %v1511 = vpop.f32.mrf.mxu0
        %v1512 = vadd.f32 0.0, %v1511
        %1513 = vmatmul.bf16.gmra.mxu0 %v1343
        %v1514 = vpop.f32.mrf.mxu0
        %v1515 = vadd.f32 0.0, %v1514
        %v1516 = vpop.f32.mrf.mxu0
        %v1517 = vadd.f32 0.0, %v1516
        %1518 = vmatmul.bf16.gmra.mxu0 %v1346
        %v1519 = vpop.f32.mrf.mxu0
        %v1520 = vadd.f32 0.0, %v1519
        %v1521 = vpop.f32.mrf.mxu0
        %v1522 = vadd.f32 0.0, %v1521
        %1523 = vmatmul.bf16.gmra.mxu0 %v1349
        %v1524 = vpop.f32.mrf.mxu0
        %v1525 = vadd.f32 0.0, %v1524
        %v1526 = vpop.f32.mrf.mxu0
        %v1527 = vadd.f32 0.0, %v1526
        %1528 = vdwg.mxu0
        %v1531 = vunpack.c.l.b16 %v1236
        %v1532 = vunpack.c.h.b16 %v1236
        %v1533 = vunpack.c.l.b16 %v1237
        %v1534 = vunpack.c.h.b16 %v1237
        %v1535 = vpack.c.b16 %v1533, %v1531
        %v1536 = vpack.c.b16 %v1534, %v1532
        %1539 = vxpose.binary.xlu0.c.b16.start [1/16] %v1536, %v1535, 128
        %1540 = vxpose.binary.xlu0.c.b16.cont [2/16] 0, 0, 128
        %1541 = vxpose.binary.xlu0.c.b16.cont [3/16] 0, 0, 128
        %1542 = vxpose.binary.xlu0.c.b16.cont [4/16] 0, 0, 128
        %1543 = vxpose.binary.xlu0.c.b16.cont [5/16] 0, 0, 128
        %1544 = vxpose.binary.xlu0.c.b16.cont [6/16] 0, 0, 128
        %1545 = vxpose.binary.xlu0.c.b16.cont [7/16] 0, 0, 128
        %1546 = vxpose.binary.xlu0.c.b16.end [8/16] 0, 0, 128
        %v1547 = vpop.trf.xlu0
        %v1548 = vpop.trf.xlu0
        %v1549 = vpop.trf.xlu0
        %v1550 = vpop.trf.xlu0
        %v1551 = vpop.trf.xlu0
        %v1552 = vpop.trf.xlu0
        %v1553 = vpop.trf.xlu0
        %v1554 = vpop.trf.xlu0
        %v1555 = vpop.trf.xlu0
        %v1556 = vpop.trf.xlu0
        %v1557 = vpop.trf.xlu0
        %v1558 = vpop.trf.xlu0
        %v1559 = vpop.trf.xlu0
        %v1560 = vpop.trf.xlu0
        %v1561 = vpop.trf.xlu0
        %v1562 = vpop.trf.xlu0
        %v1565 = vunpack.c.l.b16 %v1244
        %v1566 = vunpack.c.h.b16 %v1244
        %v1567 = vunpack.c.l.b16 %v1245
        %v1568 = vunpack.c.h.b16 %v1245
        %v1569 = vpack.c.b16 %v1567, %v1565
        %v1570 = vpack.c.b16 %v1568, %v1566
        %v1574 = vsel %vm1302, %v1547, 0
        %v1577 = vsel %vm1302, %v1549, 0
        %v1580 = vsel %vm1302, %v1551, 0
        %v1583 = vsel %vm1302, %v1553, 0
        %v1586 = vsel %vm1302, %v1555, 0
        %v1589 = vsel %vm1302, %v1557, 0
        %v1592 = vsel %vm1302, %v1559, 0
        %v1595 = vsel %vm1302, %v1561, 0
        %v1598 = vsel %vm1302, %v1548, 0
        %v1601 = vsel %vm1302, %v1550, 0
        %v1604 = vsel %vm1302, %v1552, 0
        %v1607 = vsel %vm1302, %v1554, 0
        %v1610 = vsel %vm1302, %v1556, 0
        %v1613 = vsel %vm1302, %v1558, 0
        %v1616 = vsel %vm1302, %v1560, 0
        %v1619 = vsel %vm1302, %v1562, 0
        %1621 = vmatpush.bf16.msra.mxu0 0
        %1622 = vmatpush.bf16.msra.mxu0 0
        %1623 = vmatpush.bf16.msra.mxu0 0
        %1624 = vmatpush.bf16.msra.mxu0 0
        %1625 = vmatpush.bf16.msra.mxu0 0
        %1626 = vmatpush.bf16.msra.mxu0 0
        %1627 = vmatpush.bf16.msra.mxu0 0
        %1628 = vmatpush.bf16.msra.mxu0 %v1569
        %1629 = vmatmul.bf16.gmra.mxu0 %v1574
        %v1630 = vpop.f32.mrf.mxu0
        %v1631 = vadd.f32 0.0, %v1630
        %v1632 = vpop.f32.mrf.mxu0
        %v1633 = vadd.f32 0.0, %v1632
        %1634 = vmatmul.bf16.gmra.mxu0 %v1577
        %v1635 = vpop.f32.mrf.mxu0
        %v1636 = vadd.f32 0.0, %v1635
        %v1637 = vpop.f32.mrf.mxu0
        %v1638 = vadd.f32 0.0, %v1637
        %1639 = vmatmul.bf16.gmra.mxu0 %v1580
        %v1640 = vpop.f32.mrf.mxu0
        %v1641 = vadd.f32 0.0, %v1640
        %v1642 = vpop.f32.mrf.mxu0
        %v1643 = vadd.f32 0.0, %v1642
        %1644 = vmatmul.bf16.gmra.mxu0 %v1583
        %v1645 = vpop.f32.mrf.mxu0
        %v1646 = vadd.f32 0.0, %v1645
        %v1647 = vpop.f32.mrf.mxu0
        %v1648 = vadd.f32 0.0, %v1647
        %1649 = vmatmul.bf16.gmra.mxu0 %v1586
        %v1650 = vpop.f32.mrf.mxu0
        %v1651 = vadd.f32 0.0, %v1650
        %v1652 = vpop.f32.mrf.mxu0
        %v1653 = vadd.f32 0.0, %v1652
        %1654 = vmatmul.bf16.gmra.mxu0 %v1589
        %v1655 = vpop.f32.mrf.mxu0
        %v1656 = vadd.f32 0.0, %v1655
        %v1657 = vpop.f32.mrf.mxu0
        %v1658 = vadd.f32 0.0, %v1657
        %1659 = vmatmul.bf16.gmra.mxu0 %v1592
        %v1660 = vpop.f32.mrf.mxu0
        %v1661 = vadd.f32 0.0, %v1660
        %v1662 = vpop.f32.mrf.mxu0
        %v1663 = vadd.f32 0.0, %v1662
        %1664 = vmatmul.bf16.gmra.mxu0 %v1595
        %v1665 = vpop.f32.mrf.mxu0
        %v1666 = vadd.f32 0.0, %v1665
        %v1667 = vpop.f32.mrf.mxu0
        %v1668 = vadd.f32 0.0, %v1667
        %1669 = vmatmul.bf16.gmra.mxu0 %v1598
        %v1670 = vpop.f32.mrf.mxu0
        %v1671 = vadd.f32 0.0, %v1670
        %v1672 = vpop.f32.mrf.mxu0
        %v1673 = vadd.f32 0.0, %v1672
        %1674 = vmatmul.bf16.gmra.mxu0 %v1601
        %v1675 = vpop.f32.mrf.mxu0
        %v1676 = vadd.f32 0.0, %v1675
        %v1677 = vpop.f32.mrf.mxu0
        %v1678 = vadd.f32 0.0, %v1677
        %1679 = vmatmul.bf16.gmra.mxu0 %v1604
        %v1680 = vpop.f32.mrf.mxu0
        %v1681 = vadd.f32 0.0, %v1680
        %v1682 = vpop.f32.mrf.mxu0
        %v1683 = vadd.f32 0.0, %v1682
        %1684 = vmatmul.bf16.gmra.mxu0 %v1607
        %v1685 = vpop.f32.mrf.mxu0
        %v1686 = vadd.f32 0.0, %v1685
        %v1687 = vpop.f32.mrf.mxu0
        %v1688 = vadd.f32 0.0, %v1687
        %1689 = vmatmul.bf16.gmra.mxu0 %v1610
        %v1690 = vpop.f32.mrf.mxu0
        %v1691 = vadd.f32 0.0, %v1690
        %v1692 = vpop.f32.mrf.mxu0
        %v1693 = vadd.f32 0.0, %v1692
        %1694 = vmatmul.bf16.gmra.mxu0 %v1613
        %v1695 = vpop.f32.mrf.mxu0
        %v1696 = vadd.f32 0.0, %v1695
        %v1697 = vpop.f32.mrf.mxu0
        %v1698 = vadd.f32 0.0, %v1697
        %1699 = vmatmul.bf16.gmra.mxu0 %v1616
        %v1700 = vpop.f32.mrf.mxu0
        %v1701 = vadd.f32 0.0, %v1700
        %v1702 = vpop.f32.mrf.mxu0
        %v1703 = vadd.f32 0.0, %v1702
        %1704 = vmatmul.bf16.gmra.mxu0 %v1619
        %v1705 = vpop.f32.mrf.mxu0
        %v1706 = vadd.f32 0.0, %v1705
        %v1707 = vpop.f32.mrf.mxu0
        %v1708 = vadd.f32 0.0, %v1707
        %1709 = vdwg.mxu0
        %1710 = vmatpush.bf16.msra.mxu0 0
        %1711 = vmatpush.bf16.msra.mxu0 0
        %1712 = vmatpush.bf16.msra.mxu0 0
        %1713 = vmatpush.bf16.msra.mxu0 0
        %1714 = vmatpush.bf16.msra.mxu0 0
        %1715 = vmatpush.bf16.msra.mxu0 0
        %1716 = vmatpush.bf16.msra.mxu0 0
        %1717 = vmatpush.bf16.msra.mxu0 %v1570
        %1718 = vmatmul.bf16.gmra.mxu0 %v1574
        %v1719 = vpop.f32.mrf.mxu0
        %v1720 = vadd.f32 0.0, %v1719
        %v1721 = vpop.f32.mrf.mxu0
        %v1722 = vadd.f32 0.0, %v1721
        %1723 = vmatmul.bf16.gmra.mxu0 %v1577
        %v1724 = vpop.f32.mrf.mxu0
        %v1725 = vadd.f32 0.0, %v1724
        %v1726 = vpop.f32.mrf.mxu0
        %v1727 = vadd.f32 0.0, %v1726
        %1728 = vmatmul.bf16.gmra.mxu0 %v1580
        %v1729 = vpop.f32.mrf.mxu0
        %v1730 = vadd.f32 0.0, %v1729
        %v1731 = vpop.f32.mrf.mxu0
        %v1732 = vadd.f32 0.0, %v1731
        %1733 = vmatmul.bf16.gmra.mxu0 %v1583
        %v1734 = vpop.f32.mrf.mxu0
        %v1735 = vadd.f32 0.0, %v1734
        %v1736 = vpop.f32.mrf.mxu0
        %v1737 = vadd.f32 0.0, %v1736
        %1738 = vmatmul.bf16.gmra.mxu0 %v1586
        %v1739 = vpop.f32.mrf.mxu0
        %v1740 = vadd.f32 0.0, %v1739
        %v1741 = vpop.f32.mrf.mxu0
        %v1742 = vadd.f32 0.0, %v1741
        %1743 = vmatmul.bf16.gmra.mxu0 %v1589
        %v1744 = vpop.f32.mrf.mxu0
        %v1745 = vadd.f32 0.0, %v1744
        %v1746 = vpop.f32.mrf.mxu0
        %v1747 = vadd.f32 0.0, %v1746
        %1748 = vmatmul.bf16.gmra.mxu0 %v1592
        %v1749 = vpop.f32.mrf.mxu0
        %v1750 = vadd.f32 0.0, %v1749
        %v1751 = vpop.f32.mrf.mxu0
        %v1752 = vadd.f32 0.0, %v1751
        %1753 = vmatmul.bf16.gmra.mxu0 %v1595
        %v1754 = vpop.f32.mrf.mxu0
        %v1755 = vadd.f32 0.0, %v1754
        %v1756 = vpop.f32.mrf.mxu0
        %v1757 = vadd.f32 0.0, %v1756
        %1758 = vmatmul.bf16.gmra.mxu0 %v1598
        %v1759 = vpop.f32.mrf.mxu0
        %v1760 = vadd.f32 0.0, %v1759
        %v1761 = vpop.f32.mrf.mxu0
        %v1762 = vadd.f32 0.0, %v1761
        %1763 = vmatmul.bf16.gmra.mxu0 %v1601
        %v1764 = vpop.f32.mrf.mxu0
        %v1765 = vadd.f32 0.0, %v1764
        %v1766 = vpop.f32.mrf.mxu0
        %v1767 = vadd.f32 0.0, %v1766
        %1768 = vmatmul.bf16.gmra.mxu0 %v1604
        %v1769 = vpop.f32.mrf.mxu0
        %v1770 = vadd.f32 0.0, %v1769
        %v1771 = vpop.f32.mrf.mxu0
        %v1772 = vadd.f32 0.0, %v1771
        %1773 = vmatmul.bf16.gmra.mxu0 %v1607
        %v1774 = vpop.f32.mrf.mxu0
        %v1775 = vadd.f32 0.0, %v1774
        %v1776 = vpop.f32.mrf.mxu0
        %v1777 = vadd.f32 0.0, %v1776
        %1778 = vmatmul.bf16.gmra.mxu0 %v1610
        %v1779 = vpop.f32.mrf.mxu0
        %v1780 = vadd.f32 0.0, %v1779
        %v1781 = vpop.f32.mrf.mxu0
        %v1782 = vadd.f32 0.0, %v1781
        %1783 = vmatmul.bf16.gmra.mxu0 %v1613
        %v1784 = vpop.f32.mrf.mxu0
        %v1785 = vadd.f32 0.0, %v1784
        %v1786 = vpop.f32.mrf.mxu0
        %v1787 = vadd.f32 0.0, %v1786
        %1788 = vmatmul.bf16.gmra.mxu0 %v1616
        %v1789 = vpop.f32.mrf.mxu0
        %v1790 = vadd.f32 0.0, %v1789
        %v1791 = vpop.f32.mrf.mxu0
        %v1792 = vadd.f32 0.0, %v1791
        %1793 = vmatmul.bf16.gmra.mxu0 %v1619
        %v1794 = vpop.f32.mrf.mxu0
        %v1795 = vadd.f32 0.0, %v1794
        %v1796 = vpop.f32.mrf.mxu0
        %v1797 = vadd.f32 0.0, %v1796
        %1798 = vdwg.mxu0
        %v1801 = vunpack.c.l.b16 %v1238
        %v1802 = vunpack.c.h.b16 %v1238
        %v1803 = vunpack.c.l.b16 %v1239
        %v1804 = vunpack.c.h.b16 %v1239
        %v1805 = vpack.c.b16 %v1803, %v1801
        %v1806 = vpack.c.b16 %v1804, %v1802
        %1809 = vxpose.binary.xlu0.c.b16.start [1/16] %v1806, %v1805, 128
        %1810 = vxpose.binary.xlu0.c.b16.cont [2/16] 0, 0, 128
        %1811 = vxpose.binary.xlu0.c.b16.cont [3/16] 0, 0, 128
        %1812 = vxpose.binary.xlu0.c.b16.cont [4/16] 0, 0, 128
        %1813 = vxpose.binary.xlu0.c.b16.cont [5/16] 0, 0, 128
        %1814 = vxpose.binary.xlu0.c.b16.cont [6/16] 0, 0, 128
        %1815 = vxpose.binary.xlu0.c.b16.cont [7/16] 0, 0, 128
        %1816 = vxpose.binary.xlu0.c.b16.end [8/16] 0, 0, 128
        %v1817 = vpop.trf.xlu0
        %v1818 = vpop.trf.xlu0
        %v1819 = vpop.trf.xlu0
        %v1820 = vpop.trf.xlu0
        %v1821 = vpop.trf.xlu0
        %v1822 = vpop.trf.xlu0
        %v1823 = vpop.trf.xlu0
        %v1824 = vpop.trf.xlu0
        %v1825 = vpop.trf.xlu0
        %v1826 = vpop.trf.xlu0
        %v1827 = vpop.trf.xlu0
        %v1828 = vpop.trf.xlu0
        %v1829 = vpop.trf.xlu0
        %v1830 = vpop.trf.xlu0
        %v1831 = vpop.trf.xlu0
        %v1832 = vpop.trf.xlu0
        %v1835 = vunpack.c.l.b16 %v1246
        %v1836 = vunpack.c.h.b16 %v1246
        %v1837 = vunpack.c.l.b16 %v1247
        %v1838 = vunpack.c.h.b16 %v1247
        %v1839 = vpack.c.b16 %v1837, %v1835
        %v1840 = vpack.c.b16 %v1838, %v1836
        %v1844 = vsel %vm1302, %v1817, 0
        %v1847 = vsel %vm1302, %v1819, 0
        %v1850 = vsel %vm1302, %v1821, 0
        %v1853 = vsel %vm1302, %v1823, 0
        %v1856 = vsel %vm1302, %v1825, 0
        %v1859 = vsel %vm1302, %v1827, 0
        %v1862 = vsel %vm1302, %v1829, 0
        %v1865 = vsel %vm1302, %v1831, 0
        %v1868 = vsel %vm1302, %v1818, 0
        %v1871 = vsel %vm1302, %v1820, 0
        %v1874 = vsel %vm1302, %v1822, 0
        %v1877 = vsel %vm1302, %v1824, 0
        %v1880 = vsel %vm1302, %v1826, 0
        %v1883 = vsel %vm1302, %v1828, 0
        %v1886 = vsel %vm1302, %v1830, 0
        %v1889 = vsel %vm1302, %v1832, 0
        %1891 = vmatpush.bf16.msra.mxu0 0
        %1892 = vmatpush.bf16.msra.mxu0 0
        %1893 = vmatpush.bf16.msra.mxu0 0
        %1894 = vmatpush.bf16.msra.mxu0 0
        %1895 = vmatpush.bf16.msra.mxu0 0
        %1896 = vmatpush.bf16.msra.mxu0 0
        %1897 = vmatpush.bf16.msra.mxu0 0
        %1898 = vmatpush.bf16.msra.mxu0 %v1839
        %1899 = vmatmul.bf16.gmra.mxu0 %v1844
        %v1900 = vpop.f32.mrf.mxu0
        %v1901 = vadd.f32 0.0, %v1900
        %v1902 = vpop.f32.mrf.mxu0
        %v1903 = vadd.f32 0.0, %v1902
        %1904 = vmatmul.bf16.gmra.mxu0 %v1847
        %v1905 = vpop.f32.mrf.mxu0
        %v1906 = vadd.f32 0.0, %v1905
        %v1907 = vpop.f32.mrf.mxu0
        %v1908 = vadd.f32 0.0, %v1907
        %1909 = vmatmul.bf16.gmra.mxu0 %v1850
        %v1910 = vpop.f32.mrf.mxu0
        %v1911 = vadd.f32 0.0, %v1910
        %v1912 = vpop.f32.mrf.mxu0
        %v1913 = vadd.f32 0.0, %v1912
        %1914 = vmatmul.bf16.gmra.mxu0 %v1853
        %v1915 = vpop.f32.mrf.mxu0
        %v1916 = vadd.f32 0.0, %v1915
        %v1917 = vpop.f32.mrf.mxu0
        %v1918 = vadd.f32 0.0, %v1917
        %1919 = vmatmul.bf16.gmra.mxu0 %v1856
        %v1920 = vpop.f32.mrf.mxu0
        %v1921 = vadd.f32 0.0, %v1920
        %v1922 = vpop.f32.mrf.mxu0
        %v1923 = vadd.f32 0.0, %v1922
        %1924 = vmatmul.bf16.gmra.mxu0 %v1859
        %v1925 = vpop.f32.mrf.mxu0
        %v1926 = vadd.f32 0.0, %v1925
        %v1927 = vpop.f32.mrf.mxu0
        %v1928 = vadd.f32 0.0, %v1927
        %1929 = vmatmul.bf16.gmra.mxu0 %v1862
        %v1930 = vpop.f32.mrf.mxu0
        %v1931 = vadd.f32 0.0, %v1930
        %v1932 = vpop.f32.mrf.mxu0
        %v1933 = vadd.f32 0.0, %v1932
        %1934 = vmatmul.bf16.gmra.mxu0 %v1865
        %v1935 = vpop.f32.mrf.mxu0
        %v1936 = vadd.f32 0.0, %v1935
        %v1937 = vpop.f32.mrf.mxu0
        %v1938 = vadd.f32 0.0, %v1937
        %1939 = vmatmul.bf16.gmra.mxu0 %v1868
        %v1940 = vpop.f32.mrf.mxu0
        %v1941 = vadd.f32 0.0, %v1940
        %v1942 = vpop.f32.mrf.mxu0
        %v1943 = vadd.f32 0.0, %v1942
        %1944 = vmatmul.bf16.gmra.mxu0 %v1871
        %v1945 = vpop.f32.mrf.mxu0
        %v1946 = vadd.f32 0.0, %v1945
        %v1947 = vpop.f32.mrf.mxu0
        %v1948 = vadd.f32 0.0, %v1947
        %1949 = vmatmul.bf16.gmra.mxu0 %v1874
        %v1950 = vpop.f32.mrf.mxu0
        %v1951 = vadd.f32 0.0, %v1950
        %v1952 = vpop.f32.mrf.mxu0
        %v1953 = vadd.f32 0.0, %v1952
        %1954 = vmatmul.bf16.gmra.mxu0 %v1877
        %v1955 = vpop.f32.mrf.mxu0
        %v1956 = vadd.f32 0.0, %v1955
        %v1957 = vpop.f32.mrf.mxu0
        %v1958 = vadd.f32 0.0, %v1957
        %1959 = vmatmul.bf16.gmra.mxu0 %v1880
        %v1960 = vpop.f32.mrf.mxu0
        %v1961 = vadd.f32 0.0, %v1960
        %v1962 = vpop.f32.mrf.mxu0
        %v1963 = vadd.f32 0.0, %v1962
        %1964 = vmatmul.bf16.gmra.mxu0 %v1883
        %v1965 = vpop.f32.mrf.mxu0
        %v1966 = vadd.f32 0.0, %v1965
        %v1967 = vpop.f32.mrf.mxu0
        %v1968 = vadd.f32 0.0, %v1967
        %1969 = vmatmul.bf16.gmra.mxu0 %v1886
        %v1970 = vpop.f32.mrf.mxu0
        %v1971 = vadd.f32 0.0, %v1970
        %v1972 = vpop.f32.mrf.mxu0
        %v1973 = vadd.f32 0.0, %v1972
        %1974 = vmatmul.bf16.gmra.mxu0 %v1889
        %v1975 = vpop.f32.mrf.mxu0
        %v1976 = vadd.f32 0.0, %v1975
        %v1977 = vpop.f32.mrf.mxu0
        %v1978 = vadd.f32 0.0, %v1977
        %1979 = vdwg.mxu0
        %1980 = vmatpush.bf16.msra.mxu0 0
        %1981 = vmatpush.bf16.msra.mxu0 0
        %1982 = vmatpush.bf16.msra.mxu0 0
        %1983 = vmatpush.bf16.msra.mxu0 0
        %1984 = vmatpush.bf16.msra.mxu0 0
        %1985 = vmatpush.bf16.msra.mxu0 0
        %1986 = vmatpush.bf16.msra.mxu0 0
        %1987 = vmatpush.bf16.msra.mxu0 %v1840
        %1988 = vmatmul.bf16.gmra.mxu0 %v1844
        %v1989 = vpop.f32.mrf.mxu0
        %v1990 = vadd.f32 0.0, %v1989
        %v1991 = vpop.f32.mrf.mxu0
        %v1992 = vadd.f32 0.0, %v1991
        %1993 = vmatmul.bf16.gmra.mxu0 %v1847
        %v1994 = vpop.f32.mrf.mxu0
        %v1995 = vadd.f32 0.0, %v1994
        %v1996 = vpop.f32.mrf.mxu0
        %v1997 = vadd.f32 0.0, %v1996
        %1998 = vmatmul.bf16.gmra.mxu0 %v1850
        %v1999 = vpop.f32.mrf.mxu0
        %v2000 = vadd.f32 0.0, %v1999
        %v2001 = vpop.f32.mrf.mxu0
        %v2002 = vadd.f32 0.0, %v2001
        %2003 = vmatmul.bf16.gmra.mxu0 %v1853
        %v2004 = vpop.f32.mrf.mxu0
        %v2005 = vadd.f32 0.0, %v2004
        %v2006 = vpop.f32.mrf.mxu0
        %v2007 = vadd.f32 0.0, %v2006
        %2008 = vmatmul.bf16.gmra.mxu0 %v1856
        %v2009 = vpop.f32.mrf.mxu0
        %v2010 = vadd.f32 0.0, %v2009
        %v2011 = vpop.f32.mrf.mxu0
        %v2012 = vadd.f32 0.0, %v2011
        %2013 = vmatmul.bf16.gmra.mxu0 %v1859
        %v2014 = vpop.f32.mrf.mxu0
        %v2015 = vadd.f32 0.0, %v2014
        %v2016 = vpop.f32.mrf.mxu0
        %v2017 = vadd.f32 0.0, %v2016
        %2018 = vmatmul.bf16.gmra.mxu0 %v1862
        %v2019 = vpop.f32.mrf.mxu0
        %v2020 = vadd.f32 0.0, %v2019
        %v2021 = vpop.f32.mrf.mxu0
        %v2022 = vadd.f32 0.0, %v2021
        %2023 = vmatmul.bf16.gmra.mxu0 %v1865
        %v2024 = vpop.f32.mrf.mxu0
        %v2025 = vadd.f32 0.0, %v2024
        %v2026 = vpop.f32.mrf.mxu0
        %v2027 = vadd.f32 0.0, %v2026
        %2028 = vmatmul.bf16.gmra.mxu0 %v1868
        %v2029 = vpop.f32.mrf.mxu0
        %v2030 = vadd.f32 0.0, %v2029
        %v2031 = vpop.f32.mrf.mxu0
        %v2032 = vadd.f32 0.0, %v2031
        %2033 = vmatmul.bf16.gmra.mxu0 %v1871
        %v2034 = vpop.f32.mrf.mxu0
        %v2035 = vadd.f32 0.0, %v2034
        %v2036 = vpop.f32.mrf.mxu0
        %v2037 = vadd.f32 0.0, %v2036
        %2038 = vmatmul.bf16.gmra.mxu0 %v1874
        %v2039 = vpop.f32.mrf.mxu0
        %v2040 = vadd.f32 0.0, %v2039
        %v2041 = vpop.f32.mrf.mxu0
        %v2042 = vadd.f32 0.0, %v2041
        %2043 = vmatmul.bf16.gmra.mxu0 %v1877
        %v2044 = vpop.f32.mrf.mxu0
        %v2045 = vadd.f32 0.0, %v2044
        %v2046 = vpop.f32.mrf.mxu0
        %v2047 = vadd.f32 0.0, %v2046
        %2048 = vmatmul.bf16.gmra.mxu0 %v1880
        %v2049 = vpop.f32.mrf.mxu0
        %v2050 = vadd.f32 0.0, %v2049
        %v2051 = vpop.f32.mrf.mxu0
        %v2052 = vadd.f32 0.0, %v2051
        %2053 = vmatmul.bf16.gmra.mxu0 %v1883
        %v2054 = vpop.f32.mrf.mxu0
        %v2055 = vadd.f32 0.0, %v2054
        %v2056 = vpop.f32.mrf.mxu0
        %v2057 = vadd.f32 0.0, %v2056
        %2058 = vmatmul.bf16.gmra.mxu0 %v1886
        %v2059 = vpop.f32.mrf.mxu0
        %v2060 = vadd.f32 0.0, %v2059
        %v2061 = vpop.f32.mrf.mxu0
        %v2062 = vadd.f32 0.0, %v2061
        %2063 = vmatmul.bf16.gmra.mxu0 %v1889
        %v2064 = vpop.f32.mrf.mxu0
        %v2065 = vadd.f32 0.0, %v2064
        %v2066 = vpop.f32.mrf.mxu0
        %v2067 = vadd.f32 0.0, %v2066
        %2068 = vdwg.mxu0
        %v2071 = vunpack.c.l.b16 %v1240
        %v2072 = vunpack.c.h.b16 %v1240
        %v2073 = vunpack.c.l.b16 %v1241
        %v2074 = vunpack.c.h.b16 %v1241
        %v2075 = vpack.c.b16 %v2073, %v2071
        %v2076 = vpack.c.b16 %v2074, %v2072
        %2079 = vxpose.binary.xlu0.c.b16.start [1/16] %v2076, %v2075, 128
        %2080 = vxpose.binary.xlu0.c.b16.cont [2/16] 0, 0, 128
        %2081 = vxpose.binary.xlu0.c.b16.cont [3/16] 0, 0, 128
        %2082 = vxpose.binary.xlu0.c.b16.cont [4/16] 0, 0, 128
        %2083 = vxpose.binary.xlu0.c.b16.cont [5/16] 0, 0, 128
        %2084 = vxpose.binary.xlu0.c.b16.cont [6/16] 0, 0, 128
        %2085 = vxpose.binary.xlu0.c.b16.cont [7/16] 0, 0, 128
        %2086 = vxpose.binary.xlu0.c.b16.end [8/16] 0, 0, 128
        %v2087 = vpop.trf.xlu0
        %v2088 = vpop.trf.xlu0
        %v2089 = vpop.trf.xlu0
        %v2090 = vpop.trf.xlu0
        %v2091 = vpop.trf.xlu0
        %v2092 = vpop.trf.xlu0
        %v2093 = vpop.trf.xlu0
        %v2094 = vpop.trf.xlu0
        %v2095 = vpop.trf.xlu0
        %v2096 = vpop.trf.xlu0
        %v2097 = vpop.trf.xlu0
        %v2098 = vpop.trf.xlu0
        %v2099 = vpop.trf.xlu0
        %v2100 = vpop.trf.xlu0
        %v2101 = vpop.trf.xlu0
        %v2102 = vpop.trf.xlu0
        %v2105 = vunpack.c.l.b16 %v1248
        %v2106 = vunpack.c.h.b16 %v1248
        %v2107 = vunpack.c.l.b16 %v1249
        %v2108 = vunpack.c.h.b16 %v1249
        %v2109 = vpack.c.b16 %v2107, %v2105
        %v2110 = vpack.c.b16 %v2108, %v2106
        %v2114 = vsel %vm1302, %v2087, 0
        %v2117 = vsel %vm1302, %v2089, 0
        %v2120 = vsel %vm1302, %v2091, 0
        %v2123 = vsel %vm1302, %v2093, 0
        %v2126 = vsel %vm1302, %v2095, 0
        %v2129 = vsel %vm1302, %v2097, 0
        %v2132 = vsel %vm1302, %v2099, 0
        %v2135 = vsel %vm1302, %v2101, 0
        %v2138 = vsel %vm1302, %v2088, 0
        %v2141 = vsel %vm1302, %v2090, 0
        %v2144 = vsel %vm1302, %v2092, 0
        %v2147 = vsel %vm1302, %v2094, 0
        %v2150 = vsel %vm1302, %v2096, 0
        %v2153 = vsel %vm1302, %v2098, 0
        %v2156 = vsel %vm1302, %v2100, 0
        %v2159 = vsel %vm1302, %v2102, 0
        %2161 = vmatpush.bf16.msra.mxu0 0
        %2162 = vmatpush.bf16.msra.mxu0 0
        %2163 = vmatpush.bf16.msra.mxu0 0
        %2164 = vmatpush.bf16.msra.mxu0 0
        %2165 = vmatpush.bf16.msra.mxu0 0
        %2166 = vmatpush.bf16.msra.mxu0 0
        %2167 = vmatpush.bf16.msra.mxu0 0
        %2168 = vmatpush.bf16.msra.mxu0 %v2109
        %2169 = vmatmul.bf16.gmra.mxu0 %v2114
        %v2170 = vpop.f32.mrf.mxu0
        %v2171 = vadd.f32 0.0, %v2170
        %v2172 = vpop.f32.mrf.mxu0
        %v2173 = vadd.f32 0.0, %v2172
        %2174 = vmatmul.bf16.gmra.mxu0 %v2117
        %v2175 = vpop.f32.mrf.mxu0
        %v2176 = vadd.f32 0.0, %v2175
        %v2177 = vpop.f32.mrf.mxu0
        %v2178 = vadd.f32 0.0, %v2177
        %2179 = vmatmul.bf16.gmra.mxu0 %v2120
        %v2180 = vpop.f32.mrf.mxu0
        %v2181 = vadd.f32 0.0, %v2180
        %v2182 = vpop.f32.mrf.mxu0
        %v2183 = vadd.f32 0.0, %v2182
        %2184 = vmatmul.bf16.gmra.mxu0 %v2123
        %v2185 = vpop.f32.mrf.mxu0
        %v2186 = vadd.f32 0.0, %v2185
        %v2187 = vpop.f32.mrf.mxu0
        %v2188 = vadd.f32 0.0, %v2187
        %2189 = vmatmul.bf16.gmra.mxu0 %v2126
        %v2190 = vpop.f32.mrf.mxu0
        %v2191 = vadd.f32 0.0, %v2190
        %v2192 = vpop.f32.mrf.mxu0
        %v2193 = vadd.f32 0.0, %v2192
        %2194 = vmatmul.bf16.gmra.mxu0 %v2129
        %v2195 = vpop.f32.mrf.mxu0
        %v2196 = vadd.f32 0.0, %v2195
        %v2197 = vpop.f32.mrf.mxu0
        %v2198 = vadd.f32 0.0, %v2197
        %2199 = vmatmul.bf16.gmra.mxu0 %v2132
        %v2200 = vpop.f32.mrf.mxu0
        %v2201 = vadd.f32 0.0, %v2200
        %v2202 = vpop.f32.mrf.mxu0
        %v2203 = vadd.f32 0.0, %v2202
        %2204 = vmatmul.bf16.gmra.mxu0 %v2135
        %v2205 = vpop.f32.mrf.mxu0
        %v2206 = vadd.f32 0.0, %v2205
        %v2207 = vpop.f32.mrf.mxu0
        %v2208 = vadd.f32 0.0, %v2207
        %2209 = vmatmul.bf16.gmra.mxu0 %v2138
        %v2210 = vpop.f32.mrf.mxu0
        %v2211 = vadd.f32 0.0, %v2210
        %v2212 = vpop.f32.mrf.mxu0
        %v2213 = vadd.f32 0.0, %v2212
        %2214 = vmatmul.bf16.gmra.mxu0 %v2141
        %v2215 = vpop.f32.mrf.mxu0
        %v2216 = vadd.f32 0.0, %v2215
        %v2217 = vpop.f32.mrf.mxu0
        %v2218 = vadd.f32 0.0, %v2217
        %2219 = vmatmul.bf16.gmra.mxu0 %v2144
        %v2220 = vpop.f32.mrf.mxu0
        %v2221 = vadd.f32 0.0, %v2220
        %v2222 = vpop.f32.mrf.mxu0
        %v2223 = vadd.f32 0.0, %v2222
        %2224 = vmatmul.bf16.gmra.mxu0 %v2147
        %v2225 = vpop.f32.mrf.mxu0
        %v2226 = vadd.f32 0.0, %v2225
        %v2227 = vpop.f32.mrf.mxu0
        %v2228 = vadd.f32 0.0, %v2227
        %2229 = vmatmul.bf16.gmra.mxu0 %v2150
        %v2230 = vpop.f32.mrf.mxu0
        %v2231 = vadd.f32 0.0, %v2230
        %v2232 = vpop.f32.mrf.mxu0
        %v2233 = vadd.f32 0.0, %v2232
        %2234 = vmatmul.bf16.gmra.mxu0 %v2153
        %v2235 = vpop.f32.mrf.mxu0
        %v2236 = vadd.f32 0.0, %v2235
        %v2237 = vpop.f32.mrf.mxu0
        %v2238 = vadd.f32 0.0, %v2237
        %2239 = vmatmul.bf16.gmra.mxu0 %v2156
        %v2240 = vpop.f32.mrf.mxu0
        %v2241 = vadd.f32 0.0, %v2240
        %v2242 = vpop.f32.mrf.mxu0
        %v2243 = vadd.f32 0.0, %v2242
        %2244 = vmatmul.bf16.gmra.mxu0 %v2159
        %v2245 = vpop.f32.mrf.mxu0
        %v2246 = vadd.f32 0.0, %v2245
        %v2247 = vpop.f32.mrf.mxu0
        %v2248 = vadd.f32 0.0, %v2247
        %2249 = vdwg.mxu0
        %2250 = vmatpush.bf16.msra.mxu0 0
        %2251 = vmatpush.bf16.msra.mxu0 0
        %2252 = vmatpush.bf16.msra.mxu0 0
        %2253 = vmatpush.bf16.msra.mxu0 0
        %2254 = vmatpush.bf16.msra.mxu0 0
        %2255 = vmatpush.bf16.msra.mxu0 0
        %2256 = vmatpush.bf16.msra.mxu0 0
        %2257 = vmatpush.bf16.msra.mxu0 %v2110
        %2258 = vmatmul.bf16.gmra.mxu0 %v2114
        %v2259 = vpop.f32.mrf.mxu0
        %v2260 = vadd.f32 0.0, %v2259
        %v2261 = vpop.f32.mrf.mxu0
        %v2262 = vadd.f32 0.0, %v2261
        %2263 = vmatmul.bf16.gmra.mxu0 %v2117
        %v2264 = vpop.f32.mrf.mxu0
        %v2265 = vadd.f32 0.0, %v2264
        %v2266 = vpop.f32.mrf.mxu0
        %v2267 = vadd.f32 0.0, %v2266
        %2268 = vmatmul.bf16.gmra.mxu0 %v2120
        %v2269 = vpop.f32.mrf.mxu0
        %v2270 = vadd.f32 0.0, %v2269
        %v2271 = vpop.f32.mrf.mxu0
        %v2272 = vadd.f32 0.0, %v2271
        %2273 = vmatmul.bf16.gmra.mxu0 %v2123
        %v2274 = vpop.f32.mrf.mxu0
        %v2275 = vadd.f32 0.0, %v2274
        %v2276 = vpop.f32.mrf.mxu0
        %v2277 = vadd.f32 0.0, %v2276
        %2278 = vmatmul.bf16.gmra.mxu0 %v2126
        %v2279 = vpop.f32.mrf.mxu0
        %v2280 = vadd.f32 0.0, %v2279
        %v2281 = vpop.f32.mrf.mxu0
        %v2282 = vadd.f32 0.0, %v2281
        %2283 = vmatmul.bf16.gmra.mxu0 %v2129
        %v2284 = vpop.f32.mrf.mxu0
        %v2285 = vadd.f32 0.0, %v2284
        %v2286 = vpop.f32.mrf.mxu0
        %v2287 = vadd.f32 0.0, %v2286
        %2288 = vmatmul.bf16.gmra.mxu0 %v2132
        %v2289 = vpop.f32.mrf.mxu0
        %v2290 = vadd.f32 0.0, %v2289
        %v2291 = vpop.f32.mrf.mxu0
        %v2292 = vadd.f32 0.0, %v2291
        %2293 = vmatmul.bf16.gmra.mxu0 %v2135
        %v2294 = vpop.f32.mrf.mxu0
        %v2295 = vadd.f32 0.0, %v2294
        %v2296 = vpop.f32.mrf.mxu0
        %v2297 = vadd.f32 0.0, %v2296
        %2298 = vmatmul.bf16.gmra.mxu0 %v2138
        %v2299 = vpop.f32.mrf.mxu0
        %v2300 = vadd.f32 0.0, %v2299
        %v2301 = vpop.f32.mrf.mxu0
        %v2302 = vadd.f32 0.0, %v2301
        %2303 = vmatmul.bf16.gmra.mxu0 %v2141
        %v2304 = vpop.f32.mrf.mxu0
        %v2305 = vadd.f32 0.0, %v2304
        %v2306 = vpop.f32.mrf.mxu0
        %v2307 = vadd.f32 0.0, %v2306
        %2308 = vmatmul.bf16.gmra.mxu0 %v2144
        %v2309 = vpop.f32.mrf.mxu0
        %v2310 = vadd.f32 0.0, %v2309
        %v2311 = vpop.f32.mrf.mxu0
        %v2312 = vadd.f32 0.0, %v2311
        %2313 = vmatmul.bf16.gmra.mxu0 %v2147
        %v2314 = vpop.f32.mrf.mxu0
        %v2315 = vadd.f32 0.0, %v2314
        %v2316 = vpop.f32.mrf.mxu0
        %v2317 = vadd.f32 0.0, %v2316
        %2318 = vmatmul.bf16.gmra.mxu0 %v2150
        %v2319 = vpop.f32.mrf.mxu0
        %v2320 = vadd.f32 0.0, %v2319
        %v2321 = vpop.f32.mrf.mxu0
        %v2322 = vadd.f32 0.0, %v2321
        %2323 = vmatmul.bf16.gmra.mxu0 %v2153
        %v2324 = vpop.f32.mrf.mxu0
        %v2325 = vadd.f32 0.0, %v2324
        %v2326 = vpop.f32.mrf.mxu0
        %v2327 = vadd.f32 0.0, %v2326
        %2328 = vmatmul.bf16.gmra.mxu0 %v2156
        %v2329 = vpop.f32.mrf.mxu0
        %v2330 = vadd.f32 0.0, %v2329
        %v2331 = vpop.f32.mrf.mxu0
        %v2332 = vadd.f32 0.0, %v2331
        %2333 = vmatmul.bf16.gmra.mxu0 %v2159
        %v2334 = vpop.f32.mrf.mxu0
        %v2335 = vadd.f32 0.0, %v2334
        %v2336 = vpop.f32.mrf.mxu0
        %v2337 = vadd.f32 0.0, %v2336
        %2338 = vdwg.mxu0
        %v2339 = vmax.f32 %v1361, %v1450
        %2340 = vmax.xlane.f32.xlu0 %v2339
        %v2341 = vpop.xlane.xlu0 %2340
        %v2342 = vmax.f32 %v1363, %v1452
        %2343 = vmax.xlane.f32.xlu0 %v2342
        %v2344 = vpop.xlane.xlu0 %2343
        %v2345 = vmax.f32 %v1366, %v1455
        %2346 = vmax.xlane.f32.xlu0 %v2345
        %v2347 = vpop.xlane.xlu0 %2346
        %v2348 = vmax.f32 %v1368, %v1457
        %2349 = vmax.xlane.f32.xlu0 %v2348
        %v2350 = vpop.xlane.xlu0 %2349
        %v2351 = vmax.f32 %v1371, %v1460
        %2352 = vmax.xlane.f32.xlu0 %v2351
        %v2353 = vpop.xlane.xlu0 %2352
        %v2354 = vmax.f32 %v1373, %v1462
        %2355 = vmax.xlane.f32.xlu0 %v2354
        %v2356 = vpop.xlane.xlu0 %2355
        %v2357 = vmax.f32 %v1376, %v1465
        %2358 = vmax.xlane.f32.xlu0 %v2357
        %v2359 = vpop.xlane.xlu0 %2358
        %v2360 = vmax.f32 %v1378, %v1467
        %2361 = vmax.xlane.f32.xlu0 %v2360
        %v2362 = vpop.xlane.xlu0 %2361
        %v2363 = vmax.f32 %v1381, %v1470
        %2364 = vmax.xlane.f32.xlu0 %v2363
        %v2365 = vpop.xlane.xlu0 %2364
        %v2366 = vmax.f32 %v1383, %v1472
        %2367 = vmax.xlane.f32.xlu0 %v2366
        %v2368 = vpop.xlane.xlu0 %2367
        %v2369 = vmax.f32 %v1386, %v1475
        %2370 = vmax.xlane.f32.xlu0 %v2369
        %v2371 = vpop.xlane.xlu0 %2370
        %v2372 = vmax.f32 %v1388, %v1477
        %2373 = vmax.xlane.f32.xlu0 %v2372
        %v2374 = vpop.xlane.xlu0 %2373
        %v2375 = vmax.f32 %v1391, %v1480
        %2376 = vmax.xlane.f32.xlu0 %v2375
        %v2377 = vpop.xlane.xlu0 %2376
        %v2378 = vmax.f32 %v1393, %v1482
        %2379 = vmax.xlane.f32.xlu0 %v2378
        %v2380 = vpop.xlane.xlu0 %2379
        %v2381 = vmax.f32 %v1396, %v1485
        %2382 = vmax.xlane.f32.xlu0 %v2381
        %v2383 = vpop.xlane.xlu0 %2382
        %v2384 = vmax.f32 %v1398, %v1487
        %2385 = vmax.xlane.f32.xlu0 %v2384
        %v2386 = vpop.xlane.xlu0 %2385
        %v2387 = vmax.f32 %v1401, %v1490
        %2388 = vmax.xlane.f32.xlu0 %v2387
        %v2389 = vpop.xlane.xlu0 %2388
        %v2390 = vmax.f32 %v1403, %v1492
        %2391 = vmax.xlane.f32.xlu0 %v2390
        %v2392 = vpop.xlane.xlu0 %2391
        %v2393 = vmax.f32 %v1406, %v1495
        %2394 = vmax.xlane.f32.xlu0 %v2393
        %v2395 = vpop.xlane.xlu0 %2394
        %v2396 = vmax.f32 %v1408, %v1497
        %2397 = vmax.xlane.f32.xlu0 %v2396
        %v2398 = vpop.xlane.xlu0 %2397
        %v2399 = vmax.f32 %v1411, %v1500
        %2400 = vmax.xlane.f32.xlu0 %v2399
        %v2401 = vpop.xlane.xlu0 %2400
        %v2402 = vmax.f32 %v1413, %v1502
        %2403 = vmax.xlane.f32.xlu0 %v2402
        %v2404 = vpop.xlane.xlu0 %2403
        %v2405 = vmax.f32 %v1416, %v1505
        %2406 = vmax.xlane.f32.xlu0 %v2405
        %v2407 = vpop.xlane.xlu0 %2406
        %v2408 = vmax.f32 %v1418, %v1507
        %2409 = vmax.xlane.f32.xlu0 %v2408
        %v2410 = vpop.xlane.xlu0 %2409
        %v2411 = vmax.f32 %v1421, %v1510
        %2412 = vmax.xlane.f32.xlu0 %v2411
        %v2413 = vpop.xlane.xlu0 %2412
        %v2414 = vmax.f32 %v1423, %v1512
        %2415 = vmax.xlane.f32.xlu0 %v2414
        %v2416 = vpop.xlane.xlu0 %2415
        %v2417 = vmax.f32 %v1426, %v1515
        %2418 = vmax.xlane.f32.xlu0 %v2417
        %v2419 = vpop.xlane.xlu0 %2418
        %v2420 = vmax.f32 %v1428, %v1517
        %2421 = vmax.xlane.f32.xlu0 %v2420
        %v2422 = vpop.xlane.xlu0 %2421
        %v2423 = vmax.f32 %v1431, %v1520
        %2424 = vmax.xlane.f32.xlu0 %v2423
        %v2425 = vpop.xlane.xlu0 %2424
        %v2426 = vmax.f32 %v1433, %v1522
        %2427 = vmax.xlane.f32.xlu0 %v2426
        %v2428 = vpop.xlane.xlu0 %2427
        %v2429 = vmax.f32 %v1436, %v1525
        %2430 = vmax.xlane.f32.xlu0 %v2429
        %v2431 = vpop.xlane.xlu0 %2430
        %v2432 = vmax.f32 %v1438, %v1527
        %2433 = vmax.xlane.f32.xlu0 %v2432
        %v2434 = vpop.xlane.xlu0 %2433
        %v2435 = vmax.f32 %v1631, %v1720
        %2436 = vmax.xlane.f32.xlu0 %v2435
        %v2437 = vpop.xlane.xlu0 %2436
        %v2438 = vmax.f32 %v1633, %v1722
        %2439 = vmax.xlane.f32.xlu0 %v2438
        %v2440 = vpop.xlane.xlu0 %2439
        %v2441 = vmax.f32 %v1636, %v1725
        %2442 = vmax.xlane.f32.xlu0 %v2441
        %v2443 = vpop.xlane.xlu0 %2442
        %v2444 = vmax.f32 %v1638, %v1727
        %2445 = vmax.xlane.f32.xlu0 %v2444
        %v2446 = vpop.xlane.xlu0 %2445
        %v2447 = vmax.f32 %v1641, %v1730
        %2448 = vmax.xlane.f32.xlu0 %v2447
        %v2449 = vpop.xlane.xlu0 %2448
        %v2450 = vmax.f32 %v1643, %v1732
        %2451 = vmax.xlane.f32.xlu0 %v2450
        %v2452 = vpop.xlane.xlu0 %2451
        %v2453 = vmax.f32 %v1646, %v1735
        %2454 = vmax.xlane.f32.xlu0 %v2453
        %v2455 = vpop.xlane.xlu0 %2454
        %v2456 = vmax.f32 %v1648, %v1737
        %2457 = vmax.xlane.f32.xlu0 %v2456
        %v2458 = vpop.xlane.xlu0 %2457
        %v2459 = vmax.f32 %v1651, %v1740
        %2460 = vmax.xlane.f32.xlu0 %v2459
        %v2461 = vpop.xlane.xlu0 %2460
        %v2462 = vmax.f32 %v1653, %v1742
        %2463 = vmax.xlane.f32.xlu0 %v2462
        %v2464 = vpop.xlane.xlu0 %2463
        %v2465 = vmax.f32 %v1656, %v1745
        %2466 = vmax.xlane.f32.xlu0 %v2465
        %v2467 = vpop.xlane.xlu0 %2466
        %v2468 = vmax.f32 %v1658, %v1747
        %2469 = vmax.xlane.f32.xlu0 %v2468
        %v2470 = vpop.xlane.xlu0 %2469
        %v2471 = vmax.f32 %v1661, %v1750
        %2472 = vmax.xlane.f32.xlu0 %v2471
        %v2473 = vpop.xlane.xlu0 %2472
        %v2474 = vmax.f32 %v1663, %v1752
        %2475 = vmax.xlane.f32.xlu0 %v2474
        %v2476 = vpop.xlane.xlu0 %2475
        %v2477 = vmax.f32 %v1666, %v1755
        %2478 = vmax.xlane.f32.xlu0 %v2477
        %v2479 = vpop.xlane.xlu0 %2478
        %v2480 = vmax.f32 %v1668, %v1757
        %2481 = vmax.xlane.f32.xlu0 %v2480
        %v2482 = vpop.xlane.xlu0 %2481
        %v2483 = vmax.f32 %v1671, %v1760
        %2484 = vmax.xlane.f32.xlu0 %v2483
        %v2485 = vpop.xlane.xlu0 %2484
        %v2486 = vmax.f32 %v1673, %v1762
        %2487 = vmax.xlane.f32.xlu0 %v2486
        %v2488 = vpop.xlane.xlu0 %2487
        %v2489 = vmax.f32 %v1676, %v1765
        %2490 = vmax.xlane.f32.xlu0 %v2489
        %v2491 = vpop.xlane.xlu0 %2490
        %v2492 = vmax.f32 %v1678, %v1767
        %2493 = vmax.xlane.f32.xlu0 %v2492
        %v2494 = vpop.xlane.xlu0 %2493
        %v2495 = vmax.f32 %v1681, %v1770
        %2496 = vmax.xlane.f32.xlu0 %v2495
        %v2497 = vpop.xlane.xlu0 %2496
        %v2498 = vmax.f32 %v1683, %v1772
        %2499 = vmax.xlane.f32.xlu0 %v2498
        %v2500 = vpop.xlane.xlu0 %2499
        %v2501 = vmax.f32 %v1686, %v1775
        %2502 = vmax.xlane.f32.xlu0 %v2501
        %v2503 = vpop.xlane.xlu0 %2502
        %v2504 = vmax.f32 %v1688, %v1777
        %2505 = vmax.xlane.f32.xlu0 %v2504
        %v2506 = vpop.xlane.xlu0 %2505
        %v2507 = vmax.f32 %v1691, %v1780
        %2508 = vmax.xlane.f32.xlu0 %v2507
        %v2509 = vpop.xlane.xlu0 %2508
        %v2510 = vmax.f32 %v1693, %v1782
        %2511 = vmax.xlane.f32.xlu0 %v2510
        %v2512 = vpop.xlane.xlu0 %2511
        %v2513 = vmax.f32 %v1696, %v1785
        %2514 = vmax.xlane.f32.xlu0 %v2513
        %v2515 = vpop.xlane.xlu0 %2514
        %v2516 = vmax.f32 %v1698, %v1787
        %2517 = vmax.xlane.f32.xlu0 %v2516
        %v2518 = vpop.xlane.xlu0 %2517
        %v2519 = vmax.f32 %v1701, %v1790
        %2520 = vmax.xlane.f32.xlu0 %v2519
        %v2521 = vpop.xlane.xlu0 %2520
        %v2522 = vmax.f32 %v1703, %v1792
        %2523 = vmax.xlane.f32.xlu0 %v2522
        %v2524 = vpop.xlane.xlu0 %2523
        %v2525 = vmax.f32 %v1706, %v1795
        %2526 = vmax.xlane.f32.xlu0 %v2525
        %v2527 = vpop.xlane.xlu0 %2526
        %v2528 = vmax.f32 %v1708, %v1797
        %2529 = vmax.xlane.f32.xlu0 %v2528
        %v2530 = vpop.xlane.xlu0 %2529
        %v2531 = vmax.f32 %v1901, %v1990
        %2532 = vmax.xlane.f32.xlu0 %v2531
        %v2533 = vpop.xlane.xlu0 %2532
        %v2534 = vmax.f32 %v1903, %v1992
        %2535 = vmax.xlane.f32.xlu0 %v2534
        %v2536 = vpop.xlane.xlu0 %2535
        %v2537 = vmax.f32 %v1906, %v1995
        %2538 = vmax.xlane.f32.xlu0 %v2537
        %v2539 = vpop.xlane.xlu0 %2538
        %v2540 = vmax.f32 %v1908, %v1997
        %2541 = vmax.xlane.f32.xlu0 %v2540
        %v2542 = vpop.xlane.xlu0 %2541
        %v2543 = vmax.f32 %v1911, %v2000
        %2544 = vmax.xlane.f32.xlu0 %v2543
        %v2545 = vpop.xlane.xlu0 %2544
        %v2546 = vmax.f32 %v1913, %v2002
        %2547 = vmax.xlane.f32.xlu0 %v2546
        %v2548 = vpop.xlane.xlu0 %2547
        %v2549 = vmax.f32 %v1916, %v2005
        %2550 = vmax.xlane.f32.xlu0 %v2549
        %v2551 = vpop.xlane.xlu0 %2550
        %v2552 = vmax.f32 %v1918, %v2007
        %2553 = vmax.xlane.f32.xlu0 %v2552
        %v2554 = vpop.xlane.xlu0 %2553
        %v2555 = vmax.f32 %v1921, %v2010
        %2556 = vmax.xlane.f32.xlu0 %v2555
        %v2557 = vpop.xlane.xlu0 %2556
        %v2558 = vmax.f32 %v1923, %v2012
        %2559 = vmax.xlane.f32.xlu0 %v2558
        %v2560 = vpop.xlane.xlu0 %2559
        %v2561 = vmax.f32 %v1926, %v2015
        %2562 = vmax.xlane.f32.xlu0 %v2561
        %v2563 = vpop.xlane.xlu0 %2562
        %v2564 = vmax.f32 %v1928, %v2017
        %2565 = vmax.xlane.f32.xlu0 %v2564
        %v2566 = vpop.xlane.xlu0 %2565
        %v2567 = vmax.f32 %v1931, %v2020
        %2568 = vmax.xlane.f32.xlu0 %v2567
        %v2569 = vpop.xlane.xlu0 %2568
        %v2570 = vmax.f32 %v1933, %v2022
        %2571 = vmax.xlane.f32.xlu0 %v2570
        %v2572 = vpop.xlane.xlu0 %2571
        %v2573 = vmax.f32 %v1936, %v2025
        %2574 = vmax.xlane.f32.xlu0 %v2573
        %v2575 = vpop.xlane.xlu0 %2574
        %v2576 = vmax.f32 %v1938, %v2027
        %2577 = vmax.xlane.f32.xlu0 %v2576
        %v2578 = vpop.xlane.xlu0 %2577
        %v2579 = vmax.f32 %v1941, %v2030
        %2580 = vmax.xlane.f32.xlu0 %v2579
        %v2581 = vpop.xlane.xlu0 %2580
        %v2582 = vmax.f32 %v1943, %v2032
        %2583 = vmax.xlane.f32.xlu0 %v2582
        %v2584 = vpop.xlane.xlu0 %2583
        %v2585 = vmax.f32 %v1946, %v2035
        %2586 = vmax.xlane.f32.xlu0 %v2585
        %v2587 = vpop.xlane.xlu0 %2586
        %v2588 = vmax.f32 %v1948, %v2037
        %2589 = vmax.xlane.f32.xlu0 %v2588
        %v2590 = vpop.xlane.xlu0 %2589
        %v2591 = vmax.f32 %v1951, %v2040
        %2592 = vmax.xlane.f32.xlu0 %v2591
        %v2593 = vpop.xlane.xlu0 %2592
        %v2594 = vmax.f32 %v1953, %v2042
        %2595 = vmax.xlane.f32.xlu0 %v2594
        %v2596 = vpop.xlane.xlu0 %2595
        %v2597 = vmax.f32 %v1956, %v2045
        %2598 = vmax.xlane.f32.xlu0 %v2597
        %v2599 = vpop.xlane.xlu0 %2598
        %v2600 = vmax.f32 %v1958, %v2047
        %2601 = vmax.xlane.f32.xlu0 %v2600
        %v2602 = vpop.xlane.xlu0 %2601
        %v2603 = vmax.f32 %v1961, %v2050
        %2604 = vmax.xlane.f32.xlu0 %v2603
        %v2605 = vpop.xlane.xlu0 %2604
        %v2606 = vmax.f32 %v1963, %v2052
        %2607 = vmax.xlane.f32.xlu0 %v2606
        %v2608 = vpop.xlane.xlu0 %2607
        %v2609 = vmax.f32 %v1966, %v2055
        %2610 = vmax.xlane.f32.xlu0 %v2609
        %v2611 = vpop.xlane.xlu0 %2610
        %v2612 = vmax.f32 %v1968, %v2057
        %2613 = vmax.xlane.f32.xlu0 %v2612
        %v2614 = vpop.xlane.xlu0 %2613
        %v2615 = vmax.f32 %v1971, %v2060
        %2616 = vmax.xlane.f32.xlu0 %v2615
        %v2617 = vpop.xlane.xlu0 %2616
        %v2618 = vmax.f32 %v1973, %v2062
        %2619 = vmax.xlane.f32.xlu0 %v2618
        %v2620 = vpop.xlane.xlu0 %2619
        %v2621 = vmax.f32 %v1976, %v2065
        %2622 = vmax.xlane.f32.xlu0 %v2621
        %v2623 = vpop.xlane.xlu0 %2622
        %v2624 = vmax.f32 %v1978, %v2067
        %2625 = vmax.xlane.f32.xlu0 %v2624
        %v2626 = vpop.xlane.xlu0 %2625
        %v2627 = vmax.f32 %v2171, %v2260
        %2628 = vmax.xlane.f32.xlu0 %v2627
        %v2629 = vpop.xlane.xlu0 %2628
        %v2630 = vmax.f32 %v2173, %v2262
        %2631 = vmax.xlane.f32.xlu0 %v2630
        %v2632 = vpop.xlane.xlu0 %2631
        %v2633 = vmax.f32 %v2176, %v2265
        %2634 = vmax.xlane.f32.xlu0 %v2633
        %v2635 = vpop.xlane.xlu0 %2634
        %v2636 = vmax.f32 %v2178, %v2267
        %2637 = vmax.xlane.f32.xlu0 %v2636
        %v2638 = vpop.xlane.xlu0 %2637
        %v2639 = vmax.f32 %v2181, %v2270
        %2640 = vmax.xlane.f32.xlu0 %v2639
        %v2641 = vpop.xlane.xlu0 %2640
        %v2642 = vmax.f32 %v2183, %v2272
        %2643 = vmax.xlane.f32.xlu0 %v2642
        %v2644 = vpop.xlane.xlu0 %2643
        %v2645 = vmax.f32 %v2186, %v2275
        %2646 = vmax.xlane.f32.xlu0 %v2645
        %v2647 = vpop.xlane.xlu0 %2646
        %v2648 = vmax.f32 %v2188, %v2277
        %2649 = vmax.xlane.f32.xlu0 %v2648
        %v2650 = vpop.xlane.xlu0 %2649
        %v2651 = vmax.f32 %v2191, %v2280
        %2652 = vmax.xlane.f32.xlu0 %v2651
        %v2653 = vpop.xlane.xlu0 %2652
        %v2654 = vmax.f32 %v2193, %v2282
        %2655 = vmax.xlane.f32.xlu0 %v2654
        %v2656 = vpop.xlane.xlu0 %2655
        %v2657 = vmax.f32 %v2196, %v2285
        %2658 = vmax.xlane.f32.xlu0 %v2657
        %v2659 = vpop.xlane.xlu0 %2658
        %v2660 = vmax.f32 %v2198, %v2287
        %2661 = vmax.xlane.f32.xlu0 %v2660
        %v2662 = vpop.xlane.xlu0 %2661
        %v2663 = vmax.f32 %v2201, %v2290
        %2664 = vmax.xlane.f32.xlu0 %v2663
        %v2665 = vpop.xlane.xlu0 %2664
        %v2666 = vmax.f32 %v2203, %v2292
        %2667 = vmax.xlane.f32.xlu0 %v2666
        %v2668 = vpop.xlane.xlu0 %2667
        %v2669 = vmax.f32 %v2206, %v2295
        %2670 = vmax.xlane.f32.xlu0 %v2669
        %v2671 = vpop.xlane.xlu0 %2670
        %v2672 = vmax.f32 %v2208, %v2297
        %2673 = vmax.xlane.f32.xlu0 %v2672
        %v2674 = vpop.xlane.xlu0 %2673
        %v2675 = vmax.f32 %v2211, %v2300
        %2676 = vmax.xlane.f32.xlu0 %v2675
        %v2677 = vpop.xlane.xlu0 %2676
        %v2678 = vmax.f32 %v2213, %v2302
        %2679 = vmax.xlane.f32.xlu0 %v2678
        %v2680 = vpop.xlane.xlu0 %2679
        %v2681 = vmax.f32 %v2216, %v2305
        %2682 = vmax.xlane.f32.xlu0 %v2681
        %v2683 = vpop.xlane.xlu0 %2682
        %v2684 = vmax.f32 %v2218, %v2307
        %2685 = vmax.xlane.f32.xlu0 %v2684
        %v2686 = vpop.xlane.xlu0 %2685
        %v2687 = vmax.f32 %v2221, %v2310
        %2688 = vmax.xlane.f32.xlu0 %v2687
        %v2689 = vpop.xlane.xlu0 %2688
        %v2690 = vmax.f32 %v2223, %v2312
        %2691 = vmax.xlane.f32.xlu0 %v2690
        %v2692 = vpop.xlane.xlu0 %2691
        %v2693 = vmax.f32 %v2226, %v2315
        %2694 = vmax.xlane.f32.xlu0 %v2693
        %v2695 = vpop.xlane.xlu0 %2694
        %v2696 = vmax.f32 %v2228, %v2317
        %2697 = vmax.xlane.f32.xlu0 %v2696
        %v2698 = vpop.xlane.xlu0 %2697
        %v2699 = vmax.f32 %v2231, %v2320
        %2700 = vmax.xlane.f32.xlu0 %v2699
        %v2701 = vpop.xlane.xlu0 %2700
        %v2702 = vmax.f32 %v2233, %v2322
        %2703 = vmax.xlane.f32.xlu0 %v2702
        %v2704 = vpop.xlane.xlu0 %2703
        %v2705 = vmax.f32 %v2236, %v2325
        %2706 = vmax.xlane.f32.xlu0 %v2705
        %v2707 = vpop.xlane.xlu0 %2706
        %v2708 = vmax.f32 %v2238, %v2327
        %2709 = vmax.xlane.f32.xlu0 %v2708
        %v2710 = vpop.xlane.xlu0 %2709
        %v2711 = vmax.f32 %v2241, %v2330
        %2712 = vmax.xlane.f32.xlu0 %v2711
        %v2713 = vpop.xlane.xlu0 %2712
        %v2714 = vmax.f32 %v2243, %v2332
        %2715 = vmax.xlane.f32.xlu0 %v2714
        %v2716 = vpop.xlane.xlu0 %2715
        %v2717 = vmax.f32 %v2246, %v2335
        %2718 = vmax.xlane.f32.xlu0 %v2717
        %v2719 = vpop.xlane.xlu0 %2718
        %v2720 = vmax.f32 %v2248, %v2337
        %2721 = vmax.xlane.f32.xlu0 %v2720
        %v2722 = vpop.xlane.xlu0 %2721
        %v2723 = vsub.f32 %v1361, %v2341
        %v2724 = vsub.f32 %v1450, %v2341
        %v2725 = vsub.f32 %v1363, %v2344
        %v2726 = vsub.f32 %v1452, %v2344
        %v2727 = vsub.f32 %v1366, %v2347
        %v2728 = vsub.f32 %v1455, %v2347
        %v2729 = vsub.f32 %v1368, %v2350
        %v2730 = vsub.f32 %v1457, %v2350
        %v2731 = vsub.f32 %v1371, %v2353
        %v2732 = vsub.f32 %v1460, %v2353
        %v2733 = vsub.f32 %v1373, %v2356
        %v2734 = vsub.f32 %v1462, %v2356
        %v2735 = vsub.f32 %v1376, %v2359
        %v2736 = vsub.f32 %v1465, %v2359
        %v2737 = vsub.f32 %v1378, %v2362
        %v2738 = vsub.f32 %v1467, %v2362
        %v2739 = vsub.f32 %v1381, %v2365
        %v2740 = vsub.f32 %v1470, %v2365
        %v2741 = vsub.f32 %v1383, %v2368
        %v2742 = vsub.f32 %v1472, %v2368
        %v2743 = vsub.f32 %v1386, %v2371
        %v2744 = vsub.f32 %v1475, %v2371
        %v2745 = vsub.f32 %v1388, %v2374
        %v2746 = vsub.f32 %v1477, %v2374
        %v2747 = vsub.f32 %v1391, %v2377
        %v2748 = vsub.f32 %v1480, %v2377
        %v2749 = vsub.f32 %v1393, %v2380
        %v2750 = vsub.f32 %v1482, %v2380
        %v2751 = vsub.f32 %v1396, %v2383
        %v2752 = vsub.f32 %v1485, %v2383
        %v2753 = vsub.f32 %v1398, %v2386
        %v2754 = vsub.f32 %v1487, %v2386
        %v2755 = vsub.f32 %v1401, %v2389
        %v2756 = vsub.f32 %v1490, %v2389
        %v2757 = vsub.f32 %v1403, %v2392
        %v2758 = vsub.f32 %v1492, %v2392
        %v2759 = vsub.f32 %v1406, %v2395
        %v2760 = vsub.f32 %v1495, %v2395
        %v2761 = vsub.f32 %v1408, %v2398
        %v2762 = vsub.f32 %v1497, %v2398
        %v2763 = vsub.f32 %v1411, %v2401
        %v2764 = vsub.f32 %v1500, %v2401
        %v2765 = vsub.f32 %v1413, %v2404
        %v2766 = vsub.f32 %v1502, %v2404
        %v2767 = vsub.f32 %v1416, %v2407
        %v2768 = vsub.f32 %v1505, %v2407
        %v2769 = vsub.f32 %v1418, %v2410
        %v2770 = vsub.f32 %v1507, %v2410
        %v2771 = vsub.f32 %v1421, %v2413
        %v2772 = vsub.f32 %v1510, %v2413
        %v2773 = vsub.f32 %v1423, %v2416
        %v2774 = vsub.f32 %v1512, %v2416
        %v2775 = vsub.f32 %v1426, %v2419
        %v2776 = vsub.f32 %v1515, %v2419
        %v2777 = vsub.f32 %v1428, %v2422
        %v2778 = vsub.f32 %v1517, %v2422
        %v2779 = vsub.f32 %v1431, %v2425
        %v2780 = vsub.f32 %v1520, %v2425
        %v2781 = vsub.f32 %v1433, %v2428
        %v2782 = vsub.f32 %v1522, %v2428
        %v2783 = vsub.f32 %v1436, %v2431
        %v2784 = vsub.f32 %v1525, %v2431
        %v2785 = vsub.f32 %v1438, %v2434
        %v2786 = vsub.f32 %v1527, %v2434
        %v2787 = vsub.f32 %v1631, %v2437
        %v2788 = vsub.f32 %v1720, %v2437
        %v2789 = vsub.f32 %v1633, %v2440
        %v2790 = vsub.f32 %v1722, %v2440
        %v2791 = vsub.f32 %v1636, %v2443
        %v2792 = vsub.f32 %v1725, %v2443
        %v2793 = vsub.f32 %v1638, %v2446
        %v2794 = vsub.f32 %v1727, %v2446
        %v2795 = vsub.f32 %v1641, %v2449
        %v2796 = vsub.f32 %v1730, %v2449
        %v2797 = vsub.f32 %v1643, %v2452
        %v2798 = vsub.f32 %v1732, %v2452
        %v2799 = vsub.f32 %v1646, %v2455
        %v2800 = vsub.f32 %v1735, %v2455
        %v2801 = vsub.f32 %v1648, %v2458
        %v2802 = vsub.f32 %v1737, %v2458
        %v2803 = vsub.f32 %v1651, %v2461
        %v2804 = vsub.f32 %v1740, %v2461
        %v2805 = vsub.f32 %v1653, %v2464
        %v2806 = vsub.f32 %v1742, %v2464
        %v2807 = vsub.f32 %v1656, %v2467
        %v2808 = vsub.f32 %v1745, %v2467
        %v2809 = vsub.f32 %v1658, %v2470
        %v2810 = vsub.f32 %v1747, %v2470
        %v2811 = vsub.f32 %v1661, %v2473
        %v2812 = vsub.f32 %v1750, %v2473
        %v2813 = vsub.f32 %v1663, %v2476
        %v2814 = vsub.f32 %v1752, %v2476
        %v2815 = vsub.f32 %v1666, %v2479
        %v2816 = vsub.f32 %v1755, %v2479
        %v2817 = vsub.f32 %v1668, %v2482
        %v2818 = vsub.f32 %v1757, %v2482
        %v2819 = vsub.f32 %v1671, %v2485
        %v2820 = vsub.f32 %v1760, %v2485
        %v2821 = vsub.f32 %v1673, %v2488
        %v2822 = vsub.f32 %v1762, %v2488
        %v2823 = vsub.f32 %v1676, %v2491
        %v2824 = vsub.f32 %v1765, %v2491
        %v2825 = vsub.f32 %v1678, %v2494
        %v2826 = vsub.f32 %v1767, %v2494
        %v2827 = vsub.f32 %v1681, %v2497
        %v2828 = vsub.f32 %v1770, %v2497
        %v2829 = vsub.f32 %v1683, %v2500
        %v2830 = vsub.f32 %v1772, %v2500
        %v2831 = vsub.f32 %v1686, %v2503
        %v2832 = vsub.f32 %v1775, %v2503
        %v2833 = vsub.f32 %v1688, %v2506
        %v2834 = vsub.f32 %v1777, %v2506
        %v2835 = vsub.f32 %v1691, %v2509
        %v2836 = vsub.f32 %v1780, %v2509
        %v2837 = vsub.f32 %v1693, %v2512
        %v2838 = vsub.f32 %v1782, %v2512
        %v2839 = vsub.f32 %v1696, %v2515
        %v2840 = vsub.f32 %v1785, %v2515
        %v2841 = vsub.f32 %v1698, %v2518
        %v2842 = vsub.f32 %v1787, %v2518
        %v2843 = vsub.f32 %v1701, %v2521
        %v2844 = vsub.f32 %v1790, %v2521
        %v2845 = vsub.f32 %v1703, %v2524
        %v2846 = vsub.f32 %v1792, %v2524
        %v2847 = vsub.f32 %v1706, %v2527
        %v2848 = vsub.f32 %v1795, %v2527
        %v2849 = vsub.f32 %v1708, %v2530
        %v2850 = vsub.f32 %v1797, %v2530
        %v2851 = vsub.f32 %v1901, %v2533
        %v2852 = vsub.f32 %v1990, %v2533
        %v2853 = vsub.f32 %v1903, %v2536
        %v2854 = vsub.f32 %v1992, %v2536
        %v2855 = vsub.f32 %v1906, %v2539
        %v2856 = vsub.f32 %v1995, %v2539
        %v2857 = vsub.f32 %v1908, %v2542
        %v2858 = vsub.f32 %v1997, %v2542
        %v2859 = vsub.f32 %v1911, %v2545
        %v2860 = vsub.f32 %v2000, %v2545
        %v2861 = vsub.f32 %v1913, %v2548
        %v2862 = vsub.f32 %v2002, %v2548
        %v2863 = vsub.f32 %v1916, %v2551
        %v2864 = vsub.f32 %v2005, %v2551
        %v2865 = vsub.f32 %v1918, %v2554
        %v2866 = vsub.f32 %v2007, %v2554
        %v2867 = vsub.f32 %v1921, %v2557
        %v2868 = vsub.f32 %v2010, %v2557
        %v2869 = vsub.f32 %v1923, %v2560
        %v2870 = vsub.f32 %v2012, %v2560
        %v2871 = vsub.f32 %v1926, %v2563
        %v2872 = vsub.f32 %v2015, %v2563
        %v2873 = vsub.f32 %v1928, %v2566
        %v2874 = vsub.f32 %v2017, %v2566
        %v2875 = vsub.f32 %v1931, %v2569
        %v2876 = vsub.f32 %v2020, %v2569
        %v2877 = vsub.f32 %v1933, %v2572
        %v2878 = vsub.f32 %v2022, %v2572
        %v2879 = vsub.f32 %v1936, %v2575
        %v2880 = vsub.f32 %v2025, %v2575
        %v2881 = vsub.f32 %v1938, %v2578
        %v2882 = vsub.f32 %v2027, %v2578
        %v2883 = vsub.f32 %v1941, %v2581
        %v2884 = vsub.f32 %v2030, %v2581
        %v2885 = vsub.f32 %v1943, %v2584
        %v2886 = vsub.f32 %v2032, %v2584
        %v2887 = vsub.f32 %v1946, %v2587
        %v2888 = vsub.f32 %v2035, %v2587
        %v2889 = vsub.f32 %v1948, %v2590
        %v2890 = vsub.f32 %v2037, %v2590
        %v2891 = vsub.f32 %v1951, %v2593
        %v2892 = vsub.f32 %v2040, %v2593
        %v2893 = vsub.f32 %v1953, %v2596
        %v2894 = vsub.f32 %v2042, %v2596
        %v2895 = vsub.f32 %v1956, %v2599
        %v2896 = vsub.f32 %v2045, %v2599
        %v2897 = vsub.f32 %v1958, %v2602
        %v2898 = vsub.f32 %v2047, %v2602
        %v2899 = vsub.f32 %v1961, %v2605
        %v2900 = vsub.f32 %v2050, %v2605
        %v2901 = vsub.f32 %v1963, %v2608
        %v2902 = vsub.f32 %v2052, %v2608
        %v2903 = vsub.f32 %v1966, %v2611
        %v2904 = vsub.f32 %v2055, %v2611
        %v2905 = vsub.f32 %v1968, %v2614
        %v2906 = vsub.f32 %v2057, %v2614
        %v2907 = vsub.f32 %v1971, %v2617
        %v2908 = vsub.f32 %v2060, %v2617
        %v2909 = vsub.f32 %v1973, %v2620
        %v2910 = vsub.f32 %v2062, %v2620
        %v2911 = vsub.f32 %v1976, %v2623
        %v2912 = vsub.f32 %v2065, %v2623
        %v2913 = vsub.f32 %v1978, %v2626
        %v2914 = vsub.f32 %v2067, %v2626
        %v2915 = vsub.f32 %v2171, %v2629
        %v2916 = vsub.f32 %v2260, %v2629
        %v2917 = vsub.f32 %v2173, %v2632
        %v2918 = vsub.f32 %v2262, %v2632
        %v2919 = vsub.f32 %v2176, %v2635
        %v2920 = vsub.f32 %v2265, %v2635
        %v2921 = vsub.f32 %v2178, %v2638
        %v2922 = vsub.f32 %v2267, %v2638
        %v2923 = vsub.f32 %v2181, %v2641
        %v2924 = vsub.f32 %v2270, %v2641
        %v2925 = vsub.f32 %v2183, %v2644
        %v2926 = vsub.f32 %v2272, %v2644
        %v2927 = vsub.f32 %v2186, %v2647
        %v2928 = vsub.f32 %v2275, %v2647
        %v2929 = vsub.f32 %v2188, %v2650
        %v2930 = vsub.f32 %v2277, %v2650
        %v2931 = vsub.f32 %v2191, %v2653
        %v2932 = vsub.f32 %v2280, %v2653
        %v2933 = vsub.f32 %v2193, %v2656
        %v2934 = vsub.f32 %v2282, %v2656
        %v2935 = vsub.f32 %v2196, %v2659
        %v2936 = vsub.f32 %v2285, %v2659
        %v2937 = vsub.f32 %v2198, %v2662
        %v2938 = vsub.f32 %v2287, %v2662
        %v2939 = vsub.f32 %v2201, %v2665
        %v2940 = vsub.f32 %v2290, %v2665
        %v2941 = vsub.f32 %v2203, %v2668
        %v2942 = vsub.f32 %v2292, %v2668
        %v2943 = vsub.f32 %v2206, %v2671
        %v2944 = vsub.f32 %v2295, %v2671
        %v2945 = vsub.f32 %v2208, %v2674
        %v2946 = vsub.f32 %v2297, %v2674
        %v2947 = vsub.f32 %v2211, %v2677
        %v2948 = vsub.f32 %v2300, %v2677
        %v2949 = vsub.f32 %v2213, %v2680
        %v2950 = vsub.f32 %v2302, %v2680
        %v2951 = vsub.f32 %v2216, %v2683
        %v2952 = vsub.f32 %v2305, %v2683
        %v2953 = vsub.f32 %v2218, %v2686
        %v2954 = vsub.f32 %v2307, %v2686
        %v2955 = vsub.f32 %v2221, %v2689
        %v2956 = vsub.f32 %v2310, %v2689
        %v2957 = vsub.f32 %v2223, %v2692
        %v2958 = vsub.f32 %v2312, %v2692
        %v2959 = vsub.f32 %v2226, %v2695
        %v2960 = vsub.f32 %v2315, %v2695
        %v2961 = vsub.f32 %v2228, %v2698
        %v2962 = vsub.f32 %v2317, %v2698
        %v2963 = vsub.f32 %v2231, %v2701
        %v2964 = vsub.f32 %v2320, %v2701
        %v2965 = vsub.f32 %v2233, %v2704
        %v2966 = vsub.f32 %v2322, %v2704
        %v2967 = vsub.f32 %v2236, %v2707
        %v2968 = vsub.f32 %v2325, %v2707
        %v2969 = vsub.f32 %v2238, %v2710
        %v2970 = vsub.f32 %v2327, %v2710
        %v2971 = vsub.f32 %v2241, %v2713
        %v2972 = vsub.f32 %v2330, %v2713
        %v2973 = vsub.f32 %v2243, %v2716
        %v2974 = vsub.f32 %v2332, %v2716
        %v2975 = vsub.f32 %v2246, %v2719
        %v2976 = vsub.f32 %v2335, %v2719
        %v2977 = vsub.f32 %v2248, %v2722
        %v2978 = vsub.f32 %v2337, %v2722
        %v2979 = vmul.f32 %v2723, 1.442695
        %v2980 = vpow.pop %v2979
        %v2981 = vmul.f32 %v2724, 1.442695
        %v2982 = vpow.pop %v2981
        %v2983 = vmul.f32 %v2725, 1.442695
        %v2984 = vpow.pop %v2983
        %v2985 = vmul.f32 %v2726, 1.442695
        %v2986 = vpow.pop %v2985
        %v2987 = vmul.f32 %v2727, 1.442695
        %v2988 = vpow.pop %v2987
        %v2989 = vmul.f32 %v2728, 1.442695
        %v2990 = vpow.pop %v2989
        %v2991 = vmul.f32 %v2729, 1.442695
        %v2992 = vpow.pop %v2991
        %v2993 = vmul.f32 %v2730, 1.442695
        %v2994 = vpow.pop %v2993
        %v2995 = vmul.f32 %v2731, 1.442695
        %v2996 = vpow.pop %v2995
        %v2997 = vmul.f32 %v2732, 1.442695
        %v2998 = vpow.pop %v2997
        %v2999 = vmul.f32 %v2733, 1.442695
        %v3000 = vpow.pop %v2999
        %v3001 = vmul.f32 %v2734, 1.442695
        %v3002 = vpow.pop %v3001
        %v3003 = vmul.f32 %v2735, 1.442695
        %v3004 = vpow.pop %v3003
        %v3005 = vmul.f32 %v2736, 1.442695
        %v3006 = vpow.pop %v3005
        %v3007 = vmul.f32 %v2737, 1.442695
        %v3008 = vpow.pop %v3007
        %v3009 = vmul.f32 %v2738, 1.442695
        %v3010 = vpow.pop %v3009
        %v3011 = vmul.f32 %v2739, 1.442695
        %v3012 = vpow.pop %v3011
        %v3013 = vmul.f32 %v2740, 1.442695
        %v3014 = vpow.pop %v3013
        %v3015 = vmul.f32 %v2741, 1.442695
        %v3016 = vpow.pop %v3015
        %v3017 = vmul.f32 %v2742, 1.442695
        %v3018 = vpow.pop %v3017
        %v3019 = vmul.f32 %v2743, 1.442695
        %v3020 = vpow.pop %v3019
        %v3021 = vmul.f32 %v2744, 1.442695
        %v3022 = vpow.pop %v3021
        %v3023 = vmul.f32 %v2745, 1.442695
        %v3024 = vpow.pop %v3023
        %v3025 = vmul.f32 %v2746, 1.442695
        %v3026 = vpow.pop %v3025
        %v3027 = vmul.f32 %v2747, 1.442695
        %v3028 = vpow.pop %v3027
        %v3029 = vmul.f32 %v2748, 1.442695
        %v3030 = vpow.pop %v3029
        %v3031 = vmul.f32 %v2749, 1.442695
        %v3032 = vpow.pop %v3031
        %v3033 = vmul.f32 %v2750, 1.442695
        %v3034 = vpow.pop %v3033
        %v3035 = vmul.f32 %v2751, 1.442695
        %v3036 = vpow.pop %v3035
        %v3037 = vmul.f32 %v2752, 1.442695
        %v3038 = vpow.pop %v3037
        %v3039 = vmul.f32 %v2753, 1.442695
        %v3040 = vpow.pop %v3039
        %v3041 = vmul.f32 %v2754, 1.442695
        %v3042 = vpow.pop %v3041
        %v3043 = vmul.f32 %v2755, 1.442695
        %v3044 = vpow.pop %v3043
        %v3045 = vmul.f32 %v2756, 1.442695
        %v3046 = vpow.pop %v3045
        %v3047 = vmul.f32 %v2757, 1.442695
        %v3048 = vpow.pop %v3047
        %v3049 = vmul.f32 %v2758, 1.442695
        %v3050 = vpow.pop %v3049
        %v3051 = vmul.f32 %v2759, 1.442695
        %v3052 = vpow.pop %v3051
        %v3053 = vmul.f32 %v2760, 1.442695
        %v3054 = vpow.pop %v3053
        %v3055 = vmul.f32 %v2761, 1.442695
        %v3056 = vpow.pop %v3055
        %v3057 = vmul.f32 %v2762, 1.442695
        %v3058 = vpow.pop %v3057
        %v3059 = vmul.f32 %v2763, 1.442695
        %v3060 = vpow.pop %v3059
        %v3061 = vmul.f32 %v2764, 1.442695
        %v3062 = vpow.pop %v3061
        %v3063 = vmul.f32 %v2765, 1.442695
        %v3064 = vpow.pop %v3063
        %v3065 = vmul.f32 %v2766, 1.442695
        %v3066 = vpow.pop %v3065
        %v3067 = vmul.f32 %v2767, 1.442695
        %v3068 = vpow.pop %v3067
        %v3069 = vmul.f32 %v2768, 1.442695
        %v3070 = vpow.pop %v3069
        %v3071 = vmul.f32 %v2769, 1.442695
        %v3072 = vpow.pop %v3071
        %v3073 = vmul.f32 %v2770, 1.442695
        %v3074 = vpow.pop %v3073
        %v3075 = vmul.f32 %v2771, 1.442695
        %v3076 = vpow.pop %v3075
        %v3077 = vmul.f32 %v2772, 1.442695
        %v3078 = vpow.pop %v3077
        %v3079 = vmul.f32 %v2773, 1.442695
        %v3080 = vpow.pop %v3079
        %v3081 = vmul.f32 %v2774, 1.442695
        %v3082 = vpow.pop %v3081
        %v3083 = vmul.f32 %v2775, 1.442695
        %v3084 = vpow.pop %v3083
        %v3085 = vmul.f32 %v2776, 1.442695
        %v3086 = vpow.pop %v3085
        %v3087 = vmul.f32 %v2777, 1.442695
        %v3088 = vpow.pop %v3087
        %v3089 = vmul.f32 %v2778, 1.442695
        %v3090 = vpow.pop %v3089
        %v3091 = vmul.f32 %v2779, 1.442695
        %v3092 = vpow.pop %v3091
        %v3093 = vmul.f32 %v2780, 1.442695
        %v3094 = vpow.pop %v3093
        %v3095 = vmul.f32 %v2781, 1.442695
        %v3096 = vpow.pop %v3095
        %v3097 = vmul.f32 %v2782, 1.442695
        %v3098 = vpow.pop %v3097
        %v3099 = vmul.f32 %v2783, 1.442695
        %v3100 = vpow.pop %v3099
        %v3101 = vmul.f32 %v2784, 1.442695
        %v3102 = vpow.pop %v3101
        %v3103 = vmul.f32 %v2785, 1.442695
        %v3104 = vpow.pop %v3103
        %v3105 = vmul.f32 %v2786, 1.442695
        %v3106 = vpow.pop %v3105
        %v3107 = vmul.f32 %v2787, 1.442695
        %v3108 = vpow.pop %v3107
        %v3109 = vmul.f32 %v2788, 1.442695
        %v3110 = vpow.pop %v3109
        %v3111 = vmul.f32 %v2789, 1.442695
        %v3112 = vpow.pop %v3111
        %v3113 = vmul.f32 %v2790, 1.442695
        %v3114 = vpow.pop %v3113
        %v3115 = vmul.f32 %v2791, 1.442695
        %v3116 = vpow.pop %v3115
        %v3117 = vmul.f32 %v2792, 1.442695
        %v3118 = vpow.pop %v3117
        %v3119 = vmul.f32 %v2793, 1.442695
        %v3120 = vpow.pop %v3119
        %v3121 = vmul.f32 %v2794, 1.442695
        %v3122 = vpow.pop %v3121
        %v3123 = vmul.f32 %v2795, 1.442695
        %v3124 = vpow.pop %v3123
        %v3125 = vmul.f32 %v2796, 1.442695
        %v3126 = vpow.pop %v3125
        %v3127 = vmul.f32 %v2797, 1.442695
        %v3128 = vpow.pop %v3127
        %v3129 = vmul.f32 %v2798, 1.442695
        %v3130 = vpow.pop %v3129
        %v3131 = vmul.f32 %v2799, 1.442695
        %v3132 = vpow.pop %v3131
        %v3133 = vmul.f32 %v2800, 1.442695
        %v3134 = vpow.pop %v3133
        %v3135 = vmul.f32 %v2801, 1.442695
        %v3136 = vpow.pop %v3135
        %v3137 = vmul.f32 %v2802, 1.442695
        %v3138 = vpow.pop %v3137
        %v3139 = vmul.f32 %v2803, 1.442695
        %v3140 = vpow.pop %v3139
        %v3141 = vmul.f32 %v2804, 1.442695
        %v3142 = vpow.pop %v3141
        %v3143 = vmul.f32 %v2805, 1.442695
        %v3144 = vpow.pop %v3143
        %v3145 = vmul.f32 %v2806, 1.442695
        %v3146 = vpow.pop %v3145
        %v3147 = vmul.f32 %v2807, 1.442695
        %v3148 = vpow.pop %v3147
        %v3149 = vmul.f32 %v2808, 1.442695
        %v3150 = vpow.pop %v3149
        %v3151 = vmul.f32 %v2809, 1.442695
        %v3152 = vpow.pop %v3151
        %v3153 = vmul.f32 %v2810, 1.442695
        %v3154 = vpow.pop %v3153
        %v3155 = vmul.f32 %v2811, 1.442695
        %v3156 = vpow.pop %v3155
        %v3157 = vmul.f32 %v2812, 1.442695
        %v3158 = vpow.pop %v3157
        %v3159 = vmul.f32 %v2813, 1.442695
        %v3160 = vpow.pop %v3159
        %v3161 = vmul.f32 %v2814, 1.442695
        %v3162 = vpow.pop %v3161
        %v3163 = vmul.f32 %v2815, 1.442695
        %v3164 = vpow.pop %v3163
        %v3165 = vmul.f32 %v2816, 1.442695
        %v3166 = vpow.pop %v3165
        %v3167 = vmul.f32 %v2817, 1.442695
        %v3168 = vpow.pop %v3167
        %v3169 = vmul.f32 %v2818, 1.442695
        %v3170 = vpow.pop %v3169
        %v3171 = vmul.f32 %v2819, 1.442695
        %v3172 = vpow.pop %v3171
        %v3173 = vmul.f32 %v2820, 1.442695
        %v3174 = vpow.pop %v3173
        %v3175 = vmul.f32 %v2821, 1.442695
        %v3176 = vpow.pop %v3175
        %v3177 = vmul.f32 %v2822, 1.442695
        %v3178 = vpow.pop %v3177
        %v3179 = vmul.f32 %v2823, 1.442695
        %v3180 = vpow.pop %v3179
        %v3181 = vmul.f32 %v2824, 1.442695
        %v3182 = vpow.pop %v3181
        %v3183 = vmul.f32 %v2825, 1.442695
        %v3184 = vpow.pop %v3183
        %v3185 = vmul.f32 %v2826, 1.442695
        %v3186 = vpow.pop %v3185
        %v3187 = vmul.f32 %v2827, 1.442695
        %v3188 = vpow.pop %v3187
        %v3189 = vmul.f32 %v2828, 1.442695
        %v3190 = vpow.pop %v3189
        %v3191 = vmul.f32 %v2829, 1.442695
        %v3192 = vpow.pop %v3191
        %v3193 = vmul.f32 %v2830, 1.442695
        %v3194 = vpow.pop %v3193
        %v3195 = vmul.f32 %v2831, 1.442695
        %v3196 = vpow.pop %v3195
        %v3197 = vmul.f32 %v2832, 1.442695
        %v3198 = vpow.pop %v3197
        %v3199 = vmul.f32 %v2833, 1.442695
        %v3200 = vpow.pop %v3199
        %v3201 = vmul.f32 %v2834, 1.442695
        %v3202 = vpow.pop %v3201
        %v3203 = vmul.f32 %v2835, 1.442695
        %v3204 = vpow.pop %v3203
        %v3205 = vmul.f32 %v2836, 1.442695
        %v3206 = vpow.pop %v3205
        %v3207 = vmul.f32 %v2837, 1.442695
        %v3208 = vpow.pop %v3207
        %v3209 = vmul.f32 %v2838, 1.442695
        %v3210 = vpow.pop %v3209
        %v3211 = vmul.f32 %v2839, 1.442695
        %v3212 = vpow.pop %v3211
        %v3213 = vmul.f32 %v2840, 1.442695
        %v3214 = vpow.pop %v3213
        %v3215 = vmul.f32 %v2841, 1.442695
        %v3216 = vpow.pop %v3215
        %v3217 = vmul.f32 %v2842, 1.442695
        %v3218 = vpow.pop %v3217
        %v3219 = vmul.f32 %v2843, 1.442695
        %v3220 = vpow.pop %v3219
        %v3221 = vmul.f32 %v2844, 1.442695
        %v3222 = vpow.pop %v3221
        %v3223 = vmul.f32 %v2845, 1.442695
        %v3224 = vpow.pop %v3223
        %v3225 = vmul.f32 %v2846, 1.442695
        %v3226 = vpow.pop %v3225
        %v3227 = vmul.f32 %v2847, 1.442695
        %v3228 = vpow.pop %v3227
        %v3229 = vmul.f32 %v2848, 1.442695
        %v3230 = vpow.pop %v3229
        %v3231 = vmul.f32 %v2849, 1.442695
        %v3232 = vpow.pop %v3231
        %v3233 = vmul.f32 %v2850, 1.442695
        %v3234 = vpow.pop %v3233
        %v3235 = vmul.f32 %v2851, 1.442695
        %v3236 = vpow.pop %v3235
        %v3237 = vmul.f32 %v2852, 1.442695
        %v3238 = vpow.pop %v3237
        %v3239 = vmul.f32 %v2853, 1.442695
        %v3240 = vpow.pop %v3239
        %v3241 = vmul.f32 %v2854, 1.442695
        %v3242 = vpow.pop %v3241
        %v3243 = vmul.f32 %v2855, 1.442695
        %v3244 = vpow.pop %v3243
        %v3245 = vmul.f32 %v2856, 1.442695
        %v3246 = vpow.pop %v3245
        %v3247 = vmul.f32 %v2857, 1.442695
        %v3248 = vpow.pop %v3247
        %v3249 = vmul.f32 %v2858, 1.442695
        %v3250 = vpow.pop %v3249
        %v3251 = vmul.f32 %v2859, 1.442695
        %v3252 = vpow.pop %v3251
        %v3253 = vmul.f32 %v2860, 1.442695
        %v3254 = vpow.pop %v3253
        %v3255 = vmul.f32 %v2861, 1.442695
        %v3256 = vpow.pop %v3255
        %v3257 = vmul.f32 %v2862, 1.442695
        %v3258 = vpow.pop %v3257
        %v3259 = vmul.f32 %v2863, 1.442695
        %v3260 = vpow.pop %v3259
        %v3261 = vmul.f32 %v2864, 1.442695
        %v3262 = vpow.pop %v3261
        %v3263 = vmul.f32 %v2865, 1.442695
        %v3264 = vpow.pop %v3263
        %v3265 = vmul.f32 %v2866, 1.442695
        %v3266 = vpow.pop %v3265
        %v3267 = vmul.f32 %v2867, 1.442695
        %v3268 = vpow.pop %v3267
        %v3269 = vmul.f32 %v2868, 1.442695
        %v3270 = vpow.pop %v3269
        %v3271 = vmul.f32 %v2869, 1.442695
        %v3272 = vpow.pop %v3271
        %v3273 = vmul.f32 %v2870, 1.442695
        %v3274 = vpow.pop %v3273
        %v3275 = vmul.f32 %v2871, 1.442695
        %v3276 = vpow.pop %v3275
        %v3277 = vmul.f32 %v2872, 1.442695
        %v3278 = vpow.pop %v3277
        %v3279 = vmul.f32 %v2873, 1.442695
        %v3280 = vpow.pop %v3279
        %v3281 = vmul.f32 %v2874, 1.442695
        %v3282 = vpow.pop %v3281
        %v3283 = vmul.f32 %v2875, 1.442695
        %v3284 = vpow.pop %v3283
        %v3285 = vmul.f32 %v2876, 1.442695
        %v3286 = vpow.pop %v3285
        %v3287 = vmul.f32 %v2877, 1.442695
        %v3288 = vpow.pop %v3287
        %v3289 = vmul.f32 %v2878, 1.442695
        %v3290 = vpow.pop %v3289
        %v3291 = vmul.f32 %v2879, 1.442695
        %v3292 = vpow.pop %v3291
        %v3293 = vmul.f32 %v2880, 1.442695
        %v3294 = vpow.pop %v3293
        %v3295 = vmul.f32 %v2881, 1.442695
        %v3296 = vpow.pop %v3295
        %v3297 = vmul.f32 %v2882, 1.442695
        %v3298 = vpow.pop %v3297
        %v3299 = vmul.f32 %v2883, 1.442695
        %v3300 = vpow.pop %v3299
        %v3301 = vmul.f32 %v2884, 1.442695
        %v3302 = vpow.pop %v3301
        %v3303 = vmul.f32 %v2885, 1.442695
        %v3304 = vpow.pop %v3303
        %v3305 = vmul.f32 %v2886, 1.442695
        %v3306 = vpow.pop %v3305
        %v3307 = vmul.f32 %v2887, 1.442695
        %v3308 = vpow.pop %v3307
        %v3309 = vmul.f32 %v2888, 1.442695
        %v3310 = vpow.pop %v3309
        %v3311 = vmul.f32 %v2889, 1.442695
        %v3312 = vpow.pop %v3311
        %v3313 = vmul.f32 %v2890, 1.442695
        %v3314 = vpow.pop %v3313
        %v3315 = vmul.f32 %v2891, 1.442695
        %v3316 = vpow.pop %v3315
        %v3317 = vmul.f32 %v2892, 1.442695
        %v3318 = vpow.pop %v3317
        %v3319 = vmul.f32 %v2893, 1.442695
        %v3320 = vpow.pop %v3319
        %v3321 = vmul.f32 %v2894, 1.442695
        %v3322 = vpow.pop %v3321
        %v3323 = vmul.f32 %v2895, 1.442695
        %v3324 = vpow.pop %v3323
        %v3325 = vmul.f32 %v2896, 1.442695
        %v3326 = vpow.pop %v3325
        %v3327 = vmul.f32 %v2897, 1.442695
        %v3328 = vpow.pop %v3327
        %v3329 = vmul.f32 %v2898, 1.442695
        %v3330 = vpow.pop %v3329
        %v3331 = vmul.f32 %v2899, 1.442695
        %v3332 = vpow.pop %v3331
        %v3333 = vmul.f32 %v2900, 1.442695
        %v3334 = vpow.pop %v3333
        %v3335 = vmul.f32 %v2901, 1.442695
        %v3336 = vpow.pop %v3335
        %v3337 = vmul.f32 %v2902, 1.442695
        %v3338 = vpow.pop %v3337
        %v3339 = vmul.f32 %v2903, 1.442695
        %v3340 = vpow.pop %v3339
        %v3341 = vmul.f32 %v2904, 1.442695
        %v3342 = vpow.pop %v3341
        %v3343 = vmul.f32 %v2905, 1.442695
        %v3344 = vpow.pop %v3343
        %v3345 = vmul.f32 %v2906, 1.442695
        %v3346 = vpow.pop %v3345
        %v3347 = vmul.f32 %v2907, 1.442695
        %v3348 = vpow.pop %v3347
        %v3349 = vmul.f32 %v2908, 1.442695
        %v3350 = vpow.pop %v3349
        %v3351 = vmul.f32 %v2909, 1.442695
        %v3352 = vpow.pop %v3351
        %v3353 = vmul.f32 %v2910, 1.442695
        %v3354 = vpow.pop %v3353
        %v3355 = vmul.f32 %v2911, 1.442695
        %v3356 = vpow.pop %v3355
        %v3357 = vmul.f32 %v2912, 1.442695
        %v3358 = vpow.pop %v3357
        %v3359 = vmul.f32 %v2913, 1.442695
        %v3360 = vpow.pop %v3359
        %v3361 = vmul.f32 %v2914, 1.442695
        %v3362 = vpow.pop %v3361
        %v3363 = vmul.f32 %v2915, 1.442695
        %v3364 = vpow.pop %v3363
        %v3365 = vmul.f32 %v2916, 1.442695
        %v3366 = vpow.pop %v3365
        %v3367 = vmul.f32 %v2917, 1.442695
        %v3368 = vpow.pop %v3367
        %v3369 = vmul.f32 %v2918, 1.442695
        %v3370 = vpow.pop %v3369
        %v3371 = vmul.f32 %v2919, 1.442695
        %v3372 = vpow.pop %v3371
        %v3373 = vmul.f32 %v2920, 1.442695
        %v3374 = vpow.pop %v3373
        %v3375 = vmul.f32 %v2921, 1.442695
        %v3376 = vpow.pop %v3375
        %v3377 = vmul.f32 %v2922, 1.442695
        %v3378 = vpow.pop %v3377
        %v3379 = vmul.f32 %v2923, 1.442695
        %v3380 = vpow.pop %v3379
        %v3381 = vmul.f32 %v2924, 1.442695
        %v3382 = vpow.pop %v3381
        %v3383 = vmul.f32 %v2925, 1.442695
        %v3384 = vpow.pop %v3383
        %v3385 = vmul.f32 %v2926, 1.442695
        %v3386 = vpow.pop %v3385
        %v3387 = vmul.f32 %v2927, 1.442695
        %v3388 = vpow.pop %v3387
        %v3389 = vmul.f32 %v2928, 1.442695
        %v3390 = vpow.pop %v3389
        %v3391 = vmul.f32 %v2929, 1.442695
        %v3392 = vpow.pop %v3391
        %v3393 = vmul.f32 %v2930, 1.442695
        %v3394 = vpow.pop %v3393
        %v3395 = vmul.f32 %v2931, 1.442695
        %v3396 = vpow.pop %v3395
        %v3397 = vmul.f32 %v2932, 1.442695
        %v3398 = vpow.pop %v3397
        %v3399 = vmul.f32 %v2933, 1.442695
        %v3400 = vpow.pop %v3399
        %v3401 = vmul.f32 %v2934, 1.442695
        %v3402 = vpow.pop %v3401
        %v3403 = vmul.f32 %v2935, 1.442695
        %v3404 = vpow.pop %v3403
        %v3405 = vmul.f32 %v2936, 1.442695
        %v3406 = vpow.pop %v3405
        %v3407 = vmul.f32 %v2937, 1.442695
        %v3408 = vpow.pop %v3407
        %v3409 = vmul.f32 %v2938, 1.442695
        %v3410 = vpow.pop %v3409
        %v3411 = vmul.f32 %v2939, 1.442695
        %v3412 = vpow.pop %v3411
        %v3413 = vmul.f32 %v2940, 1.442695
        %v3414 = vpow.pop %v3413
        %v3415 = vmul.f32 %v2941, 1.442695
        %v3416 = vpow.pop %v3415
        %v3417 = vmul.f32 %v2942, 1.442695
        %v3418 = vpow.pop %v3417
        %v3419 = vmul.f32 %v2943, 1.442695
        %v3420 = vpow.pop %v3419
        %v3421 = vmul.f32 %v2944, 1.442695
        %v3422 = vpow.pop %v3421
        %v3423 = vmul.f32 %v2945, 1.442695
        %v3424 = vpow.pop %v3423
        %v3425 = vmul.f32 %v2946, 1.442695
        %v3426 = vpow.pop %v3425
        %v3427 = vmul.f32 %v2947, 1.442695
        %v3428 = vpow.pop %v3427
        %v3429 = vmul.f32 %v2948, 1.442695
        %v3430 = vpow.pop %v3429
        %v3431 = vmul.f32 %v2949, 1.442695
        %v3432 = vpow.pop %v3431
        %v3433 = vmul.f32 %v2950, 1.442695
        %v3434 = vpow.pop %v3433
        %v3435 = vmul.f32 %v2951, 1.442695
        %v3436 = vpow.pop %v3435
        %v3437 = vmul.f32 %v2952, 1.442695
        %v3438 = vpow.pop %v3437
        %v3439 = vmul.f32 %v2953, 1.442695
        %v3440 = vpow.pop %v3439
        %v3441 = vmul.f32 %v2954, 1.442695
        %v3442 = vpow.pop %v3441
        %v3443 = vmul.f32 %v2955, 1.442695
        %v3444 = vpow.pop %v3443
        %v3445 = vmul.f32 %v2956, 1.442695
        %v3446 = vpow.pop %v3445
        %v3447 = vmul.f32 %v2957, 1.442695
        %v3448 = vpow.pop %v3447
        %v3449 = vmul.f32 %v2958, 1.442695
        %v3450 = vpow.pop %v3449
        %v3451 = vmul.f32 %v2959, 1.442695
        %v3452 = vpow.pop %v3451
        %v3453 = vmul.f32 %v2960, 1.442695
        %v3454 = vpow.pop %v3453
        %v3455 = vmul.f32 %v2961, 1.442695
        %v3456 = vpow.pop %v3455
        %v3457 = vmul.f32 %v2962, 1.442695
        %v3458 = vpow.pop %v3457
        %v3459 = vmul.f32 %v2963, 1.442695
        %v3460 = vpow.pop %v3459
        %v3461 = vmul.f32 %v2964, 1.442695
        %v3462 = vpow.pop %v3461
        %v3463 = vmul.f32 %v2965, 1.442695
        %v3464 = vpow.pop %v3463
        %v3465 = vmul.f32 %v2966, 1.442695
        %v3466 = vpow.pop %v3465
        %v3467 = vmul.f32 %v2967, 1.442695
        %v3468 = vpow.pop %v3467
        %v3469 = vmul.f32 %v2968, 1.442695
        %v3470 = vpow.pop %v3469
        %v3471 = vmul.f32 %v2969, 1.442695
        %v3472 = vpow.pop %v3471
        %v3473 = vmul.f32 %v2970, 1.442695
        %v3474 = vpow.pop %v3473
        %v3475 = vmul.f32 %v2971, 1.442695
        %v3476 = vpow.pop %v3475
        %v3477 = vmul.f32 %v2972, 1.442695
        %v3478 = vpow.pop %v3477
        %v3479 = vmul.f32 %v2973, 1.442695
        %v3480 = vpow.pop %v3479
        %v3481 = vmul.f32 %v2974, 1.442695
        %v3482 = vpow.pop %v3481
        %v3483 = vmul.f32 %v2975, 1.442695
        %v3484 = vpow.pop %v3483
        %v3485 = vmul.f32 %v2976, 1.442695
        %v3486 = vpow.pop %v3485
        %v3487 = vmul.f32 %v2977, 1.442695
        %v3488 = vpow.pop %v3487
        %v3489 = vmul.f32 %v2978, 1.442695
        %v3490 = vpow.pop %v3489
        %v3491 = vadd.f32 %v2980, %v2982
        %3492 = vadd.xlane.f32.xlu0 %v3491
        %v3493 = vpop.xlane.xlu0 %3492
        %v3494 = vadd.f32 %v2984, %v2986
        %3495 = vadd.xlane.f32.xlu0 %v3494
        %v3496 = vpop.xlane.xlu0 %3495
        %v3497 = vadd.f32 %v2988, %v2990
        %3498 = vadd.xlane.f32.xlu0 %v3497
        %v3499 = vpop.xlane.xlu0 %3498
        %v3500 = vadd.f32 %v2992, %v2994
        %3501 = vadd.xlane.f32.xlu0 %v3500
        %v3502 = vpop.xlane.xlu0 %3501
        %v3503 = vadd.f32 %v2996, %v2998
        %3504 = vadd.xlane.f32.xlu0 %v3503
        %v3505 = vpop.xlane.xlu0 %3504
        %v3506 = vadd.f32 %v3000, %v3002
        %3507 = vadd.xlane.f32.xlu0 %v3506
        %v3508 = vpop.xlane.xlu0 %3507
        %v3509 = vadd.f32 %v3004, %v3006
        %3510 = vadd.xlane.f32.xlu0 %v3509
        %v3511 = vpop.xlane.xlu0 %3510
        %v3512 = vadd.f32 %v3008, %v3010
        %3513 = vadd.xlane.f32.xlu0 %v3512
        %v3514 = vpop.xlane.xlu0 %3513
        %v3515 = vadd.f32 %v3012, %v3014
        %3516 = vadd.xlane.f32.xlu0 %v3515
        %v3517 = vpop.xlane.xlu0 %3516
        %v3518 = vadd.f32 %v3016, %v3018
        %3519 = vadd.xlane.f32.xlu0 %v3518
        %v3520 = vpop.xlane.xlu0 %3519
        %v3521 = vadd.f32 %v3020, %v3022
        %3522 = vadd.xlane.f32.xlu0 %v3521
        %v3523 = vpop.xlane.xlu0 %3522
        %v3524 = vadd.f32 %v3024, %v3026
        %3525 = vadd.xlane.f32.xlu0 %v3524
        %v3526 = vpop.xlane.xlu0 %3525
        %v3527 = vadd.f32 %v3028, %v3030
        %3528 = vadd.xlane.f32.xlu0 %v3527
        %v3529 = vpop.xlane.xlu0 %3528
        %v3530 = vadd.f32 %v3032, %v3034
        %3531 = vadd.xlane.f32.xlu0 %v3530
        %v3532 = vpop.xlane.xlu0 %3531
        %v3533 = vadd.f32 %v3036, %v3038
        %3534 = vadd.xlane.f32.xlu0 %v3533
        %v3535 = vpop.xlane.xlu0 %3534
        %v3536 = vadd.f32 %v3040, %v3042
        %3537 = vadd.xlane.f32.xlu0 %v3536
        %v3538 = vpop.xlane.xlu0 %3537
        %v3539 = vadd.f32 %v3044, %v3046
        %3540 = vadd.xlane.f32.xlu0 %v3539
        %v3541 = vpop.xlane.xlu0 %3540
        %v3542 = vadd.f32 %v3048, %v3050
        %3543 = vadd.xlane.f32.xlu0 %v3542
        %v3544 = vpop.xlane.xlu0 %3543
        %v3545 = vadd.f32 %v3052, %v3054
        %3546 = vadd.xlane.f32.xlu0 %v3545
        %v3547 = vpop.xlane.xlu0 %3546
        %v3548 = vadd.f32 %v3056, %v3058
        %3549 = vadd.xlane.f32.xlu0 %v3548
        %v3550 = vpop.xlane.xlu0 %3549
        %v3551 = vadd.f32 %v3060, %v3062
        %3552 = vadd.xlane.f32.xlu0 %v3551
        %v3553 = vpop.xlane.xlu0 %3552
        %v3554 = vadd.f32 %v3064, %v3066
        %3555 = vadd.xlane.f32.xlu0 %v3554
        %v3556 = vpop.xlane.xlu0 %3555
        %v3557 = vadd.f32 %v3068, %v3070
        %3558 = vadd.xlane.f32.xlu0 %v3557
        %v3559 = vpop.xlane.xlu0 %3558
        %v3560 = vadd.f32 %v3072, %v3074
        %3561 = vadd.xlane.f32.xlu0 %v3560
        %v3562 = vpop.xlane.xlu0 %3561
        %v3563 = vadd.f32 %v3076, %v3078
        %3564 = vadd.xlane.f32.xlu0 %v3563
        %v3565 = vpop.xlane.xlu0 %3564
        %v3566 = vadd.f32 %v3080, %v3082
        %3567 = vadd.xlane.f32.xlu0 %v3566
        %v3568 = vpop.xlane.xlu0 %3567
        %v3569 = vadd.f32 %v3084, %v3086
        %3570 = vadd.xlane.f32.xlu0 %v3569
        %v3571 = vpop.xlane.xlu0 %3570
        %v3572 = vadd.f32 %v3088, %v3090
        %3573 = vadd.xlane.f32.xlu0 %v3572
        %v3574 = vpop.xlane.xlu0 %3573
        %v3575 = vadd.f32 %v3092, %v3094
        %3576 = vadd.xlane.f32.xlu0 %v3575
        %v3577 = vpop.xlane.xlu0 %3576
        %v3578 = vadd.f32 %v3096, %v3098
        %3579 = vadd.xlane.f32.xlu0 %v3578
        %v3580 = vpop.xlane.xlu0 %3579
        %v3581 = vadd.f32 %v3100, %v3102
        %3582 = vadd.xlane.f32.xlu0 %v3581
        %v3583 = vpop.xlane.xlu0 %3582
        %v3584 = vadd.f32 %v3104, %v3106
        %3585 = vadd.xlane.f32.xlu0 %v3584
        %v3586 = vpop.xlane.xlu0 %3585
        %v3587 = vadd.f32 %v3108, %v3110
        %3588 = vadd.xlane.f32.xlu0 %v3587
        %v3589 = vpop.xlane.xlu0 %3588
        %v3590 = vadd.f32 %v3112, %v3114
        %3591 = vadd.xlane.f32.xlu0 %v3590
        %v3592 = vpop.xlane.xlu0 %3591
        %v3593 = vadd.f32 %v3116, %v3118
        %3594 = vadd.xlane.f32.xlu0 %v3593
        %v3595 = vpop.xlane.xlu0 %3594
        %v3596 = vadd.f32 %v3120, %v3122
        %3597 = vadd.xlane.f32.xlu0 %v3596
        %v3598 = vpop.xlane.xlu0 %3597
        %v3599 = vadd.f32 %v3124, %v3126
        %3600 = vadd.xlane.f32.xlu0 %v3599
        %v3601 = vpop.xlane.xlu0 %3600
        %v3602 = vadd.f32 %v3128, %v3130
        %3603 = vadd.xlane.f32.xlu0 %v3602
        %v3604 = vpop.xlane.xlu0 %3603
        %v3605 = vadd.f32 %v3132, %v3134
        %3606 = vadd.xlane.f32.xlu0 %v3605
        %v3607 = vpop.xlane.xlu0 %3606
        %v3608 = vadd.f32 %v3136, %v3138
        %3609 = vadd.xlane.f32.xlu0 %v3608
        %v3610 = vpop.xlane.xlu0 %3609
        %v3611 = vadd.f32 %v3140, %v3142
        %3612 = vadd.xlane.f32.xlu0 %v3611
        %v3613 = vpop.xlane.xlu0 %3612
        %v3614 = vadd.f32 %v3144, %v3146
        %3615 = vadd.xlane.f32.xlu0 %v3614
        %v3616 = vpop.xlane.xlu0 %3615
        %v3617 = vadd.f32 %v3148, %v3150
        %3618 = vadd.xlane.f32.xlu0 %v3617
        %v3619 = vpop.xlane.xlu0 %3618
        %v3620 = vadd.f32 %v3152, %v3154
        %3621 = vadd.xlane.f32.xlu0 %v3620
        %v3622 = vpop.xlane.xlu0 %3621
        %v3623 = vadd.f32 %v3156, %v3158
        %3624 = vadd.xlane.f32.xlu0 %v3623
        %v3625 = vpop.xlane.xlu0 %3624
        %v3626 = vadd.f32 %v3160, %v3162
        %3627 = vadd.xlane.f32.xlu0 %v3626
        %v3628 = vpop.xlane.xlu0 %3627
        %v3629 = vadd.f32 %v3164, %v3166
        %3630 = vadd.xlane.f32.xlu0 %v3629
        %v3631 = vpop.xlane.xlu0 %3630
        %v3632 = vadd.f32 %v3168, %v3170
        %3633 = vadd.xlane.f32.xlu0 %v3632
        %v3634 = vpop.xlane.xlu0 %3633
        %v3635 = vadd.f32 %v3172, %v3174
        %3636 = vadd.xlane.f32.xlu0 %v3635
        %v3637 = vpop.xlane.xlu0 %3636
        %v3638 = vadd.f32 %v3176, %v3178
        %3639 = vadd.xlane.f32.xlu0 %v3638
        %v3640 = vpop.xlane.xlu0 %3639
        %v3641 = vadd.f32 %v3180, %v3182
        %3642 = vadd.xlane.f32.xlu0 %v3641
        %v3643 = vpop.xlane.xlu0 %3642
        %v3644 = vadd.f32 %v3184, %v3186
        %3645 = vadd.xlane.f32.xlu0 %v3644
        %v3646 = vpop.xlane.xlu0 %3645
        %v3647 = vadd.f32 %v3188, %v3190
        %3648 = vadd.xlane.f32.xlu0 %v3647
        %v3649 = vpop.xlane.xlu0 %3648
        %v3650 = vadd.f32 %v3192, %v3194
        %3651 = vadd.xlane.f32.xlu0 %v3650
        %v3652 = vpop.xlane.xlu0 %3651
        %v3653 = vadd.f32 %v3196, %v3198
        %3654 = vadd.xlane.f32.xlu0 %v3653
        %v3655 = vpop.xlane.xlu0 %3654
        %v3656 = vadd.f32 %v3200, %v3202
        %3657 = vadd.xlane.f32.xlu0 %v3656
        %v3658 = vpop.xlane.xlu0 %3657
        %v3659 = vadd.f32 %v3204, %v3206
        %3660 = vadd.xlane.f32.xlu0 %v3659
        %v3661 = vpop.xlane.xlu0 %3660
        %v3662 = vadd.f32 %v3208, %v3210
        %3663 = vadd.xlane.f32.xlu0 %v3662
        %v3664 = vpop.xlane.xlu0 %3663
        %v3665 = vadd.f32 %v3212, %v3214
        %3666 = vadd.xlane.f32.xlu0 %v3665
        %v3667 = vpop.xlane.xlu0 %3666
        %v3668 = vadd.f32 %v3216, %v3218
        %3669 = vadd.xlane.f32.xlu0 %v3668
        %v3670 = vpop.xlane.xlu0 %3669
        %v3671 = vadd.f32 %v3220, %v3222
        %3672 = vadd.xlane.f32.xlu0 %v3671
        %v3673 = vpop.xlane.xlu0 %3672
        %v3674 = vadd.f32 %v3224, %v3226
        %3675 = vadd.xlane.f32.xlu0 %v3674
        %v3676 = vpop.xlane.xlu0 %3675
        %v3677 = vadd.f32 %v3228, %v3230
        %3678 = vadd.xlane.f32.xlu0 %v3677
        %v3679 = vpop.xlane.xlu0 %3678
        %v3680 = vadd.f32 %v3232, %v3234
        %3681 = vadd.xlane.f32.xlu0 %v3680
        %v3682 = vpop.xlane.xlu0 %3681
        %v3683 = vadd.f32 %v3236, %v3238
        %3684 = vadd.xlane.f32.xlu0 %v3683
        %v3685 = vpop.xlane.xlu0 %3684
        %v3686 = vadd.f32 %v3240, %v3242
        %3687 = vadd.xlane.f32.xlu0 %v3686
        %v3688 = vpop.xlane.xlu0 %3687
        %v3689 = vadd.f32 %v3244, %v3246
        %3690 = vadd.xlane.f32.xlu0 %v3689
        %v3691 = vpop.xlane.xlu0 %3690
        %v3692 = vadd.f32 %v3248, %v3250
        %3693 = vadd.xlane.f32.xlu0 %v3692
        %v3694 = vpop.xlane.xlu0 %3693
        %v3695 = vadd.f32 %v3252, %v3254
        %3696 = vadd.xlane.f32.xlu0 %v3695
        %v3697 = vpop.xlane.xlu0 %3696
        %v3698 = vadd.f32 %v3256, %v3258
        %3699 = vadd.xlane.f32.xlu0 %v3698
        %v3700 = vpop.xlane.xlu0 %3699
        %v3701 = vadd.f32 %v3260, %v3262
        %3702 = vadd.xlane.f32.xlu0 %v3701
        %v3703 = vpop.xlane.xlu0 %3702
        %v3704 = vadd.f32 %v3264, %v3266
        %3705 = vadd.xlane.f32.xlu0 %v3704
        %v3706 = vpop.xlane.xlu0 %3705
        %v3707 = vadd.f32 %v3268, %v3270
        %3708 = vadd.xlane.f32.xlu0 %v3707
        %v3709 = vpop.xlane.xlu0 %3708
        %v3710 = vadd.f32 %v3272, %v3274
        %3711 = vadd.xlane.f32.xlu0 %v3710
        %v3712 = vpop.xlane.xlu0 %3711
        %v3713 = vadd.f32 %v3276, %v3278
        %3714 = vadd.xlane.f32.xlu0 %v3713
        %v3715 = vpop.xlane.xlu0 %3714
        %v3716 = vadd.f32 %v3280, %v3282
        %3717 = vadd.xlane.f32.xlu0 %v3716
        %v3718 = vpop.xlane.xlu0 %3717
        %v3719 = vadd.f32 %v3284, %v3286
        %3720 = vadd.xlane.f32.xlu0 %v3719
        %v3721 = vpop.xlane.xlu0 %3720
        %v3722 = vadd.f32 %v3288, %v3290
        %3723 = vadd.xlane.f32.xlu0 %v3722
        %v3724 = vpop.xlane.xlu0 %3723
        %v3725 = vadd.f32 %v3292, %v3294
        %3726 = vadd.xlane.f32.xlu0 %v3725
        %v3727 = vpop.xlane.xlu0 %3726
        %v3728 = vadd.f32 %v3296, %v3298
        %3729 = vadd.xlane.f32.xlu0 %v3728
        %v3730 = vpop.xlane.xlu0 %3729
        %v3731 = vadd.f32 %v3300, %v3302
        %3732 = vadd.xlane.f32.xlu0 %v3731
        %v3733 = vpop.xlane.xlu0 %3732
        %v3734 = vadd.f32 %v3304, %v3306
        %3735 = vadd.xlane.f32.xlu0 %v3734
        %v3736 = vpop.xlane.xlu0 %3735
        %v3737 = vadd.f32 %v3308, %v3310
        %3738 = vadd.xlane.f32.xlu0 %v3737
        %v3739 = vpop.xlane.xlu0 %3738
        %v3740 = vadd.f32 %v3312, %v3314
        %3741 = vadd.xlane.f32.xlu0 %v3740
        %v3742 = vpop.xlane.xlu0 %3741
        %v3743 = vadd.f32 %v3316, %v3318
        %3744 = vadd.xlane.f32.xlu0 %v3743
        %v3745 = vpop.xlane.xlu0 %3744
        %v3746 = vadd.f32 %v3320, %v3322
        %3747 = vadd.xlane.f32.xlu0 %v3746
        %v3748 = vpop.xlane.xlu0 %3747
        %v3749 = vadd.f32 %v3324, %v3326
        %3750 = vadd.xlane.f32.xlu0 %v3749
        %v3751 = vpop.xlane.xlu0 %3750
        %v3752 = vadd.f32 %v3328, %v3330
        %3753 = vadd.xlane.f32.xlu0 %v3752
        %v3754 = vpop.xlane.xlu0 %3753
        %v3755 = vadd.f32 %v3332, %v3334
        %3756 = vadd.xlane.f32.xlu0 %v3755
        %v3757 = vpop.xlane.xlu0 %3756
        %v3758 = vadd.f32 %v3336, %v3338
        %3759 = vadd.xlane.f32.xlu0 %v3758
        %v3760 = vpop.xlane.xlu0 %3759
        %v3761 = vadd.f32 %v3340, %v3342
        %3762 = vadd.xlane.f32.xlu0 %v3761
        %v3763 = vpop.xlane.xlu0 %3762
        %v3764 = vadd.f32 %v3344, %v3346
        %3765 = vadd.xlane.f32.xlu0 %v3764
        %v3766 = vpop.xlane.xlu0 %3765
        %v3767 = vadd.f32 %v3348, %v3350
        %3768 = vadd.xlane.f32.xlu0 %v3767
        %v3769 = vpop.xlane.xlu0 %3768
        %v3770 = vadd.f32 %v3352, %v3354
        %3771 = vadd.xlane.f32.xlu0 %v3770
        %v3772 = vpop.xlane.xlu0 %3771
        %v3773 = vadd.f32 %v3356, %v3358
        %3774 = vadd.xlane.f32.xlu0 %v3773
        %v3775 = vpop.xlane.xlu0 %3774
        %v3776 = vadd.f32 %v3360, %v3362
        %3777 = vadd.xlane.f32.xlu0 %v3776
        %v3778 = vpop.xlane.xlu0 %3777
        %v3779 = vadd.f32 %v3364, %v3366
        %3780 = vadd.xlane.f32.xlu0 %v3779
        %v3781 = vpop.xlane.xlu0 %3780
        %v3782 = vadd.f32 %v3368, %v3370
        %3783 = vadd.xlane.f32.xlu0 %v3782
        %v3784 = vpop.xlane.xlu0 %3783
        %v3785 = vadd.f32 %v3372, %v3374
        %3786 = vadd.xlane.f32.xlu0 %v3785
        %v3787 = vpop.xlane.xlu0 %3786
        %v3788 = vadd.f32 %v3376, %v3378
        %3789 = vadd.xlane.f32.xlu0 %v3788
        %v3790 = vpop.xlane.xlu0 %3789
        %v3791 = vadd.f32 %v3380, %v3382
        %3792 = vadd.xlane.f32.xlu0 %v3791
        %v3793 = vpop.xlane.xlu0 %3792
        %v3794 = vadd.f32 %v3384, %v3386
        %3795 = vadd.xlane.f32.xlu0 %v3794
        %v3796 = vpop.xlane.xlu0 %3795
        %v3797 = vadd.f32 %v3388, %v3390
        %3798 = vadd.xlane.f32.xlu0 %v3797
        %v3799 = vpop.xlane.xlu0 %3798
        %v3800 = vadd.f32 %v3392, %v3394
        %3801 = vadd.xlane.f32.xlu0 %v3800
        %v3802 = vpop.xlane.xlu0 %3801
        %v3803 = vadd.f32 %v3396, %v3398
        %3804 = vadd.xlane.f32.xlu0 %v3803
        %v3805 = vpop.xlane.xlu0 %3804
        %v3806 = vadd.f32 %v3400, %v3402
        %3807 = vadd.xlane.f32.xlu0 %v3806
        %v3808 = vpop.xlane.xlu0 %3807
        %v3809 = vadd.f32 %v3404, %v3406
        %3810 = vadd.xlane.f32.xlu0 %v3809
        %v3811 = vpop.xlane.xlu0 %3810
        %v3812 = vadd.f32 %v3408, %v3410
        %3813 = vadd.xlane.f32.xlu0 %v3812
        %v3814 = vpop.xlane.xlu0 %3813
        %v3815 = vadd.f32 %v3412, %v3414
        %3816 = vadd.xlane.f32.xlu0 %v3815
        %v3817 = vpop.xlane.xlu0 %3816
        %v3818 = vadd.f32 %v3416, %v3418
        %3819 = vadd.xlane.f32.xlu0 %v3818
        %v3820 = vpop.xlane.xlu0 %3819
        %v3821 = vadd.f32 %v3420, %v3422
        %3822 = vadd.xlane.f32.xlu0 %v3821
        %v3823 = vpop.xlane.xlu0 %3822
        %v3824 = vadd.f32 %v3424, %v3426
        %3825 = vadd.xlane.f32.xlu0 %v3824
        %v3826 = vpop.xlane.xlu0 %3825
        %v3827 = vadd.f32 %v3428, %v3430
        %3828 = vadd.xlane.f32.xlu0 %v3827
        %v3829 = vpop.xlane.xlu0 %3828
        %v3830 = vadd.f32 %v3432, %v3434
        %3831 = vadd.xlane.f32.xlu0 %v3830
        %v3832 = vpop.xlane.xlu0 %3831
        %v3833 = vadd.f32 %v3436, %v3438
        %3834 = vadd.xlane.f32.xlu0 %v3833
        %v3835 = vpop.xlane.xlu0 %3834
        %v3836 = vadd.f32 %v3440, %v3442
        %3837 = vadd.xlane.f32.xlu0 %v3836
        %v3838 = vpop.xlane.xlu0 %3837
        %v3839 = vadd.f32 %v3444, %v3446
        %3840 = vadd.xlane.f32.xlu0 %v3839
        %v3841 = vpop.xlane.xlu0 %3840
        %v3842 = vadd.f32 %v3448, %v3450
        %3843 = vadd.xlane.f32.xlu0 %v3842
        %v3844 = vpop.xlane.xlu0 %3843
        %v3845 = vadd.f32 %v3452, %v3454
        %3846 = vadd.xlane.f32.xlu0 %v3845
        %v3847 = vpop.xlane.xlu0 %3846
        %v3848 = vadd.f32 %v3456, %v3458
        %3849 = vadd.xlane.f32.xlu0 %v3848
        %v3850 = vpop.xlane.xlu0 %3849
        %v3851 = vadd.f32 %v3460, %v3462
        %3852 = vadd.xlane.f32.xlu0 %v3851
        %v3853 = vpop.xlane.xlu0 %3852
        %v3854 = vadd.f32 %v3464, %v3466
        %3855 = vadd.xlane.f32.xlu0 %v3854
        %v3856 = vpop.xlane.xlu0 %3855
        %v3857 = vadd.f32 %v3468, %v3470
        %3858 = vadd.xlane.f32.xlu0 %v3857
        %v3859 = vpop.xlane.xlu0 %3858
        %v3860 = vadd.f32 %v3472, %v3474
        %3861 = vadd.xlane.f32.xlu0 %v3860
        %v3862 = vpop.xlane.xlu0 %3861
        %v3863 = vadd.f32 %v3476, %v3478
        %3864 = vadd.xlane.f32.xlu0 %v3863
        %v3865 = vpop.xlane.xlu0 %3864
        %v3866 = vadd.f32 %v3480, %v3482
        %3867 = vadd.xlane.f32.xlu0 %v3866
        %v3868 = vpop.xlane.xlu0 %3867
        %v3869 = vadd.f32 %v3484, %v3486
        %3870 = vadd.xlane.f32.xlu0 %v3869
        %v3871 = vpop.xlane.xlu0 %3870
        %v3872 = vadd.f32 %v3488, %v3490
        %3873 = vadd.xlane.f32.xlu0 %v3872
        %v3874 = vpop.xlane.xlu0 %3873
        %v3875 = vpack.c.bf16 %v2982, %v2980
        %v3876 = vpack.c.bf16 %v2986, %v2984
        %v3877 = vpack.c.bf16 %v2990, %v2988
        %v3878 = vpack.c.bf16 %v2994, %v2992
        %v3879 = vpack.c.bf16 %v2998, %v2996
        %v3880 = vpack.c.bf16 %v3002, %v3000
        %v3881 = vpack.c.bf16 %v3006, %v3004
        %v3882 = vpack.c.bf16 %v3010, %v3008
        %v3883 = vpack.c.bf16 %v3014, %v3012
        %v3884 = vpack.c.bf16 %v3018, %v3016
        %v3885 = vpack.c.bf16 %v3022, %v3020
        %v3886 = vpack.c.bf16 %v3026, %v3024
        %v3887 = vpack.c.bf16 %v3030, %v3028
        %v3888 = vpack.c.bf16 %v3034, %v3032
        %v3889 = vpack.c.bf16 %v3038, %v3036
        %v3890 = vpack.c.bf16 %v3042, %v3040
        %v3891 = vpack.c.bf16 %v3046, %v3044
        %v3892 = vpack.c.bf16 %v3050, %v3048
        %v3893 = vpack.c.bf16 %v3054, %v3052
        %v3894 = vpack.c.bf16 %v3058, %v3056
        %v3895 = vpack.c.bf16 %v3062, %v3060
        %v3896 = vpack.c.bf16 %v3066, %v3064
        %v3897 = vpack.c.bf16 %v3070, %v3068
        %v3898 = vpack.c.bf16 %v3074, %v3072
        %v3899 = vpack.c.bf16 %v3078, %v3076
        %v3900 = vpack.c.bf16 %v3082, %v3080
        %v3901 = vpack.c.bf16 %v3086, %v3084
        %v3902 = vpack.c.bf16 %v3090, %v3088
        %v3903 = vpack.c.bf16 %v3094, %v3092
        %v3904 = vpack.c.bf16 %v3098, %v3096
        %v3905 = vpack.c.bf16 %v3102, %v3100
        %v3906 = vpack.c.bf16 %v3106, %v3104
        %v3907 = vpack.c.bf16 %v3110, %v3108
        %v3908 = vpack.c.bf16 %v3114, %v3112
        %v3909 = vpack.c.bf16 %v3118, %v3116
        %v3910 = vpack.c.bf16 %v3122, %v3120
        %v3911 = vpack.c.bf16 %v3126, %v3124
        %v3912 = vpack.c.bf16 %v3130, %v3128
        %v3913 = vpack.c.bf16 %v3134, %v3132
        %v3914 = vpack.c.bf16 %v3138, %v3136
        %v3915 = vpack.c.bf16 %v3142, %v3140
        %v3916 = vpack.c.bf16 %v3146, %v3144
        %v3917 = vpack.c.bf16 %v3150, %v3148
        %v3918 = vpack.c.bf16 %v3154, %v3152
        %v3919 = vpack.c.bf16 %v3158, %v3156
        %v3920 = vpack.c.bf16 %v3162, %v3160
        %v3921 = vpack.c.bf16 %v3166, %v3164
        %v3922 = vpack.c.bf16 %v3170, %v3168
        %v3923 = vpack.c.bf16 %v3174, %v3172
        %v3924 = vpack.c.bf16 %v3178, %v3176
        %v3925 = vpack.c.bf16 %v3182, %v3180
        %v3926 = vpack.c.bf16 %v3186, %v3184
        %v3927 = vpack.c.bf16 %v3190, %v3188
        %v3928 = vpack.c.bf16 %v3194, %v3192
        %v3929 = vpack.c.bf16 %v3198, %v3196
        %v3930 = vpack.c.bf16 %v3202, %v3200
        %v3931 = vpack.c.bf16 %v3206, %v3204
        %v3932 = vpack.c.bf16 %v3210, %v3208
        %v3933 = vpack.c.bf16 %v3214, %v3212
        %v3934 = vpack.c.bf16 %v3218, %v3216
        %v3935 = vpack.c.bf16 %v3222, %v3220
        %v3936 = vpack.c.bf16 %v3226, %v3224
        %v3937 = vpack.c.bf16 %v3230, %v3228
        %v3938 = vpack.c.bf16 %v3234, %v3232
        %v3939 = vpack.c.bf16 %v3238, %v3236
        %v3940 = vpack.c.bf16 %v3242, %v3240
        %v3941 = vpack.c.bf16 %v3246, %v3244
        %v3942 = vpack.c.bf16 %v3250, %v3248
        %v3943 = vpack.c.bf16 %v3254, %v3252
        %v3944 = vpack.c.bf16 %v3258, %v3256
        %v3945 = vpack.c.bf16 %v3262, %v3260
        %v3946 = vpack.c.bf16 %v3266, %v3264
        %v3947 = vpack.c.bf16 %v3270, %v3268
        %v3948 = vpack.c.bf16 %v3274, %v3272
        %v3949 = vpack.c.bf16 %v3278, %v3276
        %v3950 = vpack.c.bf16 %v3282, %v3280
        %v3951 = vpack.c.bf16 %v3286, %v3284
        %v3952 = vpack.c.bf16 %v3290, %v3288
        %v3953 = vpack.c.bf16 %v3294, %v3292
        %v3954 = vpack.c.bf16 %v3298, %v3296
        %v3955 = vpack.c.bf16 %v3302, %v3300
        %v3956 = vpack.c.bf16 %v3306, %v3304
        %v3957 = vpack.c.bf16 %v3310, %v3308
        %v3958 = vpack.c.bf16 %v3314, %v3312
        %v3959 = vpack.c.bf16 %v3318, %v3316
        %v3960 = vpack.c.bf16 %v3322, %v3320
        %v3961 = vpack.c.bf16 %v3326, %v3324
        %v3962 = vpack.c.bf16 %v3330, %v3328
        %v3963 = vpack.c.bf16 %v3334, %v3332
        %v3964 = vpack.c.bf16 %v3338, %v3336
        %v3965 = vpack.c.bf16 %v3342, %v3340
        %v3966 = vpack.c.bf16 %v3346, %v3344
        %v3967 = vpack.c.bf16 %v3350, %v3348
        %v3968 = vpack.c.bf16 %v3354, %v3352
        %v3969 = vpack.c.bf16 %v3358, %v3356
        %v3970 = vpack.c.bf16 %v3362, %v3360
        %v3971 = vpack.c.bf16 %v3366, %v3364
        %v3972 = vpack.c.bf16 %v3370, %v3368
        %v3973 = vpack.c.bf16 %v3374, %v3372
        %v3974 = vpack.c.bf16 %v3378, %v3376
        %v3975 = vpack.c.bf16 %v3382, %v3380
        %v3976 = vpack.c.bf16 %v3386, %v3384
        %v3977 = vpack.c.bf16 %v3390, %v3388
        %v3978 = vpack.c.bf16 %v3394, %v3392
        %v3979 = vpack.c.bf16 %v3398, %v3396
        %v3980 = vpack.c.bf16 %v3402, %v3400
        %v3981 = vpack.c.bf16 %v3406, %v3404
        %v3982 = vpack.c.bf16 %v3410, %v3408
        %v3983 = vpack.c.bf16 %v3414, %v3412
        %v3984 = vpack.c.bf16 %v3418, %v3416
        %v3985 = vpack.c.bf16 %v3422, %v3420
        %v3986 = vpack.c.bf16 %v3426, %v3424
        %v3987 = vpack.c.bf16 %v3430, %v3428
        %v3988 = vpack.c.bf16 %v3434, %v3432
        %v3989 = vpack.c.bf16 %v3438, %v3436
        %v3990 = vpack.c.bf16 %v3442, %v3440
        %v3991 = vpack.c.bf16 %v3446, %v3444
        %v3992 = vpack.c.bf16 %v3450, %v3448
        %v3993 = vpack.c.bf16 %v3454, %v3452
        %v3994 = vpack.c.bf16 %v3458, %v3456
        %v3995 = vpack.c.bf16 %v3462, %v3460
        %v3996 = vpack.c.bf16 %v3466, %v3464
        %v3997 = vpack.c.bf16 %v3470, %v3468
        %v3998 = vpack.c.bf16 %v3474, %v3472
        %v3999 = vpack.c.bf16 %v3478, %v3476
        %v4000 = vpack.c.bf16 %v3482, %v3480
        %v4001 = vpack.c.bf16 %v3486, %v3484
        %v4002 = vpack.c.bf16 %v3490, %v3488
        %v4005 = vunpack.c.l.b16 %v1250
        %v4006 = vunpack.c.h.b16 %v1250
        %v4007 = vunpack.c.l.b16 %v1251
        %v4008 = vunpack.c.h.b16 %v1251
        %v4009 = vpack.c.b16 %v4007, %v4005
        %v4010 = vpack.c.b16 %v4008, %v4006
        %v4045 = vunpack.c.l.b16 %v3875
        %v4046 = vunpack.c.h.b16 %v3875
        %v4047 = vunpack.c.l.b16 %v3876
        %v4048 = vunpack.c.h.b16 %v3876
        %v4049 = vunpack.c.l.b16 %v3877
        %v4050 = vunpack.c.h.b16 %v3877
        %v4051 = vunpack.c.l.b16 %v3878
        %v4052 = vunpack.c.h.b16 %v3878
        %v4053 = vunpack.c.l.b16 %v3879
        %v4054 = vunpack.c.h.b16 %v3879
        %v4055 = vunpack.c.l.b16 %v3880
        %v4056 = vunpack.c.h.b16 %v3880
        %v4057 = vunpack.c.l.b16 %v3881
        %v4058 = vunpack.c.h.b16 %v3881
        %v4059 = vunpack.c.l.b16 %v3882
        %v4060 = vunpack.c.h.b16 %v3882
        %v4061 = vunpack.c.l.b16 %v3883
        %v4062 = vunpack.c.h.b16 %v3883
        %v4063 = vunpack.c.l.b16 %v3884
        %v4064 = vunpack.c.h.b16 %v3884
        %v4065 = vunpack.c.l.b16 %v3885
        %v4066 = vunpack.c.h.b16 %v3885
        %v4067 = vunpack.c.l.b16 %v3886
        %v4068 = vunpack.c.h.b16 %v3886
        %v4069 = vunpack.c.l.b16 %v3887
        %v4070 = vunpack.c.h.b16 %v3887
        %v4071 = vunpack.c.l.b16 %v3888
        %v4072 = vunpack.c.h.b16 %v3888
        %v4073 = vunpack.c.l.b16 %v3889
        %v4074 = vunpack.c.h.b16 %v3889
        %v4075 = vunpack.c.l.b16 %v3890
        %v4076 = vunpack.c.h.b16 %v3890
        %v4077 = vunpack.c.l.b16 %v3891
        %v4078 = vunpack.c.h.b16 %v3891
        %v4079 = vunpack.c.l.b16 %v3892
        %v4080 = vunpack.c.h.b16 %v3892
        %v4081 = vunpack.c.l.b16 %v3893
        %v4082 = vunpack.c.h.b16 %v3893
        %v4083 = vunpack.c.l.b16 %v3894
        %v4084 = vunpack.c.h.b16 %v3894
        %v4085 = vunpack.c.l.b16 %v3895
        %v4086 = vunpack.c.h.b16 %v3895
        %v4087 = vunpack.c.l.b16 %v3896
        %v4088 = vunpack.c.h.b16 %v3896
        %v4089 = vunpack.c.l.b16 %v3897
        %v4090 = vunpack.c.h.b16 %v3897
        %v4091 = vunpack.c.l.b16 %v3898
        %v4092 = vunpack.c.h.b16 %v3898
        %v4093 = vunpack.c.l.b16 %v3899
        %v4094 = vunpack.c.h.b16 %v3899
        %v4095 = vunpack.c.l.b16 %v3900
        %v4096 = vunpack.c.h.b16 %v3900
        %v4097 = vunpack.c.l.b16 %v3901
        %v4098 = vunpack.c.h.b16 %v3901
        %v4099 = vunpack.c.l.b16 %v3902
        %v4100 = vunpack.c.h.b16 %v3902
        %v4101 = vunpack.c.l.b16 %v3903
        %v4102 = vunpack.c.h.b16 %v3903
        %v4103 = vunpack.c.l.b16 %v3904
        %v4104 = vunpack.c.h.b16 %v3904
        %v4105 = vunpack.c.l.b16 %v3905
        %v4106 = vunpack.c.h.b16 %v3905
        %v4107 = vunpack.c.l.b16 %v3906
        %v4108 = vunpack.c.h.b16 %v3906
        %v4109 = vpack.c.b16 %v4047, %v4045
        %v4110 = vpack.c.b16 %v4048, %v4046
        %v4111 = vpack.c.b16 %v4051, %v4049
        %v4112 = vpack.c.b16 %v4052, %v4050
        %v4113 = vpack.c.b16 %v4055, %v4053
        %v4114 = vpack.c.b16 %v4056, %v4054
        %v4115 = vpack.c.b16 %v4059, %v4057
        %v4116 = vpack.c.b16 %v4060, %v4058
        %v4117 = vpack.c.b16 %v4063, %v4061
        %v4118 = vpack.c.b16 %v4064, %v4062
        %v4119 = vpack.c.b16 %v4067, %v4065
        %v4120 = vpack.c.b16 %v4068, %v4066
        %v4121 = vpack.c.b16 %v4071, %v4069
        %v4122 = vpack.c.b16 %v4072, %v4070
        %v4123 = vpack.c.b16 %v4075, %v4073
        %v4124 = vpack.c.b16 %v4076, %v4074
        %v4125 = vpack.c.b16 %v4079, %v4077
        %v4126 = vpack.c.b16 %v4080, %v4078
        %v4127 = vpack.c.b16 %v4083, %v4081
        %v4128 = vpack.c.b16 %v4084, %v4082
        %v4129 = vpack.c.b16 %v4087, %v4085
        %v4130 = vpack.c.b16 %v4088, %v4086
        %v4131 = vpack.c.b16 %v4091, %v4089
        %v4132 = vpack.c.b16 %v4092, %v4090
        %v4133 = vpack.c.b16 %v4095, %v4093
        %v4134 = vpack.c.b16 %v4096, %v4094
        %v4135 = vpack.c.b16 %v4099, %v4097
        %v4136 = vpack.c.b16 %v4100, %v4098
        %v4137 = vpack.c.b16 %v4103, %v4101
        %v4138 = vpack.c.b16 %v4104, %v4102
        %v4139 = vpack.c.b16 %v4107, %v4105
        %v4140 = vpack.c.b16 %v4108, %v4106
        %4173 = vmatpush.bf16.xpose.msra.mxu0 %v4123
        %4174 = vmatpush.bf16.xpose.msra.mxu0 %v4121
        %4175 = vmatpush.bf16.xpose.msra.mxu0 %v4119
        %4176 = vmatpush.bf16.xpose.msra.mxu0 %v4117
        %4177 = vmatpush.bf16.xpose.msra.mxu0 %v4115
        %4178 = vmatpush.bf16.xpose.msra.mxu0 %v4113
        %4179 = vmatpush.bf16.xpose.msra.mxu0 %v4111
        %4180 = vmatpush.bf16.xpose.msra.mxu0 %v4109
        %4181 = vmatmul.bf16.gmra.mxu0 %v4009
        %v4182 = vpop.f32.mrf.mxu0
        %v4183 = vadd.f32 0.0, %v4182
        %v4184 = vpop.f32.mrf.mxu0
        %v4185 = vadd.f32 0.0, %v4184
        %4186 = vdwg.mxu0
        %4187 = vmatpush.bf16.xpose.msra.mxu0 %v4124
        %4188 = vmatpush.bf16.xpose.msra.mxu0 %v4122
        %4189 = vmatpush.bf16.xpose.msra.mxu0 %v4120
        %4190 = vmatpush.bf16.xpose.msra.mxu0 %v4118
        %4191 = vmatpush.bf16.xpose.msra.mxu0 %v4116
        %4192 = vmatpush.bf16.xpose.msra.mxu0 %v4114
        %4193 = vmatpush.bf16.xpose.msra.mxu0 %v4112
        %4194 = vmatpush.bf16.xpose.msra.mxu0 %v4110
        %4195 = vmatmul.bf16.gmra.mxu0 %v4010
        %v4196 = vpop.f32.mrf.mxu0
        %v4197 = vadd.f32 %v4183, %v4196
        %v4198 = vpop.f32.mrf.mxu0
        %v4199 = vadd.f32 %v4185, %v4198
        %4200 = vdwg.mxu0
        %4201 = vmatpush.bf16.xpose.msra.mxu0 %v4139
        %4202 = vmatpush.bf16.xpose.msra.mxu0 %v4137
        %4203 = vmatpush.bf16.xpose.msra.mxu0 %v4135
        %4204 = vmatpush.bf16.xpose.msra.mxu0 %v4133
        %4205 = vmatpush.bf16.xpose.msra.mxu0 %v4131
        %4206 = vmatpush.bf16.xpose.msra.mxu0 %v4129
        %4207 = vmatpush.bf16.xpose.msra.mxu0 %v4127
        %4208 = vmatpush.bf16.xpose.msra.mxu0 %v4125
        %4209 = vmatmul.bf16.gmra.mxu0 %v4009
        %v4210 = vpop.f32.mrf.mxu0
        %v4211 = vadd.f32 0.0, %v4210
        %v4212 = vpop.f32.mrf.mxu0
        %v4213 = vadd.f32 0.0, %v4212
        %4214 = vdwg.mxu0
        %4215 = vmatpush.bf16.xpose.msra.mxu0 %v4140
        %4216 = vmatpush.bf16.xpose.msra.mxu0 %v4138
        %4217 = vmatpush.bf16.xpose.msra.mxu0 %v4136
        %4218 = vmatpush.bf16.xpose.msra.mxu0 %v4134
        %4219 = vmatpush.bf16.xpose.msra.mxu0 %v4132
        %4220 = vmatpush.bf16.xpose.msra.mxu0 %v4130
        %4221 = vmatpush.bf16.xpose.msra.mxu0 %v4128
        %4222 = vmatpush.bf16.xpose.msra.mxu0 %v4126
        %4223 = vmatmul.bf16.gmra.mxu0 %v4010
        %v4224 = vpop.f32.mrf.mxu0
        %v4225 = vadd.f32 %v4211, %v4224
        %v4226 = vpop.f32.mrf.mxu0
        %v4227 = vadd.f32 %v4213, %v4226
        %4228 = vdwg.mxu0
        %v4231 = vunpack.c.l.b16 %v1252
        %v4232 = vunpack.c.h.b16 %v1252
        %v4233 = vunpack.c.l.b16 %v1253
        %v4234 = vunpack.c.h.b16 %v1253
        %v4235 = vpack.c.b16 %v4233, %v4231
        %v4236 = vpack.c.b16 %v4234, %v4232
        %v4271 = vunpack.c.l.b16 %v3907
        %v4272 = vunpack.c.h.b16 %v3907
        %v4273 = vunpack.c.l.b16 %v3908
        %v4274 = vunpack.c.h.b16 %v3908
        %v4275 = vunpack.c.l.b16 %v3909
        %v4276 = vunpack.c.h.b16 %v3909
        %v4277 = vunpack.c.l.b16 %v3910
        %v4278 = vunpack.c.h.b16 %v3910
        %v4279 = vunpack.c.l.b16 %v3911
        %v4280 = vunpack.c.h.b16 %v3911
        %v4281 = vunpack.c.l.b16 %v3912
        %v4282 = vunpack.c.h.b16 %v3912
        %v4283 = vunpack.c.l.b16 %v3913
        %v4284 = vunpack.c.h.b16 %v3913
        %v4285 = vunpack.c.l.b16 %v3914
        %v4286 = vunpack.c.h.b16 %v3914
        %v4287 = vunpack.c.l.b16 %v3915
        %v4288 = vunpack.c.h.b16 %v3915
        %v4289 = vunpack.c.l.b16 %v3916
        %v4290 = vunpack.c.h.b16 %v3916
        %v4291 = vunpack.c.l.b16 %v3917
        %v4292 = vunpack.c.h.b16 %v3917
        %v4293 = vunpack.c.l.b16 %v3918
        %v4294 = vunpack.c.h.b16 %v3918
        %v4295 = vunpack.c.l.b16 %v3919
        %v4296 = vunpack.c.h.b16 %v3919
        %v4297 = vunpack.c.l.b16 %v3920
        %v4298 = vunpack.c.h.b16 %v3920
        %v4299 = vunpack.c.l.b16 %v3921
        %v4300 = vunpack.c.h.b16 %v3921
        %v4301 = vunpack.c.l.b16 %v3922
        %v4302 = vunpack.c.h.b16 %v3922
        %v4303 = vunpack.c.l.b16 %v3923
        %v4304 = vunpack.c.h.b16 %v3923
        %v4305 = vunpack.c.l.b16 %v3924
        %v4306 = vunpack.c.h.b16 %v3924
        %v4307 = vunpack.c.l.b16 %v3925
        %v4308 = vunpack.c.h.b16 %v3925
        %v4309 = vunpack.c.l.b16 %v3926
        %v4310 = vunpack.c.h.b16 %v3926
        %v4311 = vunpack.c.l.b16 %v3927
        %v4312 = vunpack.c.h.b16 %v3927
        %v4313 = vunpack.c.l.b16 %v3928
        %v4314 = vunpack.c.h.b16 %v3928
        %v4315 = vunpack.c.l.b16 %v3929
        %v4316 = vunpack.c.h.b16 %v3929
        %v4317 = vunpack.c.l.b16 %v3930
        %v4318 = vunpack.c.h.b16 %v3930
        %v4319 = vunpack.c.l.b16 %v3931
        %v4320 = vunpack.c.h.b16 %v3931
        %v4321 = vunpack.c.l.b16 %v3932
        %v4322 = vunpack.c.h.b16 %v3932
        %v4323 = vunpack.c.l.b16 %v3933
        %v4324 = vunpack.c.h.b16 %v3933
        %v4325 = vunpack.c.l.b16 %v3934
        %v4326 = vunpack.c.h.b16 %v3934
        %v4327 = vunpack.c.l.b16 %v3935
        %v4328 = vunpack.c.h.b16 %v3935
        %v4329 = vunpack.c.l.b16 %v3936
        %v4330 = vunpack.c.h.b16 %v3936
        %v4331 = vunpack.c.l.b16 %v3937
        %v4332 = vunpack.c.h.b16 %v3937
        %v4333 = vunpack.c.l.b16 %v3938
        %v4334 = vunpack.c.h.b16 %v3938
        %v4335 = vpack.c.b16 %v4273, %v4271
        %v4336 = vpack.c.b16 %v4274, %v4272
        %v4337 = vpack.c.b16 %v4277, %v4275
        %v4338 = vpack.c.b16 %v4278, %v4276
        %v4339 = vpack.c.b16 %v4281, %v4279
        %v4340 = vpack.c.b16 %v4282, %v4280
        %v4341 = vpack.c.b16 %v4285, %v4283
        %v4342 = vpack.c.b16 %v4286, %v4284
        %v4343 = vpack.c.b16 %v4289, %v4287
        %v4344 = vpack.c.b16 %v4290, %v4288
        %v4345 = vpack.c.b16 %v4293, %v4291
        %v4346 = vpack.c.b16 %v4294, %v4292
        %v4347 = vpack.c.b16 %v4297, %v4295
        %v4348 = vpack.c.b16 %v4298, %v4296
        %v4349 = vpack.c.b16 %v4301, %v4299
        %v4350 = vpack.c.b16 %v4302, %v4300
        %v4351 = vpack.c.b16 %v4305, %v4303
        %v4352 = vpack.c.b16 %v4306, %v4304
        %v4353 = vpack.c.b16 %v4309, %v4307
        %v4354 = vpack.c.b16 %v4310, %v4308
        %v4355 = vpack.c.b16 %v4313, %v4311
        %v4356 = vpack.c.b16 %v4314, %v4312
        %v4357 = vpack.c.b16 %v4317, %v4315
        %v4358 = vpack.c.b16 %v4318, %v4316
        %v4359 = vpack.c.b16 %v4321, %v4319
        %v4360 = vpack.c.b16 %v4322, %v4320
        %v4361 = vpack.c.b16 %v4325, %v4323
        %v4362 = vpack.c.b16 %v4326, %v4324
        %v4363 = vpack.c.b16 %v4329, %v4327
        %v4364 = vpack.c.b16 %v4330, %v4328
        %v4365 = vpack.c.b16 %v4333, %v4331
        %v4366 = vpack.c.b16 %v4334, %v4332
        %4399 = vmatpush.bf16.xpose.msra.mxu0 %v4349
        %4400 = vmatpush.bf16.xpose.msra.mxu0 %v4347
        %4401 = vmatpush.bf16.xpose.msra.mxu0 %v4345
        %4402 = vmatpush.bf16.xpose.msra.mxu0 %v4343
        %4403 = vmatpush.bf16.xpose.msra.mxu0 %v4341
        %4404 = vmatpush.bf16.xpose.msra.mxu0 %v4339
        %4405 = vmatpush.bf16.xpose.msra.mxu0 %v4337
        %4406 = vmatpush.bf16.xpose.msra.mxu0 %v4335
        %4407 = vmatmul.bf16.gmra.mxu0 %v4235
        %v4408 = vpop.f32.mrf.mxu0
        %v4409 = vadd.f32 0.0, %v4408
        %v4410 = vpop.f32.mrf.mxu0
        %v4411 = vadd.f32 0.0, %v4410
        %4412 = vdwg.mxu0
        %4413 = vmatpush.bf16.xpose.msra.mxu0 %v4350
        %4414 = vmatpush.bf16.xpose.msra.mxu0 %v4348
        %4415 = vmatpush.bf16.xpose.msra.mxu0 %v4346
        %4416 = vmatpush.bf16.xpose.msra.mxu0 %v4344
        %4417 = vmatpush.bf16.xpose.msra.mxu0 %v4342
        %4418 = vmatpush.bf16.xpose.msra.mxu0 %v4340
        %4419 = vmatpush.bf16.xpose.msra.mxu0 %v4338
        %4420 = vmatpush.bf16.xpose.msra.mxu0 %v4336
        %4421 = vmatmul.bf16.gmra.mxu0 %v4236
        %v4422 = vpop.f32.mrf.mxu0
        %v4423 = vadd.f32 %v4409, %v4422
        %v4424 = vpop.f32.mrf.mxu0
        %v4425 = vadd.f32 %v4411, %v4424
        %4426 = vdwg.mxu0
        %4427 = vmatpush.bf16.xpose.msra.mxu0 %v4365
        %4428 = vmatpush.bf16.xpose.msra.mxu0 %v4363
        %4429 = vmatpush.bf16.xpose.msra.mxu0 %v4361
        %4430 = vmatpush.bf16.xpose.msra.mxu0 %v4359
        %4431 = vmatpush.bf16.xpose.msra.mxu0 %v4357
        %4432 = vmatpush.bf16.xpose.msra.mxu0 %v4355
        %4433 = vmatpush.bf16.xpose.msra.mxu0 %v4353
        %4434 = vmatpush.bf16.xpose.msra.mxu0 %v4351
        %4435 = vmatmul.bf16.gmra.mxu0 %v4235
        %v4436 = vpop.f32.mrf.mxu0
        %v4437 = vadd.f32 0.0, %v4436
        %v4438 = vpop.f32.mrf.mxu0
        %v4439 = vadd.f32 0.0, %v4438
        %4440 = vdwg.mxu0
        %4441 = vmatpush.bf16.xpose.msra.mxu0 %v4366
        %4442 = vmatpush.bf16.xpose.msra.mxu0 %v4364
        %4443 = vmatpush.bf16.xpose.msra.mxu0 %v4362
        %4444 = vmatpush.bf16.xpose.msra.mxu0 %v4360
        %4445 = vmatpush.bf16.xpose.msra.mxu0 %v4358
        %4446 = vmatpush.bf16.xpose.msra.mxu0 %v4356
        %4447 = vmatpush.bf16.xpose.msra.mxu0 %v4354
        %4448 = vmatpush.bf16.xpose.msra.mxu0 %v4352
        %4449 = vmatmul.bf16.gmra.mxu0 %v4236
        %v4450 = vpop.f32.mrf.mxu0
        %v4451 = vadd.f32 %v4437, %v4450
        %v4452 = vpop.f32.mrf.mxu0
        %v4453 = vadd.f32 %v4439, %v4452
        %4454 = vdwg.mxu0
        %v4457 = vunpack.c.l.b16 %v1254
        %v4458 = vunpack.c.h.b16 %v1254
        %v4459 = vunpack.c.l.b16 %v1255
        %v4460 = vunpack.c.h.b16 %v1255
        %v4461 = vpack.c.b16 %v4459, %v4457
        %v4462 = vpack.c.b16 %v4460, %v4458
        %v4497 = vunpack.c.l.b16 %v3939
        %v4498 = vunpack.c.h.b16 %v3939
        %v4499 = vunpack.c.l.b16 %v3940
        %v4500 = vunpack.c.h.b16 %v3940
        %v4501 = vunpack.c.l.b16 %v3941
        %v4502 = vunpack.c.h.b16 %v3941
        %v4503 = vunpack.c.l.b16 %v3942
        %v4504 = vunpack.c.h.b16 %v3942
        %v4505 = vunpack.c.l.b16 %v3943
        %v4506 = vunpack.c.h.b16 %v3943
        %v4507 = vunpack.c.l.b16 %v3944
        %v4508 = vunpack.c.h.b16 %v3944
        %v4509 = vunpack.c.l.b16 %v3945
        %v4510 = vunpack.c.h.b16 %v3945
        %v4511 = vunpack.c.l.b16 %v3946
        %v4512 = vunpack.c.h.b16 %v3946
        %v4513 = vunpack.c.l.b16 %v3947
        %v4514 = vunpack.c.h.b16 %v3947
        %v4515 = vunpack.c.l.b16 %v3948
        %v4516 = vunpack.c.h.b16 %v3948
        %v4517 = vunpack.c.l.b16 %v3949
        %v4518 = vunpack.c.h.b16 %v3949
        %v4519 = vunpack.c.l.b16 %v3950
        %v4520 = vunpack.c.h.b16 %v3950
        %v4521 = vunpack.c.l.b16 %v3951
        %v4522 = vunpack.c.h.b16 %v3951
        %v4523 = vunpack.c.l.b16 %v3952
        %v4524 = vunpack.c.h.b16 %v3952
        %v4525 = vunpack.c.l.b16 %v3953
        %v4526 = vunpack.c.h.b16 %v3953
        %v4527 = vunpack.c.l.b16 %v3954
        %v4528 = vunpack.c.h.b16 %v3954
        %v4529 = vunpack.c.l.b16 %v3955
        %v4530 = vunpack.c.h.b16 %v3955
        %v4531 = vunpack.c.l.b16 %v3956
        %v4532 = vunpack.c.h.b16 %v3956
        %v4533 = vunpack.c.l.b16 %v3957
        %v4534 = vunpack.c.h.b16 %v3957
        %v4535 = vunpack.c.l.b16 %v3958
        %v4536 = vunpack.c.h.b16 %v3958
        %v4537 = vunpack.c.l.b16 %v3959
        %v4538 = vunpack.c.h.b16 %v3959
        %v4539 = vunpack.c.l.b16 %v3960
        %v4540 = vunpack.c.h.b16 %v3960
        %v4541 = vunpack.c.l.b16 %v3961
        %v4542 = vunpack.c.h.b16 %v3961
        %v4543 = vunpack.c.l.b16 %v3962
        %v4544 = vunpack.c.h.b16 %v3962
        %v4545 = vunpack.c.l.b16 %v3963
        %v4546 = vunpack.c.h.b16 %v3963
        %v4547 = vunpack.c.l.b16 %v3964
        %v4548 = vunpack.c.h.b16 %v3964
        %v4549 = vunpack.c.l.b16 %v3965
        %v4550 = vunpack.c.h.b16 %v3965
        %v4551 = vunpack.c.l.b16 %v3966
        %v4552 = vunpack.c.h.b16 %v3966
        %v4553 = vunpack.c.l.b16 %v3967
        %v4554 = vunpack.c.h.b16 %v3967
        %v4555 = vunpack.c.l.b16 %v3968
        %v4556 = vunpack.c.h.b16 %v3968
        %v4557 = vunpack.c.l.b16 %v3969
        %v4558 = vunpack.c.h.b16 %v3969
        %v4559 = vunpack.c.l.b16 %v3970
        %v4560 = vunpack.c.h.b16 %v3970
        %v4561 = vpack.c.b16 %v4499, %v4497
        %v4562 = vpack.c.b16 %v4500, %v4498
        %v4563 = vpack.c.b16 %v4503, %v4501
        %v4564 = vpack.c.b16 %v4504, %v4502
        %v4565 = vpack.c.b16 %v4507, %v4505
        %v4566 = vpack.c.b16 %v4508, %v4506
        %v4567 = vpack.c.b16 %v4511, %v4509
        %v4568 = vpack.c.b16 %v4512, %v4510
        %v4569 = vpack.c.b16 %v4515, %v4513
        %v4570 = vpack.c.b16 %v4516, %v4514
        %v4571 = vpack.c.b16 %v4519, %v4517
        %v4572 = vpack.c.b16 %v4520, %v4518
        %v4573 = vpack.c.b16 %v4523, %v4521
        %v4574 = vpack.c.b16 %v4524, %v4522
        %v4575 = vpack.c.b16 %v4527, %v4525
        %v4576 = vpack.c.b16 %v4528, %v4526
        %v4577 = vpack.c.b16 %v4531, %v4529
        %v4578 = vpack.c.b16 %v4532, %v4530
        %v4579 = vpack.c.b16 %v4535, %v4533
        %v4580 = vpack.c.b16 %v4536, %v4534
        %v4581 = vpack.c.b16 %v4539, %v4537
        %v4582 = vpack.c.b16 %v4540, %v4538
        %v4583 = vpack.c.b16 %v4543, %v4541
        %v4584 = vpack.c.b16 %v4544, %v4542
        %v4585 = vpack.c.b16 %v4547, %v4545
        %v4586 = vpack.c.b16 %v4548, %v4546
        %v4587 = vpack.c.b16 %v4551, %v4549
        %v4588 = vpack.c.b16 %v4552, %v4550
        %v4589 = vpack.c.b16 %v4555, %v4553
        %v4590 = vpack.c.b16 %v4556, %v4554
        %v4591 = vpack.c.b16 %v4559, %v4557
        %v4592 = vpack.c.b16 %v4560, %v4558
        %4625 = vmatpush.bf16.xpose.msra.mxu0 %v4575
        %4626 = vmatpush.bf16.xpose.msra.mxu0 %v4573
        %4627 = vmatpush.bf16.xpose.msra.mxu0 %v4571
        %4628 = vmatpush.bf16.xpose.msra.mxu0 %v4569
        %4629 = vmatpush.bf16.xpose.msra.mxu0 %v4567
        %4630 = vmatpush.bf16.xpose.msra.mxu0 %v4565
        %4631 = vmatpush.bf16.xpose.msra.mxu0 %v4563
        %4632 = vmatpush.bf16.xpose.msra.mxu0 %v4561
        %4633 = vmatmul.bf16.gmra.mxu0 %v4461
        %v4634 = vpop.f32.mrf.mxu0
        %v4635 = vadd.f32 0.0, %v4634
        %v4636 = vpop.f32.mrf.mxu0
        %v4637 = vadd.f32 0.0, %v4636
        %4638 = vdwg.mxu0
        %4639 = vmatpush.bf16.xpose.msra.mxu0 %v4576
        %4640 = vmatpush.bf16.xpose.msra.mxu0 %v4574
        %4641 = vmatpush.bf16.xpose.msra.mxu0 %v4572
        %4642 = vmatpush.bf16.xpose.msra.mxu0 %v4570
        %4643 = vmatpush.bf16.xpose.msra.mxu0 %v4568
        %4644 = vmatpush.bf16.xpose.msra.mxu0 %v4566
        %4645 = vmatpush.bf16.xpose.msra.mxu0 %v4564
        %4646 = vmatpush.bf16.xpose.msra.mxu0 %v4562
        %4647 = vmatmul.bf16.gmra.mxu0 %v4462
        %v4648 = vpop.f32.mrf.mxu0
        %v4649 = vadd.f32 %v4635, %v4648
        %v4650 = vpop.f32.mrf.mxu0
        %v4651 = vadd.f32 %v4637, %v4650
        %4652 = vdwg.mxu0
        %4653 = vmatpush.bf16.xpose.msra.mxu0 %v4591
        %4654 = vmatpush.bf16.xpose.msra.mxu0 %v4589
        %4655 = vmatpush.bf16.xpose.msra.mxu0 %v4587
        %4656 = vmatpush.bf16.xpose.msra.mxu0 %v4585
        %4657 = vmatpush.bf16.xpose.msra.mxu0 %v4583
        %4658 = vmatpush.bf16.xpose.msra.mxu0 %v4581
        %4659 = vmatpush.bf16.xpose.msra.mxu0 %v4579
        %4660 = vmatpush.bf16.xpose.msra.mxu0 %v4577
        %4661 = vmatmul.bf16.gmra.mxu0 %v4461
        %v4662 = vpop.f32.mrf.mxu0
        %v4663 = vadd.f32 0.0, %v4662
        %v4664 = vpop.f32.mrf.mxu0
        %v4665 = vadd.f32 0.0, %v4664
        %4666 = vdwg.mxu0
        %4667 = vmatpush.bf16.xpose.msra.mxu0 %v4592
        %4668 = vmatpush.bf16.xpose.msra.mxu0 %v4590
        %4669 = vmatpush.bf16.xpose.msra.mxu0 %v4588
        %4670 = vmatpush.bf16.xpose.msra.mxu0 %v4586
        %4671 = vmatpush.bf16.xpose.msra.mxu0 %v4584
        %4672 = vmatpush.bf16.xpose.msra.mxu0 %v4582
        %4673 = vmatpush.bf16.xpose.msra.mxu0 %v4580
        %4674 = vmatpush.bf16.xpose.msra.mxu0 %v4578
        %4675 = vmatmul.bf16.gmra.mxu0 %v4462
        %v4676 = vpop.f32.mrf.mxu0
        %v4677 = vadd.f32 %v4663, %v4676
        %v4678 = vpop.f32.mrf.mxu0
        %v4679 = vadd.f32 %v4665, %v4678
        %4680 = vdwg.mxu0
        %v4683 = vunpack.c.l.b16 %v1256
        %v4684 = vunpack.c.h.b16 %v1256
        %v4685 = vunpack.c.l.b16 %v1257
        %v4686 = vunpack.c.h.b16 %v1257
        %v4687 = vpack.c.b16 %v4685, %v4683
        %v4688 = vpack.c.b16 %v4686, %v4684
        %v4723 = vunpack.c.l.b16 %v3971
        %v4724 = vunpack.c.h.b16 %v3971
        %v4725 = vunpack.c.l.b16 %v3972
        %v4726 = vunpack.c.h.b16 %v3972
        %v4727 = vunpack.c.l.b16 %v3973
        %v4728 = vunpack.c.h.b16 %v3973
        %v4729 = vunpack.c.l.b16 %v3974
        %v4730 = vunpack.c.h.b16 %v3974
        %v4731 = vunpack.c.l.b16 %v3975
        %v4732 = vunpack.c.h.b16 %v3975
        %v4733 = vunpack.c.l.b16 %v3976
        %v4734 = vunpack.c.h.b16 %v3976
        %v4735 = vunpack.c.l.b16 %v3977
        %v4736 = vunpack.c.h.b16 %v3977
        %v4737 = vunpack.c.l.b16 %v3978
        %v4738 = vunpack.c.h.b16 %v3978
        %v4739 = vunpack.c.l.b16 %v3979
        %v4740 = vunpack.c.h.b16 %v3979
        %v4741 = vunpack.c.l.b16 %v3980
        %v4742 = vunpack.c.h.b16 %v3980
        %v4743 = vunpack.c.l.b16 %v3981
        %v4744 = vunpack.c.h.b16 %v3981
        %v4745 = vunpack.c.l.b16 %v3982
        %v4746 = vunpack.c.h.b16 %v3982
        %v4747 = vunpack.c.l.b16 %v3983
        %v4748 = vunpack.c.h.b16 %v3983
        %v4749 = vunpack.c.l.b16 %v3984
        %v4750 = vunpack.c.h.b16 %v3984
        %v4751 = vunpack.c.l.b16 %v3985
        %v4752 = vunpack.c.h.b16 %v3985
        %v4753 = vunpack.c.l.b16 %v3986
        %v4754 = vunpack.c.h.b16 %v3986
        %v4755 = vunpack.c.l.b16 %v3987
        %v4756 = vunpack.c.h.b16 %v3987
        %v4757 = vunpack.c.l.b16 %v3988
        %v4758 = vunpack.c.h.b16 %v3988
        %v4759 = vunpack.c.l.b16 %v3989
        %v4760 = vunpack.c.h.b16 %v3989
        %v4761 = vunpack.c.l.b16 %v3990
        %v4762 = vunpack.c.h.b16 %v3990
        %v4763 = vunpack.c.l.b16 %v3991
        %v4764 = vunpack.c.h.b16 %v3991
        %v4765 = vunpack.c.l.b16 %v3992
        %v4766 = vunpack.c.h.b16 %v3992
        %v4767 = vunpack.c.l.b16 %v3993
        %v4768 = vunpack.c.h.b16 %v3993
        %v4769 = vunpack.c.l.b16 %v3994
        %v4770 = vunpack.c.h.b16 %v3994
        %v4771 = vunpack.c.l.b16 %v3995
        %v4772 = vunpack.c.h.b16 %v3995
        %v4773 = vunpack.c.l.b16 %v3996
        %v4774 = vunpack.c.h.b16 %v3996
        %v4775 = vunpack.c.l.b16 %v3997
        %v4776 = vunpack.c.h.b16 %v3997
        %v4777 = vunpack.c.l.b16 %v3998
        %v4778 = vunpack.c.h.b16 %v3998
        %v4779 = vunpack.c.l.b16 %v3999
        %v4780 = vunpack.c.h.b16 %v3999
        %v4781 = vunpack.c.l.b16 %v4000
        %v4782 = vunpack.c.h.b16 %v4000
        %v4783 = vunpack.c.l.b16 %v4001
        %v4784 = vunpack.c.h.b16 %v4001
        %v4785 = vunpack.c.l.b16 %v4002
        %v4786 = vunpack.c.h.b16 %v4002
        %v4787 = vpack.c.b16 %v4725, %v4723
        %v4788 = vpack.c.b16 %v4726, %v4724
        %v4789 = vpack.c.b16 %v4729, %v4727
        %v4790 = vpack.c.b16 %v4730, %v4728
        %v4791 = vpack.c.b16 %v4733, %v4731
        %v4792 = vpack.c.b16 %v4734, %v4732
        %v4793 = vpack.c.b16 %v4737, %v4735
        %v4794 = vpack.c.b16 %v4738, %v4736
        %v4795 = vpack.c.b16 %v4741, %v4739
        %v4796 = vpack.c.b16 %v4742, %v4740
        %v4797 = vpack.c.b16 %v4745, %v4743
        %v4798 = vpack.c.b16 %v4746, %v4744
        %v4799 = vpack.c.b16 %v4749, %v4747
        %v4800 = vpack.c.b16 %v4750, %v4748
        %v4801 = vpack.c.b16 %v4753, %v4751
        %v4802 = vpack.c.b16 %v4754, %v4752
        %v4803 = vpack.c.b16 %v4757, %v4755
        %v4804 = vpack.c.b16 %v4758, %v4756
        %v4805 = vpack.c.b16 %v4761, %v4759
        %v4806 = vpack.c.b16 %v4762, %v4760
        %v4807 = vpack.c.b16 %v4765, %v4763
        %v4808 = vpack.c.b16 %v4766, %v4764
        %v4809 = vpack.c.b16 %v4769, %v4767
        %v4810 = vpack.c.b16 %v4770, %v4768
        %v4811 = vpack.c.b16 %v4773, %v4771
        %v4812 = vpack.c.b16 %v4774, %v4772
        %v4813 = vpack.c.b16 %v4777, %v4775
        %v4814 = vpack.c.b16 %v4778, %v4776
        %v4815 = vpack.c.b16 %v4781, %v4779
        %v4816 = vpack.c.b16 %v4782, %v4780
        %v4817 = vpack.c.b16 %v4785, %v4783
        %v4818 = vpack.c.b16 %v4786, %v4784
        %4851 = vmatpush.bf16.xpose.msra.mxu0 %v4801
        %4852 = vmatpush.bf16.xpose.msra.mxu0 %v4799
        %4853 = vmatpush.bf16.xpose.msra.mxu0 %v4797
        %4854 = vmatpush.bf16.xpose.msra.mxu0 %v4795
        %4855 = vmatpush.bf16.xpose.msra.mxu0 %v4793
        %4856 = vmatpush.bf16.xpose.msra.mxu0 %v4791
        %4857 = vmatpush.bf16.xpose.msra.mxu0 %v4789
        %4858 = vmatpush.bf16.xpose.msra.mxu0 %v4787
        %4859 = vmatmul.bf16.gmra.mxu0 %v4687
        %v4860 = vpop.f32.mrf.mxu0
        %v4861 = vadd.f32 0.0, %v4860
        %v4862 = vpop.f32.mrf.mxu0
        %v4863 = vadd.f32 0.0, %v4862
        %4864 = vdwg.mxu0
        %4865 = vmatpush.bf16.xpose.msra.mxu0 %v4802
        %4866 = vmatpush.bf16.xpose.msra.mxu0 %v4800
        %4867 = vmatpush.bf16.xpose.msra.mxu0 %v4798
        %4868 = vmatpush.bf16.xpose.msra.mxu0 %v4796
        %4869 = vmatpush.bf16.xpose.msra.mxu0 %v4794
        %4870 = vmatpush.bf16.xpose.msra.mxu0 %v4792
        %4871 = vmatpush.bf16.xpose.msra.mxu0 %v4790
        %4872 = vmatpush.bf16.xpose.msra.mxu0 %v4788
        %4873 = vmatmul.bf16.gmra.mxu0 %v4688
        %v4874 = vpop.f32.mrf.mxu0
        %v4875 = vadd.f32 %v4861, %v4874
        %v4876 = vpop.f32.mrf.mxu0
        %v4877 = vadd.f32 %v4863, %v4876
        %4878 = vdwg.mxu0
        %4879 = vmatpush.bf16.xpose.msra.mxu0 %v4817
        %4880 = vmatpush.bf16.xpose.msra.mxu0 %v4815
        %4881 = vmatpush.bf16.xpose.msra.mxu0 %v4813
        %4882 = vmatpush.bf16.xpose.msra.mxu0 %v4811
        %4883 = vmatpush.bf16.xpose.msra.mxu0 %v4809
        %4884 = vmatpush.bf16.xpose.msra.mxu0 %v4807
        %4885 = vmatpush.bf16.xpose.msra.mxu0 %v4805
        %4886 = vmatpush.bf16.xpose.msra.mxu0 %v4803
        %4887 = vmatmul.bf16.gmra.mxu0 %v4687
        %v4888 = vpop.f32.mrf.mxu0
        %v4889 = vadd.f32 0.0, %v4888
        %v4890 = vpop.f32.mrf.mxu0
        %v4891 = vadd.f32 0.0, %v4890
        %4892 = vdwg.mxu0
        %4893 = vmatpush.bf16.xpose.msra.mxu0 %v4818
        %4894 = vmatpush.bf16.xpose.msra.mxu0 %v4816
        %4895 = vmatpush.bf16.xpose.msra.mxu0 %v4814
        %4896 = vmatpush.bf16.xpose.msra.mxu0 %v4812
        %4897 = vmatpush.bf16.xpose.msra.mxu0 %v4810
        %4898 = vmatpush.bf16.xpose.msra.mxu0 %v4808
        %4899 = vmatpush.bf16.xpose.msra.mxu0 %v4806
        %4900 = vmatpush.bf16.xpose.msra.mxu0 %v4804
        %4901 = vmatmul.bf16.gmra.mxu0 %v4688
        %v4902 = vpop.f32.mrf.mxu0
        %v4903 = vadd.f32 %v4889, %v4902
        %v4904 = vpop.f32.mrf.mxu0
        %v4905 = vadd.f32 %v4891, %v4904
        %4906 = vdwg.mxu0
        %v4907 = vrcp.pop %v3493
        %v4908 = vrcp.pop %v3496
        %v4909 = vrcp.pop %v3499
        %v4910 = vrcp.pop %v3502
        %v4911 = vrcp.pop %v3505
        %v4912 = vrcp.pop %v3508
        %v4913 = vrcp.pop %v3511
        %v4914 = vrcp.pop %v3514
        %v4915 = vrcp.pop %v3517
        %v4916 = vrcp.pop %v3520
        %v4917 = vrcp.pop %v3523
        %v4918 = vrcp.pop %v3526
        %v4919 = vrcp.pop %v3529
        %v4920 = vrcp.pop %v3532
        %v4921 = vrcp.pop %v3535
        %v4922 = vrcp.pop %v3538
        %v4923 = vrcp.pop %v3541
        %v4924 = vrcp.pop %v3544
        %v4925 = vrcp.pop %v3547
        %v4926 = vrcp.pop %v3550
        %v4927 = vrcp.pop %v3553
        %v4928 = vrcp.pop %v3556
        %v4929 = vrcp.pop %v3559
        %v4930 = vrcp.pop %v3562
        %v4931 = vrcp.pop %v3565
        %v4932 = vrcp.pop %v3568
        %v4933 = vrcp.pop %v3571
        %v4934 = vrcp.pop %v3574
        %v4935 = vrcp.pop %v3577
        %v4936 = vrcp.pop %v3580
        %v4937 = vrcp.pop %v3583
        %v4938 = vrcp.pop %v3586
        %v4939 = vrcp.pop %v3589
        %v4940 = vrcp.pop %v3592
        %v4941 = vrcp.pop %v3595
        %v4942 = vrcp.pop %v3598
        %v4943 = vrcp.pop %v3601
        %v4944 = vrcp.pop %v3604
        %v4945 = vrcp.pop %v3607
        %v4946 = vrcp.pop %v3610
        %v4947 = vrcp.pop %v3613
        %v4948 = vrcp.pop %v3616
        %v4949 = vrcp.pop %v3619
        %v4950 = vrcp.pop %v3622
        %v4951 = vrcp.pop %v3625
        %v4952 = vrcp.pop %v3628
        %v4953 = vrcp.pop %v3631
        %v4954 = vrcp.pop %v3634
        %v4955 = vrcp.pop %v3637
        %v4956 = vrcp.pop %v3640
        %v4957 = vrcp.pop %v3643
        %v4958 = vrcp.pop %v3646
        %v4959 = vrcp.pop %v3649
        %v4960 = vrcp.pop %v3652
        %v4961 = vrcp.pop %v3655
        %v4962 = vrcp.pop %v3658
        %v4963 = vrcp.pop %v3661
        %v4964 = vrcp.pop %v3664
        %v4965 = vrcp.pop %v3667
        %v4966 = vrcp.pop %v3670
        %v4967 = vrcp.pop %v3673
        %v4968 = vrcp.pop %v3676
        %v4969 = vrcp.pop %v3679
        %v4970 = vrcp.pop %v3682
        %v4971 = vrcp.pop %v3685
        %v4972 = vrcp.pop %v3688
        %v4973 = vrcp.pop %v3691
        %v4974 = vrcp.pop %v3694
        %v4975 = vrcp.pop %v3697
        %v4976 = vrcp.pop %v3700
        %v4977 = vrcp.pop %v3703
        %v4978 = vrcp.pop %v3706
        %v4979 = vrcp.pop %v3709
        %v4980 = vrcp.pop %v3712
        %v4981 = vrcp.pop %v3715
        %v4982 = vrcp.pop %v3718
        %v4983 = vrcp.pop %v3721
        %v4984 = vrcp.pop %v3724
        %v4985 = vrcp.pop %v3727
        %v4986 = vrcp.pop %v3730
        %v4987 = vrcp.pop %v3733
        %v4988 = vrcp.pop %v3736
        %v4989 = vrcp.pop %v3739
        %v4990 = vrcp.pop %v3742
        %v4991 = vrcp.pop %v3745
        %v4992 = vrcp.pop %v3748
        %v4993 = vrcp.pop %v3751
        %v4994 = vrcp.pop %v3754
        %v4995 = vrcp.pop %v3757
        %v4996 = vrcp.pop %v3760
        %v4997 = vrcp.pop %v3763
        %v4998 = vrcp.pop %v3766
        %v4999 = vrcp.pop %v3769
        %v5000 = vrcp.pop %v3772
        %v5001 = vrcp.pop %v3775
        %v5002 = vrcp.pop %v3778
        %v5003 = vrcp.pop %v3781
        %v5004 = vrcp.pop %v3784
        %v5005 = vrcp.pop %v3787
        %v5006 = vrcp.pop %v3790
        %v5007 = vrcp.pop %v3793
        %v5008 = vrcp.pop %v3796
        %v5009 = vrcp.pop %v3799
        %v5010 = vrcp.pop %v3802
        %v5011 = vrcp.pop %v3805
        %v5012 = vrcp.pop %v3808
        %v5013 = vrcp.pop %v3811
        %v5014 = vrcp.pop %v3814
        %v5015 = vrcp.pop %v3817
        %v5016 = vrcp.pop %v3820
        %v5017 = vrcp.pop %v3823
        %v5018 = vrcp.pop %v3826
        %v5019 = vrcp.pop %v3829
        %v5020 = vrcp.pop %v3832
        %v5021 = vrcp.pop %v3835
        %v5022 = vrcp.pop %v3838
        %v5023 = vrcp.pop %v3841
        %v5024 = vrcp.pop %v3844
        %v5025 = vrcp.pop %v3847
        %v5026 = vrcp.pop %v3850
        %v5027 = vrcp.pop %v3853
        %v5028 = vrcp.pop %v3856
        %v5029 = vrcp.pop %v3859
        %v5030 = vrcp.pop %v3862
        %v5031 = vrcp.pop %v3865
        %v5032 = vrcp.pop %v3868
        %v5033 = vrcp.pop %v3871
        %v5034 = vrcp.pop %v3874
        %v5163 = vlaneseq
        %v5164 = vand.u32 %v5163, 127
        %v5165 = vperm.slane %v4907, %v5164
        %v5166 = vadd.s32 %v5164, 4294967288
        %v5167 = vperm.slane %v4908, %v5166
        %vm5168 = vcmask 130112
        %v5169 = vsel %vm5168, %v5167, %v5165
        %v5170 = vadd.s32 %v5164, 4294967280
        %v5171 = vperm.slane %v4909, %v5170
        %vm5172 = vcmask 195712
        %v5173 = vsel %vm5172, %v5171, %v5169
        %v5174 = vadd.s32 %v5164, 4294967272
        %v5175 = vperm.slane %v4910, %v5174
        %vm5176 = vcmask 261312
        %v5177 = vsel %vm5176, %v5175, %v5173
        %v5178 = vadd.s32 %v5164, 4294967264
        %v5179 = vperm.slane %v4911, %v5178
        %vm5180 = vcmask 326912
        %v5181 = vsel %vm5180, %v5179, %v5177
        %v5182 = vadd.s32 %v5164, 4294967256
        %v5183 = vperm.slane %v4912, %v5182
        %vm5184 = vcmask 392512
        %v5185 = vsel %vm5184, %v5183, %v5181
        %v5186 = vadd.s32 %v5164, 4294967248
        %v5187 = vperm.slane %v4913, %v5186
        %vm5188 = vcmask 458112
        %v5189 = vsel %vm5188, %v5187, %v5185
        %v5190 = vadd.s32 %v5164, 4294967240
        %v5191 = vperm.slane %v4914, %v5190
        %vm5192 = vcmask 523712
        %v5193 = vsel %vm5192, %v5191, %v5189
        %v5194 = vadd.s32 %v5164, 4294967232
        %v5195 = vperm.slane %v4915, %v5194
        %vm5196 = vcmask 589312
        %v5197 = vsel %vm5196, %v5195, %v5193
        %v5198 = vadd.s32 %v5164, 4294967224
        %v5199 = vperm.slane %v4916, %v5198
        %vm5200 = vcmask 654912
        %v5201 = vsel %vm5200, %v5199, %v5197
        %v5202 = vadd.s32 %v5164, 4294967216
        %v5203 = vperm.slane %v4917, %v5202
        %vm5204 = vcmask 720512
        %v5205 = vsel %vm5204, %v5203, %v5201
        %v5206 = vadd.s32 %v5164, 4294967208
        %v5207 = vperm.slane %v4918, %v5206
        %vm5208 = vcmask 786112
        %v5209 = vsel %vm5208, %v5207, %v5205
        %v5210 = vadd.s32 %v5164, 4294967200
        %v5211 = vperm.slane %v4919, %v5210
        %vm5212 = vcmask 851712
        %v5213 = vsel %vm5212, %v5211, %v5209
        %v5214 = vadd.s32 %v5164, 4294967192
        %v5215 = vperm.slane %v4920, %v5214
        %vm5216 = vcmask 917312
        %v5217 = vsel %vm5216, %v5215, %v5213
        %v5218 = vadd.s32 %v5164, 4294967184
        %v5219 = vperm.slane %v4921, %v5218
        %vm5220 = vcmask 982912
        %v5221 = vsel %vm5220, %v5219, %v5217
        %v5222 = vadd.s32 %v5164, 4294967176
        %v5223 = vperm.slane %v4922, %v5222
        %vm5224 = vcmask 1048512
        %v5225 = vsel %vm5224, %v5223, %v5221
        %v5226 = vperm.slane %v4923, %v5164
        %v5227 = vperm.slane %v4924, %v5166
        %v5228 = vsel %vm5168, %v5227, %v5226
        %v5229 = vperm.slane %v4925, %v5170
        %v5230 = vsel %vm5172, %v5229, %v5228
        %v5231 = vperm.slane %v4926, %v5174
        %v5232 = vsel %vm5176, %v5231, %v5230
        %v5233 = vperm.slane %v4927, %v5178
        %v5234 = vsel %vm5180, %v5233, %v5232
        %v5235 = vperm.slane %v4928, %v5182
        %v5236 = vsel %vm5184, %v5235, %v5234
        %v5237 = vperm.slane %v4929, %v5186
        %v5238 = vsel %vm5188, %v5237, %v5236
        %v5239 = vperm.slane %v4930, %v5190
        %v5240 = vsel %vm5192, %v5239, %v5238
        %v5241 = vperm.slane %v4931, %v5194
        %v5242 = vsel %vm5196, %v5241, %v5240
        %v5243 = vperm.slane %v4932, %v5198
        %v5244 = vsel %vm5200, %v5243, %v5242
        %v5245 = vperm.slane %v4933, %v5202
        %v5246 = vsel %vm5204, %v5245, %v5244
        %v5247 = vperm.slane %v4934, %v5206
        %v5248 = vsel %vm5208, %v5247, %v5246
        %v5249 = vperm.slane %v4935, %v5210
        %v5250 = vsel %vm5212, %v5249, %v5248
        %v5251 = vperm.slane %v4936, %v5214
        %v5252 = vsel %vm5216, %v5251, %v5250
        %v5253 = vperm.slane %v4937, %v5218
        %v5254 = vsel %vm5220, %v5253, %v5252
        %v5255 = vperm.slane %v4938, %v5222
        %v5256 = vsel %vm5224, %v5255, %v5254
        %v5257 = vperm.slane %v4939, %v5164
        %v5258 = vperm.slane %v4940, %v5166
        %v5259 = vsel %vm5168, %v5258, %v5257
        %v5260 = vperm.slane %v4941, %v5170
        %v5261 = vsel %vm5172, %v5260, %v5259
        %v5262 = vperm.slane %v4942, %v5174
        %v5263 = vsel %vm5176, %v5262, %v5261
        %v5264 = vperm.slane %v4943, %v5178
        %v5265 = vsel %vm5180, %v5264, %v5263
        %v5266 = vperm.slane %v4944, %v5182
        %v5267 = vsel %vm5184, %v5266, %v5265
        %v5268 = vperm.slane %v4945, %v5186
        %v5269 = vsel %vm5188, %v5268, %v5267
        %v5270 = vperm.slane %v4946, %v5190
        %v5271 = vsel %vm5192, %v5270, %v5269
        %v5272 = vperm.slane %v4947, %v5194
        %v5273 = vsel %vm5196, %v5272, %v5271
        %v5274 = vperm.slane %v4948, %v5198
        %v5275 = vsel %vm5200, %v5274, %v5273
        %v5276 = vperm.slane %v4949, %v5202
        %v5277 = vsel %vm5204, %v5276, %v5275
        %v5278 = vperm.slane %v4950, %v5206
        %v5279 = vsel %vm5208, %v5278, %v5277
        %v5280 = vperm.slane %v4951, %v5210
        %v5281 = vsel %vm5212, %v5280, %v5279
        %v5282 = vperm.slane %v4952, %v5214
        %v5283 = vsel %vm5216, %v5282, %v5281
        %v5284 = vperm.slane %v4953, %v5218
        %v5285 = vsel %vm5220, %v5284, %v5283
        %v5286 = vperm.slane %v4954, %v5222
        %v5287 = vsel %vm5224, %v5286, %v5285
        %v5288 = vperm.slane %v4955, %v5164
        %v5289 = vperm.slane %v4956, %v5166
        %v5290 = vsel %vm5168, %v5289, %v5288
        %v5291 = vperm.slane %v4957, %v5170
        %v5292 = vsel %vm5172, %v5291, %v5290
        %v5293 = vperm.slane %v4958, %v5174
        %v5294 = vsel %vm5176, %v5293, %v5292
        %v5295 = vperm.slane %v4959, %v5178
        %v5296 = vsel %vm5180, %v5295, %v5294
        %v5297 = vperm.slane %v4960, %v5182
        %v5298 = vsel %vm5184, %v5297, %v5296
        %v5299 = vperm.slane %v4961, %v5186
        %v5300 = vsel %vm5188, %v5299, %v5298
        %v5301 = vperm.slane %v4962, %v5190
        %v5302 = vsel %vm5192, %v5301, %v5300
        %v5303 = vperm.slane %v4963, %v5194
        %v5304 = vsel %vm5196, %v5303, %v5302
        %v5305 = vperm.slane %v4964, %v5198
        %v5306 = vsel %vm5200, %v5305, %v5304
        %v5307 = vperm.slane %v4965, %v5202
        %v5308 = vsel %vm5204, %v5307, %v5306
        %v5309 = vperm.slane %v4966, %v5206
        %v5310 = vsel %vm5208, %v5309, %v5308
        %v5311 = vperm.slane %v4967, %v5210
        %v5312 = vsel %vm5212, %v5311, %v5310
        %v5313 = vperm.slane %v4968, %v5214
        %v5314 = vsel %vm5216, %v5313, %v5312
        %v5315 = vperm.slane %v4969, %v5218
        %v5316 = vsel %vm5220, %v5315, %v5314
        %v5317 = vperm.slane %v4970, %v5222
        %v5318 = vsel %vm5224, %v5317, %v5316
        %v5319 = vperm.slane %v4971, %v5164
        %v5320 = vperm.slane %v4972, %v5166
        %v5321 = vsel %vm5168, %v5320, %v5319
        %v5322 = vperm.slane %v4973, %v5170
        %v5323 = vsel %vm5172, %v5322, %v5321
        %v5324 = vperm.slane %v4974, %v5174
        %v5325 = vsel %vm5176, %v5324, %v5323
        %v5326 = vperm.slane %v4975, %v5178
        %v5327 = vsel %vm5180, %v5326, %v5325
        %v5328 = vperm.slane %v4976, %v5182
        %v5329 = vsel %vm5184, %v5328, %v5327
        %v5330 = vperm.slane %v4977, %v5186
        %v5331 = vsel %vm5188, %v5330, %v5329
        %v5332 = vperm.slane %v4978, %v5190
        %v5333 = vsel %vm5192, %v5332, %v5331
        %v5334 = vperm.slane %v4979, %v5194
        %v5335 = vsel %vm5196, %v5334, %v5333
        %v5336 = vperm.slane %v4980, %v5198
        %v5337 = vsel %vm5200, %v5336, %v5335
        %v5338 = vperm.slane %v4981, %v5202
        %v5339 = vsel %vm5204, %v5338, %v5337
        %v5340 = vperm.slane %v4982, %v5206
        %v5341 = vsel %vm5208, %v5340, %v5339
        %v5342 = vperm.slane %v4983, %v5210
        %v5343 = vsel %vm5212, %v5342, %v5341
        %v5344 = vperm.slane %v4984, %v5214
        %v5345 = vsel %vm5216, %v5344, %v5343
        %v5346 = vperm.slane %v4985, %v5218
        %v5347 = vsel %vm5220, %v5346, %v5345
        %v5348 = vperm.slane %v4986, %v5222
        %v5349 = vsel %vm5224, %v5348, %v5347
        %v5350 = vperm.slane %v4987, %v5164
        %v5351 = vperm.slane %v4988, %v5166
        %v5352 = vsel %vm5168, %v5351, %v5350
        %v5353 = vperm.slane %v4989, %v5170
        %v5354 = vsel %vm5172, %v5353, %v5352
        %v5355 = vperm.slane %v4990, %v5174
        %v5356 = vsel %vm5176, %v5355, %v5354
        %v5357 = vperm.slane %v4991, %v5178
        %v5358 = vsel %vm5180, %v5357, %v5356
        %v5359 = vperm.slane %v4992, %v5182
        %v5360 = vsel %vm5184, %v5359, %v5358
        %v5361 = vperm.slane %v4993, %v5186
        %v5362 = vsel %vm5188, %v5361, %v5360
        %v5363 = vperm.slane %v4994, %v5190
        %v5364 = vsel %vm5192, %v5363, %v5362
        %v5365 = vperm.slane %v4995, %v5194
        %v5366 = vsel %vm5196, %v5365, %v5364
        %v5367 = vperm.slane %v4996, %v5198
        %v5368 = vsel %vm5200, %v5367, %v5366
        %v5369 = vperm.slane %v4997, %v5202
        %v5370 = vsel %vm5204, %v5369, %v5368
        %v5371 = vperm.slane %v4998, %v5206
        %v5372 = vsel %vm5208, %v5371, %v5370
        %v5373 = vperm.slane %v4999, %v5210
        %v5374 = vsel %vm5212, %v5373, %v5372
        %v5375 = vperm.slane %v5000, %v5214
        %v5376 = vsel %vm5216, %v5375, %v5374
        %v5377 = vperm.slane %v5001, %v5218
        %v5378 = vsel %vm5220, %v5377, %v5376
        %v5379 = vperm.slane %v5002, %v5222
        %v5380 = vsel %vm5224, %v5379, %v5378
        %v5381 = vperm.slane %v5003, %v5164
        %v5382 = vperm.slane %v5004, %v5166
        %v5383 = vsel %vm5168, %v5382, %v5381
        %v5384 = vperm.slane %v5005, %v5170
        %v5385 = vsel %vm5172, %v5384, %v5383
        %v5386 = vperm.slane %v5006, %v5174
        %v5387 = vsel %vm5176, %v5386, %v5385
        %v5388 = vperm.slane %v5007, %v5178
        %v5389 = vsel %vm5180, %v5388, %v5387
        %v5390 = vperm.slane %v5008, %v5182
        %v5391 = vsel %vm5184, %v5390, %v5389
        %v5392 = vperm.slane %v5009, %v5186
        %v5393 = vsel %vm5188, %v5392, %v5391
        %v5394 = vperm.slane %v5010, %v5190
        %v5395 = vsel %vm5192, %v5394, %v5393
        %v5396 = vperm.slane %v5011, %v5194
        %v5397 = vsel %vm5196, %v5396, %v5395
        %v5398 = vperm.slane %v5012, %v5198
        %v5399 = vsel %vm5200, %v5398, %v5397
        %v5400 = vperm.slane %v5013, %v5202
        %v5401 = vsel %vm5204, %v5400, %v5399
        %v5402 = vperm.slane %v5014, %v5206
        %v5403 = vsel %vm5208, %v5402, %v5401
        %v5404 = vperm.slane %v5015, %v5210
        %v5405 = vsel %vm5212, %v5404, %v5403
        %v5406 = vperm.slane %v5016, %v5214
        %v5407 = vsel %vm5216, %v5406, %v5405
        %v5408 = vperm.slane %v5017, %v5218
        %v5409 = vsel %vm5220, %v5408, %v5407
        %v5410 = vperm.slane %v5018, %v5222
        %v5411 = vsel %vm5224, %v5410, %v5409
        %v5412 = vperm.slane %v5019, %v5164
        %v5413 = vperm.slane %v5020, %v5166
        %v5414 = vsel %vm5168, %v5413, %v5412
        %v5415 = vperm.slane %v5021, %v5170
        %v5416 = vsel %vm5172, %v5415, %v5414
        %v5417 = vperm.slane %v5022, %v5174
        %v5418 = vsel %vm5176, %v5417, %v5416
        %v5419 = vperm.slane %v5023, %v5178
        %v5420 = vsel %vm5180, %v5419, %v5418
        %v5421 = vperm.slane %v5024, %v5182
        %v5422 = vsel %vm5184, %v5421, %v5420
        %v5423 = vperm.slane %v5025, %v5186
        %v5424 = vsel %vm5188, %v5423, %v5422
        %v5425 = vperm.slane %v5026, %v5190
        %v5426 = vsel %vm5192, %v5425, %v5424
        %v5427 = vperm.slane %v5027, %v5194
        %v5428 = vsel %vm5196, %v5427, %v5426
        %v5429 = vperm.slane %v5028, %v5198
        %v5430 = vsel %vm5200, %v5429, %v5428
        %v5431 = vperm.slane %v5029, %v5202
        %v5432 = vsel %vm5204, %v5431, %v5430
        %v5433 = vperm.slane %v5030, %v5206
        %v5434 = vsel %vm5208, %v5433, %v5432
        %v5435 = vperm.slane %v5031, %v5210
        %v5436 = vsel %vm5212, %v5435, %v5434
        %v5437 = vperm.slane %v5032, %v5214
        %v5438 = vsel %vm5216, %v5437, %v5436
        %v5439 = vperm.slane %v5033, %v5218
        %v5440 = vsel %vm5220, %v5439, %v5438
        %v5441 = vperm.slane %v5034, %v5222
        %v5442 = vsel %vm5224, %v5441, %v5440
        %vm5443 = vcmask 1042434
        %v5444 = vsel %vm5443, %v5225, %v5225
        %vm5445 = vcmask 1043459
        %v5446 = vsel %vm5445, %v5225, %v5444
        %vm5447 = vcmask 1044484
        %v5448 = vsel %vm5447, %v5225, %v5446
        %vm5449 = vcmask 1045509
        %v5450 = vsel %vm5449, %v5225, %v5448
        %vm5451 = vcmask 1046534
        %v5452 = vsel %vm5451, %v5225, %v5450
        %vm5453 = vcmask 1047559
        %v5454 = vsel %vm5453, %v5225, %v5452
        %v5455 = vsel %vm5443, %v5256, %v5256
        %v5456 = vsel %vm5445, %v5256, %v5455
        %v5457 = vsel %vm5447, %v5256, %v5456
        %v5458 = vsel %vm5449, %v5256, %v5457
        %v5459 = vsel %vm5451, %v5256, %v5458
        %v5460 = vsel %vm5453, %v5256, %v5459
        %v5461 = vsel %vm5443, %v5287, %v5287
        %v5462 = vsel %vm5445, %v5287, %v5461
        %v5463 = vsel %vm5447, %v5287, %v5462
        %v5464 = vsel %vm5449, %v5287, %v5463
        %v5465 = vsel %vm5451, %v5287, %v5464
        %v5466 = vsel %vm5453, %v5287, %v5465
        %v5467 = vsel %vm5443, %v5318, %v5318
        %v5468 = vsel %vm5445, %v5318, %v5467
        %v5469 = vsel %vm5447, %v5318, %v5468
        %v5470 = vsel %vm5449, %v5318, %v5469
        %v5471 = vsel %vm5451, %v5318, %v5470
        %v5472 = vsel %vm5453, %v5318, %v5471
        %v5473 = vsel %vm5443, %v5349, %v5349
        %v5474 = vsel %vm5445, %v5349, %v5473
        %v5475 = vsel %vm5447, %v5349, %v5474
        %v5476 = vsel %vm5449, %v5349, %v5475
        %v5477 = vsel %vm5451, %v5349, %v5476
        %v5478 = vsel %vm5453, %v5349, %v5477
        %v5479 = vsel %vm5443, %v5380, %v5380
        %v5480 = vsel %vm5445, %v5380, %v5479
        %v5481 = vsel %vm5447, %v5380, %v5480
        %v5482 = vsel %vm5449, %v5380, %v5481
        %v5483 = vsel %vm5451, %v5380, %v5482
        %v5484 = vsel %vm5453, %v5380, %v5483
        %v5485 = vsel %vm5443, %v5411, %v5411
        %v5486 = vsel %vm5445, %v5411, %v5485
        %v5487 = vsel %vm5447, %v5411, %v5486
        %v5488 = vsel %vm5449, %v5411, %v5487
        %v5489 = vsel %vm5451, %v5411, %v5488
        %v5490 = vsel %vm5453, %v5411, %v5489
        %v5491 = vsel %vm5443, %v5442, %v5442
        %v5492 = vsel %vm5445, %v5442, %v5491
        %v5493 = vsel %vm5447, %v5442, %v5492
        %v5494 = vsel %vm5449, %v5442, %v5493
        %v5495 = vsel %vm5451, %v5442, %v5494
        %v5496 = vsel %vm5453, %v5442, %v5495
        %v5505 = vmul.f32 %v4197, %v5454
        %v5506 = vmul.f32 %v4225, %v5460
        %v5507 = vmul.f32 %v4199, %v5454
        %v5508 = vmul.f32 %v4227, %v5460
        %v5509 = vmul.f32 %v4423, %v5466
        %v5510 = vmul.f32 %v4451, %v5472
        %v5511 = vmul.f32 %v4425, %v5466
        %v5512 = vmul.f32 %v4453, %v5472
        %v5513 = vmul.f32 %v4649, %v5478
        %v5514 = vmul.f32 %v4677, %v5484
        %v5515 = vmul.f32 %v4651, %v5478
        %v5516 = vmul.f32 %v4679, %v5484
        %v5517 = vmul.f32 %v4875, %v5490
        %v5518 = vmul.f32 %v4903, %v5496
        %v5519 = vmul.f32 %v4877, %v5490
        %v5520 = vmul.f32 %v4905, %v5496
        %v5521 = vpack.c.bf16 %v5507, %v5505
        %v5522 = vpack.c.bf16 %v5508, %v5506
        %v5523 = vpack.c.bf16 %v5511, %v5509
        %v5524 = vpack.c.bf16 %v5512, %v5510
        %v5525 = vpack.c.bf16 %v5515, %v5513
        %v5526 = vpack.c.bf16 %v5516, %v5514
        %v5527 = vpack.c.bf16 %v5519, %v5517
        %v5528 = vpack.c.bf16 %v5520, %v5518
        %v5529 = vld [vmem:[%s6] sm:$0xf]
        %v5530 = vld [vmem:[%s6 + $0x4] sm:$0xf]
        %v5531 = vld [vmem:[%s6 + $0x8] sm:$0xf]
        %v5532 = vld [vmem:[%s6 + $0xc] sm:$0xf]
        %v5533 = vld [vmem:[%s6 + $0x10] sm:$0xf]
        %v5534 = vld [vmem:[%s6 + $0x14] sm:$0xf]
        %v5535 = vld [vmem:[%s6 + $0x18] sm:$0xf]
        %v5536 = vld [vmem:[%s6 + $0x1c] sm:$0xf]
        %v5537 = vld [vmem:[%s7] sm:$0xff]
        %v5538 = vld [vmem:[%s7 + $0x8] sm:$0xff]
        %v5539 = vld [vmem:[%s7 + $0x10] sm:$0xff]
        %v5540 = vld [vmem:[%s7 + $0x18] sm:$0xff]
        %v5541 = vld [vmem:[%s7 + $0x20] sm:$0xff]
        %v5542 = vld [vmem:[%s7 + $0x28] sm:$0xff]
        %v5543 = vld [vmem:[%s7 + $0x30] sm:$0xff]
        %v5544 = vld [vmem:[%s7 + $0x38] sm:$0xff]
        %5546 = vset.pattern.permute.xlu0 0
        %5547 = vperm.xlu0 %5546, %v5537
        %v5548 = vpop.permute.xlu0 %5547
        %5551 = vset.pattern.permute.xlu0 0
        %5552 = vperm.xlu0 %5551, %v5538
        %v5553 = vpop.permute.xlu0 %5552
        %5556 = vset.pattern.permute.xlu0 0
        %5557 = vperm.xlu0 %5556, %v5539
        %v5558 = vpop.permute.xlu0 %5557
        %5561 = vset.pattern.permute.xlu0 0
        %5562 = vperm.xlu0 %5561, %v5540
        %v5563 = vpop.permute.xlu0 %5562
        %5566 = vset.pattern.permute.xlu0 0
        %5567 = vperm.xlu0 %5566, %v5541
        %v5568 = vpop.permute.xlu0 %5567
        %5571 = vset.pattern.permute.xlu0 0
        %5572 = vperm.xlu0 %5571, %v5542
        %v5573 = vpop.permute.xlu0 %5572
        %5576 = vset.pattern.permute.xlu0 0
        %5577 = vperm.xlu0 %5576, %v5543
        %v5578 = vpop.permute.xlu0 %5577
        %5581 = vset.pattern.permute.xlu0 0
        %5582 = vperm.xlu0 %5581, %v5544
        %v5583 = vpop.permute.xlu0 %5582
        %v5593 = vunpack.c.l.b16 %v5529
        %v5594 = vunpack.c.l.b16 %v5530
        %v5595 = vunpack.c.l.b16 %v5531
        %v5596 = vunpack.c.l.b16 %v5532
        %v5597 = vunpack.c.l.b16 %v5533
        %v5598 = vunpack.c.l.b16 %v5534
        %v5599 = vunpack.c.l.b16 %v5535
        %v5600 = vunpack.c.l.b16 %v5536
        %v5601 = vpack.c.b16 %v5594, %v5593
        %v5602 = vpack.c.b16 %v5596, %v5595
        %v5603 = vpack.c.b16 %v5598, %v5597
        %v5604 = vpack.c.b16 %v5600, %v5599
        %v5606 = vsel %vm421, %v5601, 0
        %v5609 = vsel %vm421, %v5602, 0
        %v5612 = vsel %vm421, %v5603, 0
        %v5615 = vsel %vm421, %v5604, 0
        %5617 = vmatpush.bf16.msra.mxu0 0
        %5618 = vmatpush.bf16.msra.mxu0 0
        %5619 = vmatpush.bf16.msra.mxu0 0
        %5620 = vmatpush.bf16.msra.mxu0 0
        %5621 = vmatpush.bf16.msra.mxu0 %v5527
        %5622 = vmatpush.bf16.msra.mxu0 %v5525
        %5623 = vmatpush.bf16.msra.mxu0 %v5523
        %5624 = vmatpush.bf16.msra.mxu0 %v5521
        %5625 = vmatmul.bf16.gmra.mxu0 %v5606
        %v5626 = vpop.f32.mrf.mxu0
        %v5627 = vadd.f32 %v5548, %v5626
        %v5628 = vpop.f32.mrf.mxu0
        %v5629 = vadd.f32 %v5553, %v5628
        %5630 = vmatmul.bf16.gmra.mxu0 %v5609
        %v5631 = vpop.f32.mrf.mxu0
        %v5632 = vadd.f32 %v5558, %v5631
        %v5633 = vpop.f32.mrf.mxu0
        %v5634 = vadd.f32 %v5563, %v5633
        %5635 = vmatmul.bf16.gmra.mxu0 %v5612
        %v5636 = vpop.f32.mrf.mxu0
        %v5637 = vadd.f32 %v5568, %v5636
        %v5638 = vpop.f32.mrf.mxu0
        %v5639 = vadd.f32 %v5573, %v5638
        %5640 = vmatmul.bf16.gmra.mxu0 %v5615
        %v5641 = vpop.f32.mrf.mxu0
        %v5642 = vadd.f32 %v5578, %v5641
        %v5643 = vpop.f32.mrf.mxu0
        %v5644 = vadd.f32 %v5583, %v5643
        %5645 = vdwg.mxu0
        %5646 = vmatpush.bf16.msra.mxu0 0
        %5647 = vmatpush.bf16.msra.mxu0 0
        %5648 = vmatpush.bf16.msra.mxu0 0
        %5649 = vmatpush.bf16.msra.mxu0 0
        %5650 = vmatpush.bf16.msra.mxu0 %v5528
        %5651 = vmatpush.bf16.msra.mxu0 %v5526
        %5652 = vmatpush.bf16.msra.mxu0 %v5524
        %5653 = vmatpush.bf16.msra.mxu0 %v5522
        %5654 = vmatmul.bf16.gmra.mxu0 %v5606
        %v5655 = vpop.f32.mrf.mxu0
        %v5656 = vadd.f32 %v5548, %v5655
        %v5657 = vpop.f32.mrf.mxu0
        %v5658 = vadd.f32 %v5553, %v5657
        %5659 = vmatmul.bf16.gmra.mxu0 %v5609
        %v5660 = vpop.f32.mrf.mxu0
        %v5661 = vadd.f32 %v5558, %v5660
        %v5662 = vpop.f32.mrf.mxu0
        %v5663 = vadd.f32 %v5563, %v5662
        %5664 = vmatmul.bf16.gmra.mxu0 %v5612
        %v5665 = vpop.f32.mrf.mxu0
        %v5666 = vadd.f32 %v5568, %v5665
        %v5667 = vpop.f32.mrf.mxu0
        %v5668 = vadd.f32 %v5573, %v5667
        %5669 = vmatmul.bf16.gmra.mxu0 %v5615
        %v5670 = vpop.f32.mrf.mxu0
        %v5671 = vadd.f32 %v5578, %v5670
        %v5672 = vpop.f32.mrf.mxu0
        %v5673 = vadd.f32 %v5583, %v5672
        %5674 = vdwg.mxu0
        %v5675 = vadd.f32 %v357, %v5627
        %v5676 = vadd.f32 %v358, %v5656
        %v5677 = vadd.f32 %v359, %v5629
        %v5678 = vadd.f32 %v360, %v5658
        %v5679 = vadd.f32 %v361, %v5632
        %v5680 = vadd.f32 %v362, %v5661
        %v5681 = vadd.f32 %v363, %v5634
        %v5682 = vadd.f32 %v364, %v5663
        %v5683 = vadd.f32 %v365, %v5637
        %v5684 = vadd.f32 %v366, %v5666
        %v5685 = vadd.f32 %v367, %v5639
        %v5686 = vadd.f32 %v368, %v5668
        %v5687 = vadd.f32 %v369, %v5642
        %v5688 = vadd.f32 %v370, %v5671
        %v5689 = vadd.f32 %v371, %v5644
        %v5690 = vadd.f32 %v372, %v5673
        %5691 = vst [vmem:[%s353] sm:$0xff] %v5675
        %5692 = vst [vmem:[%s353 + $0x8] sm:$0xff] %v5676
        %5693 = vst [vmem:[%s353 + $0x10] sm:$0xff] %v5677
        %5694 = vst [vmem:[%s353 + $0x18] sm:$0xff] %v5678
        %5695 = vst [vmem:[%s353 + $0x20] sm:$0xff] %v5679
        %5696 = vst [vmem:[%s353 + $0x28] sm:$0xff] %v5680
        %5697 = vst [vmem:[%s353 + $0x30] sm:$0xff] %v5681
        %5698 = vst [vmem:[%s353 + $0x38] sm:$0xff] %v5682
        %5699 = vst [vmem:[%s353 + $0x40] sm:$0xff] %v5683
        %5700 = vst [vmem:[%s353 + $0x48] sm:$0xff] %v5684
        %5701 = vst [vmem:[%s353 + $0x50] sm:$0xff] %v5685
        %5702 = vst [vmem:[%s353 + $0x58] sm:$0xff] %v5686
        %5703 = vst [vmem:[%s353 + $0x60] sm:$0xff] %v5687
        %5704 = vst [vmem:[%s353 + $0x68] sm:$0xff] %v5688
        %5705 = vst [vmem:[%s353 + $0x70] sm:$0xff] %v5689
        %5706 = vst [vmem:[%s353 + $0x78] sm:$0xff] %v5690
        %s5707 = sand.u32 %s203, 1
        %s5708 = scalar_lea.sflag [#allocation4], %s5707
        %s5709 = sand.u32 %s203, 1
        %s5710 = smul.addr %s5709, 128
        %s5711 = scalar_lea.vmem [#allocation3], %s5710
        // Predicated region
        $region76: #{tpu_custom_call.1} parent=70 // pred_check
          %p5712 = pneg %p213
        $region77: #{tpu_custom_call.1} parent=70 // pred_check_branch
          %5714 = sbr.rel (%p5712) target = $region79
        $region78: #{tpu_custom_call.1} parent=70 // pred_region
          %s5715 = smul.u32 2, %s22
          %5717 = vsyncadd %s5708, 0
          %s5718 = smul.addr %s5715, 8
          %s5719 = scalar_lea.hbm %s8, %s5718
          %s5720 = sshll.u32 %s5711, 4
          %s5721 = int_to_ptr.vmem [resolvable:$true] %s5720
          %s5722 = sshll.u32 %s5719, 4
          %s5723 = int_to_ptr.hbm [resolvable:$true] %s5722
          %5728 = dma.vmem_to_hbm [thread:$0]  %s5721, 2048, %s5723, %s5708, 256, 512, 16
        $region79: #{tpu_custom_call.1} parent=70 // pred_fallthru
          _
      $region71: #{tpu_custom_call.1} parent=5 // pred_fallthru
        _
      %p5729 = scmp.le.s32.totalorder 2, %s17
      // Predicated region
      $region80: #{tpu_custom_call.1} parent=5 // pred_check
        %p5730 = pneg %p5729
      $region81: #{tpu_custom_call.1} parent=5 // pred_check_branch
        %5732 = sbr.rel (%p5730) target = $region83
      $region82: #{tpu_custom_call.1} parent=5 // pred_region
        %s5733 = ssub.s32 %s17, 2
        // Predicated region
        $region84: #{tpu_custom_call.1} parent=82 // pred_check
          %p5734 = pneg %p219
        $region85: #{tpu_custom_call.1} parent=82 // pred_check_branch
          %5736 = sbr.rel (%p5734) target = $region87
        $region86: #{tpu_custom_call.1} parent=82 // pred_region
          %s5737 = sand.u32 %s204, 1
          %s5738 = scalar_lea.sflag [#allocation4], %s5737
          %s5739 = sand.u32 %s204, 1
          %s5740 = smul.addr %s5739, 128
          %s5741 = scalar_lea.vmem [#allocation3], %s5740
          %5743 = dma.done %s5738, 2048
        $region87: #{tpu_custom_call.1} parent=82 // pred_fallthru
          _
      $region83: #{tpu_custom_call.1} parent=5 // pred_fallthru
        _
    $region6: #{tpu_custom_call.1} parent=1 // loop_footer
      %s21 = sadd.s32 1, %s17
    $region7: #{tpu_custom_call.1} parent=1 // loop_footer_branch
      %16 = sbr.rel target = $region3
    $region8: #{tpu_custom_call.1} parent=1 // loop_exit
      _
    %5744 = vsyncpa [#allocation4], 1
    %s5745 = scalar_lea.sflag [#allocation4], 1
    %5746 = vsyncpa %s5745, 1

</llo_original>
